<compile_context>
chip_gen: v5e
topology: v5e:2x2
jax: 0.10.0
libtpu: 0.0.40
codegen_flags: <defaults>
</compile_context>

<pallas_src>
import math
import functools

import jax
import jax.numpy as jnp
from jax.experimental import pallas as pl
from jax.experimental.pallas import tpu as pltpu

MXU_DTYPE = jnp.bfloat16        # matmul operand dtype (MXU native)
_LN_EPS = 1e-5
_GELU_C = 0.7978845608028654    # sqrt(2/pi)


def _ln(x_f32, g, b):
    mu = jnp.mean(x_f32, axis=-1, keepdims=True)
    var = jnp.mean(jnp.square(x_f32 - mu), axis=-1, keepdims=True)
    return (x_f32 - mu) * jax.lax.rsqrt(var + _LN_EPS) * g + b


def _gelu_tanh(x):
    # tanh-approx GELU (dispatches to the EUP slot); ~1e-3 abs divergence vs
    # the exact-erf nn.GELU default — acceptable for bf16 inference.
    return 0.5 * x * (1.0 + jnp.tanh(_GELU_C * (x + 0.044715 * x * x * x)))


# ----------------------------- fused kernel --------------------------------

def _stack_kernel(x_ref,
                  ln1_g_ref, ln1_b_ref, qkv_w_ref, qkv_b_ref,
                  out_w_ref, out_b_ref, ln2_g_ref, ln2_b_ref,
                  fc1_w_ref, fc1_b_ref, fc2_w_ref, fc2_b_ref,
                  h1_w_ref, h1_b_ref, h2_w_ref, h2_b_ref,
                  o_ref, *, n_layers, nhead, scale):
    """Whole encoder stack + classification head for one batch element."""
    L, C = x_ref.shape
    dh = C // nhead
    x = x_ref[...].astype(jnp.float32)                 # f32 residual stream

    for l in range(n_layers):                          # static unroll over layers
        # ---- LN1 + fused QKV projection ----
        o = _ln(x, ln1_g_ref[l], ln1_b_ref[l])
        qkv = jnp.dot(o.astype(MXU_DTYPE), qkv_w_ref[l],
                      preferred_element_type=jnp.float32) + qkv_b_ref[l]
        q = qkv[:, 0 * C:1 * C].astype(MXU_DTYPE)
        k = qkv[:, 1 * C:2 * C].astype(MXU_DTYPE)
        v = qkv[:, 2 * C:3 * C].astype(MXU_DTYPE)

        # ---- multi-head attention; out-proj folded into the head loop ----
        wo = out_w_ref[l]                              # (C, C) bf16
        acc = jnp.zeros((L, C), jnp.float32)
        # TODO(synk): flash-tile the KV axis (running max/sum) when L grows.
        for h in range(nhead):                         # static head loop
            lo, hi = h * dh, (h + 1) * dh
            s = jax.lax.dot_general(q[:, lo:hi], k[:, lo:hi],
                                    (((1,), (1,)), ((), ())),
                                    preferred_element_type=jnp.float32) * scale
            s = s - jnp.max(s, axis=-1, keepdims=True)         # f32 softmax
            p = jnp.exp(s)
            p = p * pl.reciprocal(jnp.sum(p, axis=-1, keepdims=True), approx=True)
            pv = jnp.dot(p.astype(MXU_DTYPE), v[:, lo:hi],
                         preferred_element_type=jnp.float32)    # (L, dh)
            acc = acc + jnp.dot(pv.astype(MXU_DTYPE), wo[lo:hi, :],
                                preferred_element_type=jnp.float32)
        x = x + acc + out_b_ref[l]                     # residual 1

        # ---- LN2 + MLP ----
        y = _ln(x, ln2_g_ref[l], ln2_b_ref[l])
        h1 = jnp.dot(y.astype(MXU_DTYPE), fc1_w_ref[l],
                     preferred_element_type=jnp.float32) + fc1_b_ref[l]
        h1 = _gelu_tanh(h1)
        h2 = jnp.dot(h1.astype(MXU_DTYPE), fc2_w_ref[l],
                     preferred_element_type=jnp.float32) + fc2_b_ref[l]
        x = x + h2                                     # residual 2

    # ---- classification head: Linear -> Tanh -> Linear ----
    hh = jnp.dot(x.astype(MXU_DTYPE), h1_w_ref[...],
                 preferred_element_type=jnp.float32) + h1_b_ref[...]
    hh = jnp.tanh(hh)
    logits = jnp.dot(hh.astype(MXU_DTYPE), h2_w_ref[...],
                     preferred_element_type=jnp.float32) + h2_b_ref[...]
    o_ref[...] = logits.astype(o_ref.dtype)


# ------------------------------ JAX glue ------------------------------------

def sinusoidal_pe_2d(d_model, H, W):
    """PositionEncodingSine with temp_bug_fix=True, sliced to (d_model, H, W)."""
    y_pos = jnp.broadcast_to(jnp.arange(1, H + 1, dtype=jnp.float32)[:, None], (H, W))
    x_pos = jnp.broadcast_to(jnp.arange(1, W + 1, dtype=jnp.float32)[None, :], (H, W))
    div = jnp.exp(jnp.arange(0, d_model // 2, 2, dtype=jnp.float32)
                  * (-math.log(10000.0) / (d_model // 2)))
    div = div[:, None, None]
    pe = jnp.zeros((d_model, H, W), dtype=jnp.float32)
    pe = pe.at[0::4].set(jnp.sin(x_pos[None] * div))
    pe = pe.at[1::4].set(jnp.cos(x_pos[None] * div))
    pe = pe.at[2::4].set(jnp.sin(y_pos[None] * div))
    pe = pe.at[3::4].set(jnp.cos(y_pos[None] * div))
    return pe


def _constant_spec(shape):
    nd = len(shape)
    return pl.BlockSpec(shape, lambda b: (0,) * nd)     # invariant VMEM block


def transformer_cla_forward(z, params, *, nhead):
    B, C, H, W = z.shape
    L = H * W
    assert C % nhead == 0
    n_layers = params['qkv_w'].shape[0]
    mlp = params['fc1_w'].shape[2]
    K = params['head2_w'].shape[1]
    dh = C // nhead

    # positional encoding + NCHW -> (B, L, C) token-major, channels in lanes
    pe = sinusoidal_pe_2d(C, H, W)
    x = (z + pe[None]).astype(jnp.float32)
    x = jnp.transpose(x, (0, 2, 3, 1)).reshape(B, L, C)

    kernel = functools.partial(_stack_kernel, n_layers=n_layers, nhead=nhead,
                               scale=1.0 / math.sqrt(dh))

    flops = B * n_layers * (2 * L * C * 3 * C + 4 * L * L * C
                            + 2 * L * C * C + 4 * L * C * mlp) \
            + B * 2 * L * C * (C + K)
    trans = B * (n_layers * (nhead * L * L + L * mlp + 4 * L) + L * C)
    bytes_acc = int(B * L * C * 4 + B * L * K * 4
                    + n_layers * (3 * C * C + C * C + 2 * C * mlp) * 2
                    + (C * C + C * K) * 2)

    weight_args = (
        params['ln1_g'], params['ln1_b'], params['qkv_w'], params['qkv_b'],
        params['out_w'], params['out_b'], params['ln2_g'], params['ln2_b'],
        params['fc1_w'], params['fc1_b'], params['fc2_w'], params['fc2_b'],
        params['head1_w'], params['head1_b'], params['head2_w'], params['head2_b'],
    )
    in_specs = [pl.BlockSpec((None, L, C), lambda b: (b, 0, 0))]
    in_specs += [_constant_spec(w.shape) for w in weight_args]

    return pl.pallas_call(
        kernel,
        out_shape=jax.ShapeDtypeStruct((B, L, K), jnp.float32),
        grid=(B,),
        in_specs=in_specs,
        out_specs=pl.BlockSpec((None, L, K), lambda b: (b, 0, 0)),
        compiler_params=pltpu.CompilerParams(
            dimension_semantics=("parallel",)),          # B steps shard over TCs
        cost_estimate=pl.CostEstimate(flops=flops, transcendentals=trans,
                                      bytes_accessed=bytes_acc),
    )(x, *weight_args)                                   # (B, H*W, num_classes)


def init_params(key, *, C, K, mlp_dim, n_layers, w_dtype=MXU_DTYPE):
    ks = jax.random.split(key, 2 + 4 * n_layers)

    def w(k, shape, scale=0.05):
        return (scale * jax.random.normal(k, shape, dtype=jnp.float32)).astype(w_dtype)

    # Per-layer weights stacked along a leading layer axis (one VMEM block each).
    return {
        'ln1_g': jnp.ones((n_layers, C), jnp.float32),
        'ln1_b': jnp.zeros((n_layers, C), jnp.float32),
        'qkv_w': jnp.stack([w(ks[2 + 4 * i + 0], (C, 3 * C)) for i in range(n_layers)]),
        'qkv_b': jnp.zeros((n_layers, 3 * C), jnp.float32),
        'out_w': jnp.stack([w(ks[2 + 4 * i + 1], (C, C)) for i in range(n_layers)]),
        'out_b': jnp.zeros((n_layers, C), jnp.float32),
        'ln2_g': jnp.ones((n_layers, C), jnp.float32),
        'ln2_b': jnp.zeros((n_layers, C), jnp.float32),
        'fc1_w': jnp.stack([w(ks[2 + 4 * i + 2], (C, mlp_dim)) for i in range(n_layers)]),
        'fc1_b': jnp.zeros((n_layers, mlp_dim), jnp.float32),
        'fc2_w': jnp.stack([w(ks[2 + 4 * i + 3], (mlp_dim, C)) for i in range(n_layers)]),
        'fc2_b': jnp.zeros((n_layers, C), jnp.float32),
        'head1_w': w(ks[0], (C, C)),
        'head1_b': jnp.zeros((1, C), jnp.float32),
        'head2_w': w(ks[1], (C, K)),
        'head2_b': jnp.zeros((1, K), jnp.float32),
    }


if __name__ == "__main__":
    # Scaled-down, lane-friendly hyperparameters (dims multiples of 128):
    B, C, H, W = 2, 128, 8, 8    # d_model = latent_dim = 128, 8x8 spatial -> L=64
    K = 256                      # num_classes (orig 1024)
    NHEAD = 4                    # head_dim 32
    MLP = 256                    # dim_feedforward (orig 2048)
    NLAYERS = 2                  # num_encoder_layers (orig 6)

    key = jax.random.PRNGKey(0)
    kz, kp = jax.random.split(key)
    z = jax.random.normal(kz, (B, C, H, W), dtype=jnp.float32)
    params = init_params(kp, C=C, K=K, mlp_dim=MLP, n_layers=NLAYERS)

    fwd = jax.jit(functools.partial(transformer_cla_forward, nhead=NHEAD))
    logits = fwd(z, params)
    jax.block_until_ready(logits)

    assert logits.shape == (B, H * W, K)
    assert bool(jnp.all(jnp.isfinite(logits)))
    print("KERNEL_OK")
</pallas_src>

<mosaic_0001>
module attributes {stable_mosaic.version = 11 : i64} {
  func.func @_stack_kernel(%arg0: i32, %arg1: memref<1x64x128xf32, #tpu.memory_space<vmem>>, %arg2: memref<2x128xf32, #tpu.memory_space<vmem>>, %arg3: memref<2x128xf32, #tpu.memory_space<vmem>>, %arg4: memref<2x128x384xbf16, #tpu.memory_space<vmem>>, %arg5: memref<2x384xf32, #tpu.memory_space<vmem>>, %arg6: memref<2x128x128xbf16, #tpu.memory_space<vmem>>, %arg7: memref<2x128xf32, #tpu.memory_space<vmem>>, %arg8: memref<2x128xf32, #tpu.memory_space<vmem>>, %arg9: memref<2x128xf32, #tpu.memory_space<vmem>>, %arg10: memref<2x128x256xbf16, #tpu.memory_space<vmem>>, %arg11: memref<2x256xf32, #tpu.memory_space<vmem>>, %arg12: memref<2x256x128xbf16, #tpu.memory_space<vmem>>, %arg13: memref<2x128xf32, #tpu.memory_space<vmem>>, %arg14: memref<128x128xbf16, #tpu.memory_space<vmem>>, %arg15: memref<1x128xf32, #tpu.memory_space<vmem>>, %arg16: memref<128x256xbf16, #tpu.memory_space<vmem>>, %arg17: memref<1x256xf32, #tpu.memory_space<vmem>>, %arg18: memref<1x64x256xf32, #tpu.memory_space<vmem>>) attributes {dimension_semantics = [#tpu.dimension_semantics<parallel>], iteration_bounds = array<i64: 2>, scalar_prefetch = 0 : i64, scratch_operands = 0 : i64, tpu.core_type = #tpu.core_type<tc>, window_params = [{transform_indices = @transform_0, window_bounds = array<i64: 1, 64, 128>}, {pipeline_mode = #tpu.pipeline_mode<synchronous>, transform_indices = @transform_1, window_bounds = array<i64: 2, 128>}, {pipeline_mode = #tpu.pipeline_mode<synchronous>, transform_indices = @transform_2, window_bounds = array<i64: 2, 128>}, {pipeline_mode = #tpu.pipeline_mode<synchronous>, transform_indices = @transform_3, window_bounds = array<i64: 2, 128, 384>}, {pipeline_mode = #tpu.pipeline_mode<synchronous>, transform_indices = @transform_4, window_bounds = array<i64: 2, 384>}, {pipeline_mode = #tpu.pipeline_mode<synchronous>, transform_indices = @transform_5, window_bounds = array<i64: 2, 128, 128>}, {pipeline_mode = #tpu.pipeline_mode<synchronous>, transform_indices = @transform_6, window_bounds = array<i64: 2, 128>}, {pipeline_mode = #tpu.pipeline_mode<synchronous>, transform_indices = @transform_7, window_bounds = array<i64: 2, 128>}, {pipeline_mode = #tpu.pipeline_mode<synchronous>, transform_indices = @transform_8, window_bounds = array<i64: 2, 128>}, {pipeline_mode = #tpu.pipeline_mode<synchronous>, transform_indices = @transform_9, window_bounds = array<i64: 2, 128, 256>}, {pipeline_mode = #tpu.pipeline_mode<synchronous>, transform_indices = @transform_10, window_bounds = array<i64: 2, 256>}, {pipeline_mode = #tpu.pipeline_mode<synchronous>, transform_indices = @transform_11, window_bounds = array<i64: 2, 256, 128>}, {pipeline_mode = #tpu.pipeline_mode<synchronous>, transform_indices = @transform_12, window_bounds = array<i64: 2, 128>}, {pipeline_mode = #tpu.pipeline_mode<synchronous>, transform_indices = @transform_13, window_bounds = array<i64: 128, 128>}, {pipeline_mode = #tpu.pipeline_mode<synchronous>, transform_indices = @transform_14, window_bounds = array<i64: 1, 128>}, {pipeline_mode = #tpu.pipeline_mode<synchronous>, transform_indices = @transform_15, window_bounds = array<i64: 128, 256>}, {pipeline_mode = #tpu.pipeline_mode<synchronous>, transform_indices = @transform_16, window_bounds = array<i64: 1, 256>}, {transform_indices = @transform_17, window_bounds = array<i64: 1, 64, 256>}]} {
    %c0 = arith.constant 0 : index
    %c0_0 = arith.constant 0 : index
    %c0_1 = arith.constant 0 : index
    %0 = vector.load %arg1[%c0, %c0_0, %c0_1] : memref<1x64x128xf32, #tpu.memory_space<vmem>>, vector<1x64x128xf32>
    %1 = vector.shape_cast %0 : vector<1x64x128xf32> to vector<64x128xf32>
    %c0_2 = arith.constant 0 : index
    %c0_3 = arith.constant 0 : index
    %2 = vector.load %arg2[%c0_2, %c0_3] : memref<2x128xf32, #tpu.memory_space<vmem>>, vector<1x128xf32>
    %3 = vector.shape_cast %2 : vector<1x128xf32> to vector<128xf32>
    %c0_4 = arith.constant 0 : index
    %c0_5 = arith.constant 0 : index
    %4 = vector.load %arg3[%c0_4, %c0_5] : memref<2x128xf32, #tpu.memory_space<vmem>>, vector<1x128xf32>
    %5 = vector.shape_cast %4 : vector<1x128xf32> to vector<128xf32>
    %cst = arith.constant dense<0.000000e+00> : vector<64xf32>
    %6 = vector.multi_reduction <add>, %1, %cst [1] : vector<64x128xf32> to vector<64xf32>
    %7 = vector.shape_cast %6 : vector<64xf32> to vector<64x1xf32>
    %cst_6 = arith.constant 1.280000e+02 : f32
    %8 = vector.broadcast %cst_6 : f32 to vector<64x1xf32>
    %9 = arith.divf %7, %8 : vector<64x1xf32>
    %10 = vector.broadcast %9 : vector<64x1xf32> to vector<64x128xf32>
    %11 = arith.subf %1, %10 : vector<64x128xf32>
    %12 = arith.mulf %11, %11 : vector<64x128xf32>
    %cst_7 = arith.constant dense<0.000000e+00> : vector<64xf32>
    %13 = vector.multi_reduction <add>, %12, %cst_7 [1] : vector<64x128xf32> to vector<64xf32>
    %14 = vector.shape_cast %13 : vector<64xf32> to vector<64x1xf32>
    %cst_8 = arith.constant 1.280000e+02 : f32
    %15 = vector.broadcast %cst_8 : f32 to vector<64x1xf32>
    %16 = arith.divf %14, %15 : vector<64x1xf32>
    %17 = vector.broadcast %9 : vector<64x1xf32> to vector<64x128xf32>
    %18 = arith.subf %1, %17 : vector<64x128xf32>
    %cst_9 = arith.constant 9.99999974E-6 : f32
    %19 = vector.broadcast %cst_9 : f32 to vector<64x1xf32>
    %20 = arith.addf %16, %19 : vector<64x1xf32>
    %21 = math.rsqrt %20 : vector<64x1xf32>
    %22 = vector.broadcast %21 : vector<64x1xf32> to vector<64x128xf32>
    %23 = arith.mulf %18, %22 : vector<64x128xf32>
    %24 = vector.shape_cast %3 : vector<128xf32> to vector<1x128xf32>
    %25 = vector.broadcast %24 : vector<1x128xf32> to vector<64x128xf32>
    %26 = arith.mulf %23, %25 : vector<64x128xf32>
    %27 = vector.shape_cast %5 : vector<128xf32> to vector<1x128xf32>
    %28 = vector.broadcast %27 : vector<1x128xf32> to vector<64x128xf32>
    %29 = arith.addf %26, %28 : vector<64x128xf32>
    %30 = arith.truncf %29 : vector<64x128xf32> to vector<64x128xbf16>
    %c0_10 = arith.constant 0 : index
    %c0_11 = arith.constant 0 : index
    %c0_12 = arith.constant 0 : index
    %31 = vector.load %arg4[%c0_10, %c0_11, %c0_12] : memref<2x128x384xbf16, #tpu.memory_space<vmem>>, vector<1x128x384xbf16>
    %32 = vector.shape_cast %31 : vector<1x128x384xbf16> to vector<128x384xbf16>
    %cst_13 = arith.constant dense<0.000000e+00> : vector<64x384xf32>
    %33 = tpu.matmul %30, %32, %cst_13 {dimension_numbers = #tpu.dot_dimension_numbers<[1], [0], [0], [1], [0, 0, 1, 1], [], []>} : vector<64x128xbf16>, vector<128x384xbf16>, vector<64x384xf32> -> vector<64x384xf32>
    %c0_14 = arith.constant 0 : index
    %c0_15 = arith.constant 0 : index
    %34 = vector.load %arg5[%c0_14, %c0_15] : memref<2x384xf32, #tpu.memory_space<vmem>>, vector<1x384xf32>
    %35 = vector.shape_cast %34 : vector<1x384xf32> to vector<384xf32>
    %36 = vector.shape_cast %35 : vector<384xf32> to vector<1x384xf32>
    %37 = vector.broadcast %36 : vector<1x384xf32> to vector<64x384xf32>
    %38 = arith.addf %33, %37 : vector<64x384xf32>
    %39 = vector.extract_strided_slice %38 {offsets = [0, 0], sizes = [64, 128], strides = [1, 1]} : vector<64x384xf32> to vector<64x128xf32>
    %40 = arith.truncf %39 : vector<64x128xf32> to vector<64x128xbf16>
    %41 = vector.extract_strided_slice %38 {offsets = [0, 128], sizes = [64, 128], strides = [1, 1]} : vector<64x384xf32> to vector<64x128xf32>
    %42 = arith.truncf %41 : vector<64x128xf32> to vector<64x128xbf16>
    %43 = vector.extract_strided_slice %38 {offsets = [0, 256], sizes = [64, 128], strides = [1, 1]} : vector<64x384xf32> to vector<64x128xf32>
    %44 = arith.truncf %43 : vector<64x128xf32> to vector<64x128xbf16>
    %c0_16 = arith.constant 0 : index
    %c0_17 = arith.constant 0 : index
    %c0_18 = arith.constant 0 : index
    %45 = vector.load %arg6[%c0_16, %c0_17, %c0_18] : memref<2x128x128xbf16, #tpu.memory_space<vmem>>, vector<1x128x128xbf16>
    %46 = vector.shape_cast %45 : vector<1x128x128xbf16> to vector<128x128xbf16>
    %cst_19 = arith.constant 0.000000e+00 : f32
    %47 = vector.broadcast %cst_19 : f32 to vector<64x128xf32>
    %48 = vector.extract_strided_slice %40 {offsets = [0, 0], sizes = [64, 32], strides = [1, 1]} : vector<64x128xbf16> to vector<64x32xbf16>
    %49 = vector.extract_strided_slice %42 {offsets = [0, 0], sizes = [64, 32], strides = [1, 1]} : vector<64x128xbf16> to vector<64x32xbf16>
    %cst_20 = arith.constant dense<0.000000e+00> : vector<64x64xf32>
    %50 = tpu.matmul %48, %49, %cst_20 {dimension_numbers = #tpu.dot_dimension_numbers<[1], [1], [0], [0], [0, 0, 1, 0], [], []>} : vector<64x32xbf16>, vector<64x32xbf16>, vector<64x64xf32> -> vector<64x64xf32>
    %cst_21 = arith.constant 0.176776692 : f32
    %51 = vector.broadcast %cst_21 : f32 to vector<64x64xf32>
    %52 = arith.mulf %50, %51 : vector<64x64xf32>
    %cst_22 = arith.constant dense<0xFF800000> : vector<64xf32>
    %53 = vector.multi_reduction <maximumf>, %52, %cst_22 [1] : vector<64x64xf32> to vector<64xf32>
    %54 = vector.shape_cast %53 : vector<64xf32> to vector<64x1xf32>
    %55 = vector.broadcast %54 : vector<64x1xf32> to vector<64x64xf32>
    %56 = arith.subf %52, %55 : vector<64x64xf32>
    %57 = math.exp %56 : vector<64x64xf32>
    %cst_23 = arith.constant dense<0.000000e+00> : vector<64xf32>
    %58 = vector.multi_reduction <add>, %57, %cst_23 [1] : vector<64x64xf32> to vector<64xf32>
    %59 = vector.shape_cast %58 : vector<64xf32> to vector<64x1xf32>
    %60 = tpu.reciprocal %59 {approx = true} : vector<64x1xf32> -> vector<64x1xf32>
    %61 = vector.broadcast %60 : vector<64x1xf32> to vector<64x64xf32>
    %62 = arith.mulf %57, %61 : vector<64x64xf32>
    %63 = arith.truncf %62 : vector<64x64xf32> to vector<64x64xbf16>
    %64 = vector.extract_strided_slice %44 {offsets = [0, 0], sizes = [64, 32], strides = [1, 1]} : vector<64x128xbf16> to vector<64x32xbf16>
    %cst_24 = arith.constant dense<0.000000e+00> : vector<64x32xf32>
    %65 = tpu.matmul %63, %64, %cst_24 {dimension_numbers = #tpu.dot_dimension_numbers<[1], [0], [0], [1], [0, 0, 1, 1], [], []>} : vector<64x64xbf16>, vector<64x32xbf16>, vector<64x32xf32> -> vector<64x32xf32>
    %66 = arith.truncf %65 : vector<64x32xf32> to vector<64x32xbf16>
    %67 = vector.extract_strided_slice %46 {offsets = [0, 0], sizes = [32, 128], strides = [1, 1]} : vector<128x128xbf16> to vector<32x128xbf16>
    %cst_25 = arith.constant dense<0.000000e+00> : vector<64x128xf32>
    %68 = tpu.matmul %66, %67, %cst_25 {dimension_numbers = #tpu.dot_dimension_numbers<[1], [0], [0], [1], [0, 0, 1, 1], [], []>} : vector<64x32xbf16>, vector<32x128xbf16>, vector<64x128xf32> -> vector<64x128xf32>
    %69 = arith.addf %47, %68 : vector<64x128xf32>
    %70 = vector.extract_strided_slice %40 {offsets = [0, 32], sizes = [64, 32], strides = [1, 1]} : vector<64x128xbf16> to vector<64x32xbf16>
    %71 = vector.extract_strided_slice %42 {offsets = [0, 32], sizes = [64, 32], strides = [1, 1]} : vector<64x128xbf16> to vector<64x32xbf16>
    %cst_26 = arith.constant dense<0.000000e+00> : vector<64x64xf32>
    %72 = tpu.matmul %70, %71, %cst_26 {dimension_numbers = #tpu.dot_dimension_numbers<[1], [1], [0], [0], [0, 0, 1, 0], [], []>} : vector<64x32xbf16>, vector<64x32xbf16>, vector<64x64xf32> -> vector<64x64xf32>
    %cst_27 = arith.constant 0.176776692 : f32
    %73 = vector.broadcast %cst_27 : f32 to vector<64x64xf32>
    %74 = arith.mulf %72, %73 : vector<64x64xf32>
    %cst_28 = arith.constant dense<0xFF800000> : vector<64xf32>
    %75 = vector.multi_reduction <maximumf>, %74, %cst_28 [1] : vector<64x64xf32> to vector<64xf32>
    %76 = vector.shape_cast %75 : vector<64xf32> to vector<64x1xf32>
    %77 = vector.broadcast %76 : vector<64x1xf32> to vector<64x64xf32>
    %78 = arith.subf %74, %77 : vector<64x64xf32>
    %79 = math.exp %78 : vector<64x64xf32>
    %cst_29 = arith.constant dense<0.000000e+00> : vector<64xf32>
    %80 = vector.multi_reduction <add>, %79, %cst_29 [1] : vector<64x64xf32> to vector<64xf32>
    %81 = vector.shape_cast %80 : vector<64xf32> to vector<64x1xf32>
    %82 = tpu.reciprocal %81 {approx = true} : vector<64x1xf32> -> vector<64x1xf32>
    %83 = vector.broadcast %82 : vector<64x1xf32> to vector<64x64xf32>
    %84 = arith.mulf %79, %83 : vector<64x64xf32>
    %85 = arith.truncf %84 : vector<64x64xf32> to vector<64x64xbf16>
    %86 = vector.extract_strided_slice %44 {offsets = [0, 32], sizes = [64, 32], strides = [1, 1]} : vector<64x128xbf16> to vector<64x32xbf16>
    %cst_30 = arith.constant dense<0.000000e+00> : vector<64x32xf32>
    %87 = tpu.matmul %85, %86, %cst_30 {dimension_numbers = #tpu.dot_dimension_numbers<[1], [0], [0], [1], [0, 0, 1, 1], [], []>} : vector<64x64xbf16>, vector<64x32xbf16>, vector<64x32xf32> -> vector<64x32xf32>
    %88 = arith.truncf %87 : vector<64x32xf32> to vector<64x32xbf16>
    %89 = vector.extract_strided_slice %46 {offsets = [32, 0], sizes = [32, 128], strides = [1, 1]} : vector<128x128xbf16> to vector<32x128xbf16>
    %cst_31 = arith.constant dense<0.000000e+00> : vector<64x128xf32>
    %90 = tpu.matmul %88, %89, %cst_31 {dimension_numbers = #tpu.dot_dimension_numbers<[1], [0], [0], [1], [0, 0, 1, 1], [], []>} : vector<64x32xbf16>, vector<32x128xbf16>, vector<64x128xf32> -> vector<64x128xf32>
    %91 = arith.addf %69, %90 : vector<64x128xf32>
    %92 = vector.extract_strided_slice %40 {offsets = [0, 64], sizes = [64, 32], strides = [1, 1]} : vector<64x128xbf16> to vector<64x32xbf16>
    %93 = vector.extract_strided_slice %42 {offsets = [0, 64], sizes = [64, 32], strides = [1, 1]} : vector<64x128xbf16> to vector<64x32xbf16>
    %cst_32 = arith.constant dense<0.000000e+00> : vector<64x64xf32>
    %94 = tpu.matmul %92, %93, %cst_32 {dimension_numbers = #tpu.dot_dimension_numbers<[1], [1], [0], [0], [0, 0, 1, 0], [], []>} : vector<64x32xbf16>, vector<64x32xbf16>, vector<64x64xf32> -> vector<64x64xf32>
    %cst_33 = arith.constant 0.176776692 : f32
    %95 = vector.broadcast %cst_33 : f32 to vector<64x64xf32>
    %96 = arith.mulf %94, %95 : vector<64x64xf32>
    %cst_34 = arith.constant dense<0xFF800000> : vector<64xf32>
    %97 = vector.multi_reduction <maximumf>, %96, %cst_34 [1] : vector<64x64xf32> to vector<64xf32>
    %98 = vector.shape_cast %97 : vector<64xf32> to vector<64x1xf32>
    %99 = vector.broadcast %98 : vector<64x1xf32> to vector<64x64xf32>
    %100 = arith.subf %96, %99 : vector<64x64xf32>
    %101 = math.exp %100 : vector<64x64xf32>
    %cst_35 = arith.constant dense<0.000000e+00> : vector<64xf32>
    %102 = vector.multi_reduction <add>, %101, %cst_35 [1] : vector<64x64xf32> to vector<64xf32>
    %103 = vector.shape_cast %102 : vector<64xf32> to vector<64x1xf32>
    %104 = tpu.reciprocal %103 {approx = true} : vector<64x1xf32> -> vector<64x1xf32>
    %105 = vector.broadcast %104 : vector<64x1xf32> to vector<64x64xf32>
    %106 = arith.mulf %101, %105 : vector<64x64xf32>
    %107 = arith.truncf %106 : vector<64x64xf32> to vector<64x64xbf16>
    %108 = vector.extract_strided_slice %44 {offsets = [0, 64], sizes = [64, 32], strides = [1, 1]} : vector<64x128xbf16> to vector<64x32xbf16>
    %cst_36 = arith.constant dense<0.000000e+00> : vector<64x32xf32>
    %109 = tpu.matmul %107, %108, %cst_36 {dimension_numbers = #tpu.dot_dimension_numbers<[1], [0], [0], [1], [0, 0, 1, 1], [], []>} : vector<64x64xbf16>, vector<64x32xbf16>, vector<64x32xf32> -> vector<64x32xf32>
    %110 = arith.truncf %109 : vector<64x32xf32> to vector<64x32xbf16>
    %111 = vector.extract_strided_slice %46 {offsets = [64, 0], sizes = [32, 128], strides = [1, 1]} : vector<128x128xbf16> to vector<32x128xbf16>
    %cst_37 = arith.constant dense<0.000000e+00> : vector<64x128xf32>
    %112 = tpu.matmul %110, %111, %cst_37 {dimension_numbers = #tpu.dot_dimension_numbers<[1], [0], [0], [1], [0, 0, 1, 1], [], []>} : vector<64x32xbf16>, vector<32x128xbf16>, vector<64x128xf32> -> vector<64x128xf32>
    %113 = arith.addf %91, %112 : vector<64x128xf32>
    %114 = vector.extract_strided_slice %40 {offsets = [0, 96], sizes = [64, 32], strides = [1, 1]} : vector<64x128xbf16> to vector<64x32xbf16>
    %115 = vector.extract_strided_slice %42 {offsets = [0, 96], sizes = [64, 32], strides = [1, 1]} : vector<64x128xbf16> to vector<64x32xbf16>
    %cst_38 = arith.constant dense<0.000000e+00> : vector<64x64xf32>
    %116 = tpu.matmul %114, %115, %cst_38 {dimension_numbers = #tpu.dot_dimension_numbers<[1], [1], [0], [0], [0, 0, 1, 0], [], []>} : vector<64x32xbf16>, vector<64x32xbf16>, vector<64x64xf32> -> vector<64x64xf32>
    %cst_39 = arith.constant 0.176776692 : f32
    %117 = vector.broadcast %cst_39 : f32 to vector<64x64xf32>
    %118 = arith.mulf %116, %117 : vector<64x64xf32>
    %cst_40 = arith.constant dense<0xFF800000> : vector<64xf32>
    %119 = vector.multi_reduction <maximumf>, %118, %cst_40 [1] : vector<64x64xf32> to vector<64xf32>
    %120 = vector.shape_cast %119 : vector<64xf32> to vector<64x1xf32>
    %121 = vector.broadcast %120 : vector<64x1xf32> to vector<64x64xf32>
    %122 = arith.subf %118, %121 : vector<64x64xf32>
    %123 = math.exp %122 : vector<64x64xf32>
    %cst_41 = arith.constant dense<0.000000e+00> : vector<64xf32>
    %124 = vector.multi_reduction <add>, %123, %cst_41 [1] : vector<64x64xf32> to vector<64xf32>
    %125 = vector.shape_cast %124 : vector<64xf32> to vector<64x1xf32>
    %126 = tpu.reciprocal %125 {approx = true} : vector<64x1xf32> -> vector<64x1xf32>
    %127 = vector.broadcast %126 : vector<64x1xf32> to vector<64x64xf32>
    %128 = arith.mulf %123, %127 : vector<64x64xf32>
    %129 = arith.truncf %128 : vector<64x64xf32> to vector<64x64xbf16>
    %130 = vector.extract_strided_slice %44 {offsets = [0, 96], sizes = [64, 32], strides = [1, 1]} : vector<64x128xbf16> to vector<64x32xbf16>
    %cst_42 = arith.constant dense<0.000000e+00> : vector<64x32xf32>
    %131 = tpu.matmul %129, %130, %cst_42 {dimension_numbers = #tpu.dot_dimension_numbers<[1], [0], [0], [1], [0, 0, 1, 1], [], []>} : vector<64x64xbf16>, vector<64x32xbf16>, vector<64x32xf32> -> vector<64x32xf32>
    %132 = arith.truncf %131 : vector<64x32xf32> to vector<64x32xbf16>
    %133 = vector.extract_strided_slice %46 {offsets = [96, 0], sizes = [32, 128], strides = [1, 1]} : vector<128x128xbf16> to vector<32x128xbf16>
    %cst_43 = arith.constant dense<0.000000e+00> : vector<64x128xf32>
    %134 = tpu.matmul %132, %133, %cst_43 {dimension_numbers = #tpu.dot_dimension_numbers<[1], [0], [0], [1], [0, 0, 1, 1], [], []>} : vector<64x32xbf16>, vector<32x128xbf16>, vector<64x128xf32> -> vector<64x128xf32>
    %135 = arith.addf %113, %134 : vector<64x128xf32>
    %136 = arith.addf %1, %135 : vector<64x128xf32>
    %c0_44 = arith.constant 0 : index
    %c0_45 = arith.constant 0 : index
    %137 = vector.load %arg7[%c0_44, %c0_45] : memref<2x128xf32, #tpu.memory_space<vmem>>, vector<1x128xf32>
    %138 = vector.shape_cast %137 : vector<1x128xf32> to vector<128xf32>
    %139 = vector.shape_cast %138 : vector<128xf32> to vector<1x128xf32>
    %140 = vector.broadcast %139 : vector<1x128xf32> to vector<64x128xf32>
    %141 = arith.addf %136, %140 : vector<64x128xf32>
    %c0_46 = arith.constant 0 : index
    %c0_47 = arith.constant 0 : index
    %142 = vector.load %arg8[%c0_46, %c0_47] : memref<2x128xf32, #tpu.memory_space<vmem>>, vector<1x128xf32>
    %143 = vector.shape_cast %142 : vector<1x128xf32> to vector<128xf32>
    %c0_48 = arith.constant 0 : index
    %c0_49 = arith.constant 0 : index
    %144 = vector.load %arg9[%c0_48, %c0_49] : memref<2x128xf32, #tpu.memory_space<vmem>>, vector<1x128xf32>
    %145 = vector.shape_cast %144 : vector<1x128xf32> to vector<128xf32>
    %cst_50 = arith.constant dense<0.000000e+00> : vector<64xf32>
    %146 = vector.multi_reduction <add>, %141, %cst_50 [1] : vector<64x128xf32> to vector<64xf32>
    %147 = vector.shape_cast %146 : vector<64xf32> to vector<64x1xf32>
    %cst_51 = arith.constant 1.280000e+02 : f32
    %148 = vector.broadcast %cst_51 : f32 to vector<64x1xf32>
    %149 = arith.divf %147, %148 : vector<64x1xf32>
    %150 = vector.broadcast %149 : vector<64x1xf32> to vector<64x128xf32>
    %151 = arith.subf %141, %150 : vector<64x128xf32>
    %152 = arith.mulf %151, %151 : vector<64x128xf32>
    %cst_52 = arith.constant dense<0.000000e+00> : vector<64xf32>
    %153 = vector.multi_reduction <add>, %152, %cst_52 [1] : vector<64x128xf32> to vector<64xf32>
    %154 = vector.shape_cast %153 : vector<64xf32> to vector<64x1xf32>
    %cst_53 = arith.constant 1.280000e+02 : f32
    %155 = vector.broadcast %cst_53 : f32 to vector<64x1xf32>
    %156 = arith.divf %154, %155 : vector<64x1xf32>
    %157 = vector.broadcast %149 : vector<64x1xf32> to vector<64x128xf32>
    %158 = arith.subf %141, %157 : vector<64x128xf32>
    %cst_54 = arith.constant 9.99999974E-6 : f32
    %159 = vector.broadcast %cst_54 : f32 to vector<64x1xf32>
    %160 = arith.addf %156, %159 : vector<64x1xf32>
    %161 = math.rsqrt %160 : vector<64x1xf32>
    %162 = vector.broadcast %161 : vector<64x1xf32> to vector<64x128xf32>
    %163 = arith.mulf %158, %162 : vector<64x128xf32>
    %164 = vector.shape_cast %143 : vector<128xf32> to vector<1x128xf32>
    %165 = vector.broadcast %164 : vector<1x128xf32> to vector<64x128xf32>
    %166 = arith.mulf %163, %165 : vector<64x128xf32>
    %167 = vector.shape_cast %145 : vector<128xf32> to vector<1x128xf32>
    %168 = vector.broadcast %167 : vector<1x128xf32> to vector<64x128xf32>
    %169 = arith.addf %166, %168 : vector<64x128xf32>
    %170 = arith.truncf %169 : vector<64x128xf32> to vector<64x128xbf16>
    %c0_55 = arith.constant 0 : index
    %c0_56 = arith.constant 0 : index
    %c0_57 = arith.constant 0 : index
    %171 = vector.load %arg10[%c0_55, %c0_56, %c0_57] : memref<2x128x256xbf16, #tpu.memory_space<vmem>>, vector<1x128x256xbf16>
    %172 = vector.shape_cast %171 : vector<1x128x256xbf16> to vector<128x256xbf16>
    %cst_58 = arith.constant dense<0.000000e+00> : vector<64x256xf32>
    %173 = tpu.matmul %170, %172, %cst_58 {dimension_numbers = #tpu.dot_dimension_numbers<[1], [0], [0], [1], [0, 0, 1, 1], [], []>} : vector<64x128xbf16>, vector<128x256xbf16>, vector<64x256xf32> -> vector<64x256xf32>
    %c0_59 = arith.constant 0 : index
    %c0_60 = arith.constant 0 : index
    %174 = vector.load %arg11[%c0_59, %c0_60] : memref<2x256xf32, #tpu.memory_space<vmem>>, vector<1x256xf32>
    %175 = vector.shape_cast %174 : vector<1x256xf32> to vector<256xf32>
    %176 = vector.shape_cast %175 : vector<256xf32> to vector<1x256xf32>
    %177 = vector.broadcast %176 : vector<1x256xf32> to vector<64x256xf32>
    %178 = arith.addf %173, %177 : vector<64x256xf32>
    %cst_61 = arith.constant 5.000000e-01 : f32
    %179 = vector.broadcast %cst_61 : f32 to vector<64x256xf32>
    %180 = arith.mulf %179, %178 : vector<64x256xf32>
    %cst_62 = arith.constant 4.471500e-02 : f32
    %181 = vector.broadcast %cst_62 : f32 to vector<64x256xf32>
    %182 = arith.mulf %181, %178 : vector<64x256xf32>
    %183 = arith.mulf %182, %178 : vector<64x256xf32>
    %184 = arith.mulf %183, %178 : vector<64x256xf32>
    %185 = arith.addf %178, %184 : vector<64x256xf32>
    %cst_63 = arith.constant 0.797884583 : f32
    %186 = vector.broadcast %cst_63 : f32 to vector<64x256xf32>
    %187 = arith.mulf %186, %185 : vector<64x256xf32>
    %188 = math.tanh %187 : vector<64x256xf32>
    %cst_64 = arith.constant 1.000000e+00 : f32
    %189 = vector.broadcast %cst_64 : f32 to vector<64x256xf32>
    %190 = arith.addf %189, %188 : vector<64x256xf32>
    %191 = arith.mulf %180, %190 : vector<64x256xf32>
    %192 = arith.truncf %191 : vector<64x256xf32> to vector<64x256xbf16>
    %c0_65 = arith.constant 0 : index
    %c0_66 = arith.constant 0 : index
    %c0_67 = arith.constant 0 : index
    %193 = vector.load %arg12[%c0_65, %c0_66, %c0_67] : memref<2x256x128xbf16, #tpu.memory_space<vmem>>, vector<1x256x128xbf16>
    %194 = vector.shape_cast %193 : vector<1x256x128xbf16> to vector<256x128xbf16>
    %cst_68 = arith.constant dense<0.000000e+00> : vector<64x128xf32>
    %195 = tpu.matmul %192, %194, %cst_68 {dimension_numbers = #tpu.dot_dimension_numbers<[1], [0], [0], [1], [0, 0, 1, 1], [], []>} : vector<64x256xbf16>, vector<256x128xbf16>, vector<64x128xf32> -> vector<64x128xf32>
    %c0_69 = arith.constant 0 : index
    %c0_70 = arith.constant 0 : index
    %196 = vector.load %arg13[%c0_69, %c0_70] : memref<2x128xf32, #tpu.memory_space<vmem>>, vector<1x128xf32>
    %197 = vector.shape_cast %196 : vector<1x128xf32> to vector<128xf32>
    %198 = vector.shape_cast %197 : vector<128xf32> to vector<1x128xf32>
    %199 = vector.broadcast %198 : vector<1x128xf32> to vector<64x128xf32>
    %200 = arith.addf %195, %199 : vector<64x128xf32>
    %201 = arith.addf %141, %200 : vector<64x128xf32>
    %c1 = arith.constant 1 : index
    %c0_71 = arith.constant 0 : index
    %202 = vector.load %arg2[%c1, %c0_71] : memref<2x128xf32, #tpu.memory_space<vmem>>, vector<1x128xf32>
    %203 = vector.shape_cast %202 : vector<1x128xf32> to vector<128xf32>
    %c1_72 = arith.constant 1 : index
    %c0_73 = arith.constant 0 : index
    %204 = vector.load %arg3[%c1_72, %c0_73] : memref<2x128xf32, #tpu.memory_space<vmem>>, vector<1x128xf32>
    %205 = vector.shape_cast %204 : vector<1x128xf32> to vector<128xf32>
    %cst_74 = arith.constant dense<0.000000e+00> : vector<64xf32>
    %206 = vector.multi_reduction <add>, %201, %cst_74 [1] : vector<64x128xf32> to vector<64xf32>
    %207 = vector.shape_cast %206 : vector<64xf32> to vector<64x1xf32>
    %cst_75 = arith.constant 1.280000e+02 : f32
    %208 = vector.broadcast %cst_75 : f32 to vector<64x1xf32>
    %209 = arith.divf %207, %208 : vector<64x1xf32>
    %210 = vector.broadcast %209 : vector<64x1xf32> to vector<64x128xf32>
    %211 = arith.subf %201, %210 : vector<64x128xf32>
    %212 = arith.mulf %211, %211 : vector<64x128xf32>
    %cst_76 = arith.constant dense<0.000000e+00> : vector<64xf32>
    %213 = vector.multi_reduction <add>, %212, %cst_76 [1] : vector<64x128xf32> to vector<64xf32>
    %214 = vector.shape_cast %213 : vector<64xf32> to vector<64x1xf32>
    %cst_77 = arith.constant 1.280000e+02 : f32
    %215 = vector.broadcast %cst_77 : f32 to vector<64x1xf32>
    %216 = arith.divf %214, %215 : vector<64x1xf32>
    %217 = vector.broadcast %209 : vector<64x1xf32> to vector<64x128xf32>
    %218 = arith.subf %201, %217 : vector<64x128xf32>
    %cst_78 = arith.constant 9.99999974E-6 : f32
    %219 = vector.broadcast %cst_78 : f32 to vector<64x1xf32>
    %220 = arith.addf %216, %219 : vector<64x1xf32>
    %221 = math.rsqrt %220 : vector<64x1xf32>
    %222 = vector.broadcast %221 : vector<64x1xf32> to vector<64x128xf32>
    %223 = arith.mulf %218, %222 : vector<64x128xf32>
    %224 = vector.shape_cast %203 : vector<128xf32> to vector<1x128xf32>
    %225 = vector.broadcast %224 : vector<1x128xf32> to vector<64x128xf32>
    %226 = arith.mulf %223, %225 : vector<64x128xf32>
    %227 = vector.shape_cast %205 : vector<128xf32> to vector<1x128xf32>
    %228 = vector.broadcast %227 : vector<1x128xf32> to vector<64x128xf32>
    %229 = arith.addf %226, %228 : vector<64x128xf32>
    %230 = arith.truncf %229 : vector<64x128xf32> to vector<64x128xbf16>
    %c1_79 = arith.constant 1 : index
    %c0_80 = arith.constant 0 : index
    %c0_81 = arith.constant 0 : index
    %231 = vector.load %arg4[%c1_79, %c0_80, %c0_81] : memref<2x128x384xbf16, #tpu.memory_space<vmem>>, vector<1x128x384xbf16>
    %232 = vector.shape_cast %231 : vector<1x128x384xbf16> to vector<128x384xbf16>
    %cst_82 = arith.constant dense<0.000000e+00> : vector<64x384xf32>
    %233 = tpu.matmul %230, %232, %cst_82 {dimension_numbers = #tpu.dot_dimension_numbers<[1], [0], [0], [1], [0, 0, 1, 1], [], []>} : vector<64x128xbf16>, vector<128x384xbf16>, vector<64x384xf32> -> vector<64x384xf32>
    %c1_83 = arith.constant 1 : index
    %c0_84 = arith.constant 0 : index
    %234 = vector.load %arg5[%c1_83, %c0_84] : memref<2x384xf32, #tpu.memory_space<vmem>>, vector<1x384xf32>
    %235 = vector.shape_cast %234 : vector<1x384xf32> to vector<384xf32>
    %236 = vector.shape_cast %235 : vector<384xf32> to vector<1x384xf32>
    %237 = vector.broadcast %236 : vector<1x384xf32> to vector<64x384xf32>
    %238 = arith.addf %233, %237 : vector<64x384xf32>
    %239 = vector.extract_strided_slice %238 {offsets = [0, 0], sizes = [64, 128], strides = [1, 1]} : vector<64x384xf32> to vector<64x128xf32>
    %240 = arith.truncf %239 : vector<64x128xf32> to vector<64x128xbf16>
    %241 = vector.extract_strided_slice %238 {offsets = [0, 128], sizes = [64, 128], strides = [1, 1]} : vector<64x384xf32> to vector<64x128xf32>
    %242 = arith.truncf %241 : vector<64x128xf32> to vector<64x128xbf16>
    %243 = vector.extract_strided_slice %238 {offsets = [0, 256], sizes = [64, 128], strides = [1, 1]} : vector<64x384xf32> to vector<64x128xf32>
    %244 = arith.truncf %243 : vector<64x128xf32> to vector<64x128xbf16>
    %c1_85 = arith.constant 1 : index
    %c0_86 = arith.constant 0 : index
    %c0_87 = arith.constant 0 : index
    %245 = vector.load %arg6[%c1_85, %c0_86, %c0_87] : memref<2x128x128xbf16, #tpu.memory_space<vmem>>, vector<1x128x128xbf16>
    %246 = vector.shape_cast %245 : vector<1x128x128xbf16> to vector<128x128xbf16>
    %cst_88 = arith.constant 0.000000e+00 : f32
    %247 = vector.broadcast %cst_88 : f32 to vector<64x128xf32>
    %248 = vector.extract_strided_slice %240 {offsets = [0, 0], sizes = [64, 32], strides = [1, 1]} : vector<64x128xbf16> to vector<64x32xbf16>
    %249 = vector.extract_strided_slice %242 {offsets = [0, 0], sizes = [64, 32], strides = [1, 1]} : vector<64x128xbf16> to vector<64x32xbf16>
    %cst_89 = arith.constant dense<0.000000e+00> : vector<64x64xf32>
    %250 = tpu.matmul %248, %249, %cst_89 {dimension_numbers = #tpu.dot_dimension_numbers<[1], [1], [0], [0], [0, 0, 1, 0], [], []>} : vector<64x32xbf16>, vector<64x32xbf16>, vector<64x64xf32> -> vector<64x64xf32>
    %cst_90 = arith.constant 0.176776692 : f32
    %251 = vector.broadcast %cst_90 : f32 to vector<64x64xf32>
    %252 = arith.mulf %250, %251 : vector<64x64xf32>
    %cst_91 = arith.constant dense<0xFF800000> : vector<64xf32>
    %253 = vector.multi_reduction <maximumf>, %252, %cst_91 [1] : vector<64x64xf32> to vector<64xf32>
    %254 = vector.shape_cast %253 : vector<64xf32> to vector<64x1xf32>
    %255 = vector.broadcast %254 : vector<64x1xf32> to vector<64x64xf32>
    %256 = arith.subf %252, %255 : vector<64x64xf32>
    %257 = math.exp %256 : vector<64x64xf32>
    %cst_92 = arith.constant dense<0.000000e+00> : vector<64xf32>
    %258 = vector.multi_reduction <add>, %257, %cst_92 [1] : vector<64x64xf32> to vector<64xf32>
    %259 = vector.shape_cast %258 : vector<64xf32> to vector<64x1xf32>
    %260 = tpu.reciprocal %259 {approx = true} : vector<64x1xf32> -> vector<64x1xf32>
    %261 = vector.broadcast %260 : vector<64x1xf32> to vector<64x64xf32>
    %262 = arith.mulf %257, %261 : vector<64x64xf32>
    %263 = arith.truncf %262 : vector<64x64xf32> to vector<64x64xbf16>
    %264 = vector.extract_strided_slice %244 {offsets = [0, 0], sizes = [64, 32], strides = [1, 1]} : vector<64x128xbf16> to vector<64x32xbf16>
    %cst_93 = arith.constant dense<0.000000e+00> : vector<64x32xf32>
    %265 = tpu.matmul %263, %264, %cst_93 {dimension_numbers = #tpu.dot_dimension_numbers<[1], [0], [0], [1], [0, 0, 1, 1], [], []>} : vector<64x64xbf16>, vector<64x32xbf16>, vector<64x32xf32> -> vector<64x32xf32>
    %266 = arith.truncf %265 : vector<64x32xf32> to vector<64x32xbf16>
    %267 = vector.extract_strided_slice %246 {offsets = [0, 0], sizes = [32, 128], strides = [1, 1]} : vector<128x128xbf16> to vector<32x128xbf16>
    %cst_94 = arith.constant dense<0.000000e+00> : vector<64x128xf32>
    %268 = tpu.matmul %266, %267, %cst_94 {dimension_numbers = #tpu.dot_dimension_numbers<[1], [0], [0], [1], [0, 0, 1, 1], [], []>} : vector<64x32xbf16>, vector<32x128xbf16>, vector<64x128xf32> -> vector<64x128xf32>
    %269 = arith.addf %247, %268 : vector<64x128xf32>
    %270 = vector.extract_strided_slice %240 {offsets = [0, 32], sizes = [64, 32], strides = [1, 1]} : vector<64x128xbf16> to vector<64x32xbf16>
    %271 = vector.extract_strided_slice %242 {offsets = [0, 32], sizes = [64, 32], strides = [1, 1]} : vector<64x128xbf16> to vector<64x32xbf16>
    %cst_95 = arith.constant dense<0.000000e+00> : vector<64x64xf32>
    %272 = tpu.matmul %270, %271, %cst_95 {dimension_numbers = #tpu.dot_dimension_numbers<[1], [1], [0], [0], [0, 0, 1, 0], [], []>} : vector<64x32xbf16>, vector<64x32xbf16>, vector<64x64xf32> -> vector<64x64xf32>
    %cst_96 = arith.constant 0.176776692 : f32
    %273 = vector.broadcast %cst_96 : f32 to vector<64x64xf32>
    %274 = arith.mulf %272, %273 : vector<64x64xf32>
    %cst_97 = arith.constant dense<0xFF800000> : vector<64xf32>
    %275 = vector.multi_reduction <maximumf>, %274, %cst_97 [1] : vector<64x64xf32> to vector<64xf32>
    %276 = vector.shape_cast %275 : vector<64xf32> to vector<64x1xf32>
    %277 = vector.broadcast %276 : vector<64x1xf32> to vector<64x64xf32>
    %278 = arith.subf %274, %277 : vector<64x64xf32>
    %279 = math.exp %278 : vector<64x64xf32>
    %cst_98 = arith.constant dense<0.000000e+00> : vector<64xf32>
    %280 = vector.multi_reduction <add>, %279, %cst_98 [1] : vector<64x64xf32> to vector<64xf32>
    %281 = vector.shape_cast %280 : vector<64xf32> to vector<64x1xf32>
    %282 = tpu.reciprocal %281 {approx = true} : vector<64x1xf32> -> vector<64x1xf32>
    %283 = vector.broadcast %282 : vector<64x1xf32> to vector<64x64xf32>
    %284 = arith.mulf %279, %283 : vector<64x64xf32>
    %285 = arith.truncf %284 : vector<64x64xf32> to vector<64x64xbf16>
    %286 = vector.extract_strided_slice %244 {offsets = [0, 32], sizes = [64, 32], strides = [1, 1]} : vector<64x128xbf16> to vector<64x32xbf16>
    %cst_99 = arith.constant dense<0.000000e+00> : vector<64x32xf32>
    %287 = tpu.matmul %285, %286, %cst_99 {dimension_numbers = #tpu.dot_dimension_numbers<[1], [0], [0], [1], [0, 0, 1, 1], [], []>} : vector<64x64xbf16>, vector<64x32xbf16>, vector<64x32xf32> -> vector<64x32xf32>
    %288 = arith.truncf %287 : vector<64x32xf32> to vector<64x32xbf16>
    %289 = vector.extract_strided_slice %246 {offsets = [32, 0], sizes = [32, 128], strides = [1, 1]} : vector<128x128xbf16> to vector<32x128xbf16>
    %cst_100 = arith.constant dense<0.000000e+00> : vector<64x128xf32>
    %290 = tpu.matmul %288, %289, %cst_100 {dimension_numbers = #tpu.dot_dimension_numbers<[1], [0], [0], [1], [0, 0, 1, 1], [], []>} : vector<64x32xbf16>, vector<32x128xbf16>, vector<64x128xf32> -> vector<64x128xf32>
    %291 = arith.addf %269, %290 : vector<64x128xf32>
    %292 = vector.extract_strided_slice %240 {offsets = [0, 64], sizes = [64, 32], strides = [1, 1]} : vector<64x128xbf16> to vector<64x32xbf16>
    %293 = vector.extract_strided_slice %242 {offsets = [0, 64], sizes = [64, 32], strides = [1, 1]} : vector<64x128xbf16> to vector<64x32xbf16>
    %cst_101 = arith.constant dense<0.000000e+00> : vector<64x64xf32>
    %294 = tpu.matmul %292, %293, %cst_101 {dimension_numbers = #tpu.dot_dimension_numbers<[1], [1], [0], [0], [0, 0, 1, 0], [], []>} : vector<64x32xbf16>, vector<64x32xbf16>, vector<64x64xf32> -> vector<64x64xf32>
    %cst_102 = arith.constant 0.176776692 : f32
    %295 = vector.broadcast %cst_102 : f32 to vector<64x64xf32>
    %296 = arith.mulf %294, %295 : vector<64x64xf32>
    %cst_103 = arith.constant dense<0xFF800000> : vector<64xf32>
    %297 = vector.multi_reduction <maximumf>, %296, %cst_103 [1] : vector<64x64xf32> to vector<64xf32>
    %298 = vector.shape_cast %297 : vector<64xf32> to vector<64x1xf32>
    %299 = vector.broadcast %298 : vector<64x1xf32> to vector<64x64xf32>
    %300 = arith.subf %296, %299 : vector<64x64xf32>
    %301 = math.exp %300 : vector<64x64xf32>
    %cst_104 = arith.constant dense<0.000000e+00> : vector<64xf32>
    %302 = vector.multi_reduction <add>, %301, %cst_104 [1] : vector<64x64xf32> to vector<64xf32>
    %303 = vector.shape_cast %302 : vector<64xf32> to vector<64x1xf32>
    %304 = tpu.reciprocal %303 {approx = true} : vector<64x1xf32> -> vector<64x1xf32>
    %305 = vector.broadcast %304 : vector<64x1xf32> to vector<64x64xf32>
    %306 = arith.mulf %301, %305 : vector<64x64xf32>
    %307 = arith.truncf %306 : vector<64x64xf32> to vector<64x64xbf16>
    %308 = vector.extract_strided_slice %244 {offsets = [0, 64], sizes = [64, 32], strides = [1, 1]} : vector<64x128xbf16> to vector<64x32xbf16>
    %cst_105 = arith.constant dense<0.000000e+00> : vector<64x32xf32>
    %309 = tpu.matmul %307, %308, %cst_105 {dimension_numbers = #tpu.dot_dimension_numbers<[1], [0], [0], [1], [0, 0, 1, 1], [], []>} : vector<64x64xbf16>, vector<64x32xbf16>, vector<64x32xf32> -> vector<64x32xf32>
    %310 = arith.truncf %309 : vector<64x32xf32> to vector<64x32xbf16>
    %311 = vector.extract_strided_slice %246 {offsets = [64, 0], sizes = [32, 128], strides = [1, 1]} : vector<128x128xbf16> to vector<32x128xbf16>
    %cst_106 = arith.constant dense<0.000000e+00> : vector<64x128xf32>
    %312 = tpu.matmul %310, %311, %cst_106 {dimension_numbers = #tpu.dot_dimension_numbers<[1], [0], [0], [1], [0, 0, 1, 1], [], []>} : vector<64x32xbf16>, vector<32x128xbf16>, vector<64x128xf32> -> vector<64x128xf32>
    %313 = arith.addf %291, %312 : vector<64x128xf32>
    %314 = vector.extract_strided_slice %240 {offsets = [0, 96], sizes = [64, 32], strides = [1, 1]} : vector<64x128xbf16> to vector<64x32xbf16>
    %315 = vector.extract_strided_slice %242 {offsets = [0, 96], sizes = [64, 32], strides = [1, 1]} : vector<64x128xbf16> to vector<64x32xbf16>
    %cst_107 = arith.constant dense<0.000000e+00> : vector<64x64xf32>
    %316 = tpu.matmul %314, %315, %cst_107 {dimension_numbers = #tpu.dot_dimension_numbers<[1], [1], [0], [0], [0, 0, 1, 0], [], []>} : vector<64x32xbf16>, vector<64x32xbf16>, vector<64x64xf32> -> vector<64x64xf32>
    %cst_108 = arith.constant 0.176776692 : f32
    %317 = vector.broadcast %cst_108 : f32 to vector<64x64xf32>
    %318 = arith.mulf %316, %317 : vector<64x64xf32>
    %cst_109 = arith.constant dense<0xFF800000> : vector<64xf32>
    %319 = vector.multi_reduction <maximumf>, %318, %cst_109 [1] : vector<64x64xf32> to vector<64xf32>
    %320 = vector.shape_cast %319 : vector<64xf32> to vector<64x1xf32>
    %321 = vector.broadcast %320 : vector<64x1xf32> to vector<64x64xf32>
    %322 = arith.subf %318, %321 : vector<64x64xf32>
    %323 = math.exp %322 : vector<64x64xf32>
    %cst_110 = arith.constant dense<0.000000e+00> : vector<64xf32>
    %324 = vector.multi_reduction <add>, %323, %cst_110 [1] : vector<64x64xf32> to vector<64xf32>
    %325 = vector.shape_cast %324 : vector<64xf32> to vector<64x1xf32>
    %326 = tpu.reciprocal %325 {approx = true} : vector<64x1xf32> -> vector<64x1xf32>
    %327 = vector.broadcast %326 : vector<64x1xf32> to vector<64x64xf32>
    %328 = arith.mulf %323, %327 : vector<64x64xf32>
    %329 = arith.truncf %328 : vector<64x64xf32> to vector<64x64xbf16>
    %330 = vector.extract_strided_slice %244 {offsets = [0, 96], sizes = [64, 32], strides = [1, 1]} : vector<64x128xbf16> to vector<64x32xbf16>
    %cst_111 = arith.constant dense<0.000000e+00> : vector<64x32xf32>
    %331 = tpu.matmul %329, %330, %cst_111 {dimension_numbers = #tpu.dot_dimension_numbers<[1], [0], [0], [1], [0, 0, 1, 1], [], []>} : vector<64x64xbf16>, vector<64x32xbf16>, vector<64x32xf32> -> vector<64x32xf32>
    %332 = arith.truncf %331 : vector<64x32xf32> to vector<64x32xbf16>
    %333 = vector.extract_strided_slice %246 {offsets = [96, 0], sizes = [32, 128], strides = [1, 1]} : vector<128x128xbf16> to vector<32x128xbf16>
    %cst_112 = arith.constant dense<0.000000e+00> : vector<64x128xf32>
    %334 = tpu.matmul %332, %333, %cst_112 {dimension_numbers = #tpu.dot_dimension_numbers<[1], [0], [0], [1], [0, 0, 1, 1], [], []>} : vector<64x32xbf16>, vector<32x128xbf16>, vector<64x128xf32> -> vector<64x128xf32>
    %335 = arith.addf %313, %334 : vector<64x128xf32>
    %336 = arith.addf %201, %335 : vector<64x128xf32>
    %c1_113 = arith.constant 1 : index
    %c0_114 = arith.constant 0 : index
    %337 = vector.load %arg7[%c1_113, %c0_114] : memref<2x128xf32, #tpu.memory_space<vmem>>, vector<1x128xf32>
    %338 = vector.shape_cast %337 : vector<1x128xf32> to vector<128xf32>
    %339 = vector.shape_cast %338 : vector<128xf32> to vector<1x128xf32>
    %340 = vector.broadcast %339 : vector<1x128xf32> to vector<64x128xf32>
    %341 = arith.addf %336, %340 : vector<64x128xf32>
    %c1_115 = arith.constant 1 : index
    %c0_116 = arith.constant 0 : index
    %342 = vector.load %arg8[%c1_115, %c0_116] : memref<2x128xf32, #tpu.memory_space<vmem>>, vector<1x128xf32>
    %343 = vector.shape_cast %342 : vector<1x128xf32> to vector<128xf32>
    %c1_117 = arith.constant 1 : index
    %c0_118 = arith.constant 0 : index
    %344 = vector.load %arg9[%c1_117, %c0_118] : memref<2x128xf32, #tpu.memory_space<vmem>>, vector<1x128xf32>
    %345 = vector.shape_cast %344 : vector<1x128xf32> to vector<128xf32>
    %cst_119 = arith.constant dense<0.000000e+00> : vector<64xf32>
    %346 = vector.multi_reduction <add>, %341, %cst_119 [1] : vector<64x128xf32> to vector<64xf32>
    %347 = vector.shape_cast %346 : vector<64xf32> to vector<64x1xf32>
    %cst_120 = arith.constant 1.280000e+02 : f32
    %348 = vector.broadcast %cst_120 : f32 to vector<64x1xf32>
    %349 = arith.divf %347, %348 : vector<64x1xf32>
    %350 = vector.broadcast %349 : vector<64x1xf32> to vector<64x128xf32>
    %351 = arith.subf %341, %350 : vector<64x128xf32>
    %352 = arith.mulf %351, %351 : vector<64x128xf32>
    %cst_121 = arith.constant dense<0.000000e+00> : vector<64xf32>
    %353 = vector.multi_reduction <add>, %352, %cst_121 [1] : vector<64x128xf32> to vector<64xf32>
    %354 = vector.shape_cast %353 : vector<64xf32> to vector<64x1xf32>
    %cst_122 = arith.constant 1.280000e+02 : f32
    %355 = vector.broadcast %cst_122 : f32 to vector<64x1xf32>
    %356 = arith.divf %354, %355 : vector<64x1xf32>
    %357 = vector.broadcast %349 : vector<64x1xf32> to vector<64x128xf32>
    %358 = arith.subf %341, %357 : vector<64x128xf32>
    %cst_123 = arith.constant 9.99999974E-6 : f32
    %359 = vector.broadcast %cst_123 : f32 to vector<64x1xf32>
    %360 = arith.addf %356, %359 : vector<64x1xf32>
    %361 = math.rsqrt %360 : vector<64x1xf32>
    %362 = vector.broadcast %361 : vector<64x1xf32> to vector<64x128xf32>
    %363 = arith.mulf %358, %362 : vector<64x128xf32>
    %364 = vector.shape_cast %343 : vector<128xf32> to vector<1x128xf32>
    %365 = vector.broadcast %364 : vector<1x128xf32> to vector<64x128xf32>
    %366 = arith.mulf %363, %365 : vector<64x128xf32>
    %367 = vector.shape_cast %345 : vector<128xf32> to vector<1x128xf32>
    %368 = vector.broadcast %367 : vector<1x128xf32> to vector<64x128xf32>
    %369 = arith.addf %366, %368 : vector<64x128xf32>
    %370 = arith.truncf %369 : vector<64x128xf32> to vector<64x128xbf16>
    %c1_124 = arith.constant 1 : index
    %c0_125 = arith.constant 0 : index
    %c0_126 = arith.constant 0 : index
    %371 = vector.load %arg10[%c1_124, %c0_125, %c0_126] : memref<2x128x256xbf16, #tpu.memory_space<vmem>>, vector<1x128x256xbf16>
    %372 = vector.shape_cast %371 : vector<1x128x256xbf16> to vector<128x256xbf16>
    %cst_127 = arith.constant dense<0.000000e+00> : vector<64x256xf32>
    %373 = tpu.matmul %370, %372, %cst_127 {dimension_numbers = #tpu.dot_dimension_numbers<[1], [0], [0], [1], [0, 0, 1, 1], [], []>} : vector<64x128xbf16>, vector<128x256xbf16>, vector<64x256xf32> -> vector<64x256xf32>
    %c1_128 = arith.constant 1 : index
    %c0_129 = arith.constant 0 : index
    %374 = vector.load %arg11[%c1_128, %c0_129] : memref<2x256xf32, #tpu.memory_space<vmem>>, vector<1x256xf32>
    %375 = vector.shape_cast %374 : vector<1x256xf32> to vector<256xf32>
    %376 = vector.shape_cast %375 : vector<256xf32> to vector<1x256xf32>
    %377 = vector.broadcast %376 : vector<1x256xf32> to vector<64x256xf32>
    %378 = arith.addf %373, %377 : vector<64x256xf32>
    %cst_130 = arith.constant 5.000000e-01 : f32
    %379 = vector.broadcast %cst_130 : f32 to vector<64x256xf32>
    %380 = arith.mulf %379, %378 : vector<64x256xf32>
    %cst_131 = arith.constant 4.471500e-02 : f32
    %381 = vector.broadcast %cst_131 : f32 to vector<64x256xf32>
    %382 = arith.mulf %381, %378 : vector<64x256xf32>
    %383 = arith.mulf %382, %378 : vector<64x256xf32>
    %384 = arith.mulf %383, %378 : vector<64x256xf32>
    %385 = arith.addf %378, %384 : vector<64x256xf32>
    %cst_132 = arith.constant 0.797884583 : f32
    %386 = vector.broadcast %cst_132 : f32 to vector<64x256xf32>
    %387 = arith.mulf %386, %385 : vector<64x256xf32>
    %388 = math.tanh %387 : vector<64x256xf32>
    %cst_133 = arith.constant 1.000000e+00 : f32
    %389 = vector.broadcast %cst_133 : f32 to vector<64x256xf32>
    %390 = arith.addf %389, %388 : vector<64x256xf32>
    %391 = arith.mulf %380, %390 : vector<64x256xf32>
    %392 = arith.truncf %391 : vector<64x256xf32> to vector<64x256xbf16>
    %c1_134 = arith.constant 1 : index
    %c0_135 = arith.constant 0 : index
    %c0_136 = arith.constant 0 : index
    %393 = vector.load %arg12[%c1_134, %c0_135, %c0_136] : memref<2x256x128xbf16, #tpu.memory_space<vmem>>, vector<1x256x128xbf16>
    %394 = vector.shape_cast %393 : vector<1x256x128xbf16> to vector<256x128xbf16>
    %cst_137 = arith.constant dense<0.000000e+00> : vector<64x128xf32>
    %395 = tpu.matmul %392, %394, %cst_137 {dimension_numbers = #tpu.dot_dimension_numbers<[1], [0], [0], [1], [0, 0, 1, 1], [], []>} : vector<64x256xbf16>, vector<256x128xbf16>, vector<64x128xf32> -> vector<64x128xf32>
    %c1_138 = arith.constant 1 : index
    %c0_139 = arith.constant 0 : index
    %396 = vector.load %arg13[%c1_138, %c0_139] : memref<2x128xf32, #tpu.memory_space<vmem>>, vector<1x128xf32>
    %397 = vector.shape_cast %396 : vector<1x128xf32> to vector<128xf32>
    %398 = vector.shape_cast %397 : vector<128xf32> to vector<1x128xf32>
    %399 = vector.broadcast %398 : vector<1x128xf32> to vector<64x128xf32>
    %400 = arith.addf %395, %399 : vector<64x128xf32>
    %401 = arith.addf %341, %400 : vector<64x128xf32>
    %402 = arith.truncf %401 : vector<64x128xf32> to vector<64x128xbf16>
    %c0_140 = arith.constant 0 : index
    %c0_141 = arith.constant 0 : index
    %403 = vector.load %arg14[%c0_140, %c0_141] : memref<128x128xbf16, #tpu.memory_space<vmem>>, vector<128x128xbf16>
    %cst_142 = arith.constant dense<0.000000e+00> : vector<64x128xf32>
    %404 = tpu.matmul %402, %403, %cst_142 {dimension_numbers = #tpu.dot_dimension_numbers<[1], [0], [0], [1], [0, 0, 1, 1], [], []>} : vector<64x128xbf16>, vector<128x128xbf16>, vector<64x128xf32> -> vector<64x128xf32>
    %c0_143 = arith.constant 0 : index
    %c0_144 = arith.constant 0 : index
    %405 = vector.load %arg15[%c0_143, %c0_144] : memref<1x128xf32, #tpu.memory_space<vmem>>, vector<1x128xf32>
    %406 = vector.broadcast %405 : vector<1x128xf32> to vector<64x128xf32>
    %407 = arith.addf %404, %406 : vector<64x128xf32>
    %408 = math.tanh %407 : vector<64x128xf32>
    %409 = arith.truncf %408 : vector<64x128xf32> to vector<64x128xbf16>
    %c0_145 = arith.constant 0 : index
    %c0_146 = arith.constant 0 : index
    %410 = vector.load %arg16[%c0_145, %c0_146] : memref<128x256xbf16, #tpu.memory_space<vmem>>, vector<128x256xbf16>
    %cst_147 = arith.constant dense<0.000000e+00> : vector<64x256xf32>
    %411 = tpu.matmul %409, %410, %cst_147 {dimension_numbers = #tpu.dot_dimension_numbers<[1], [0], [0], [1], [0, 0, 1, 1], [], []>} : vector<64x128xbf16>, vector<128x256xbf16>, vector<64x256xf32> -> vector<64x256xf32>
    %c0_148 = arith.constant 0 : index
    %c0_149 = arith.constant 0 : index
    %412 = vector.load %arg17[%c0_148, %c0_149] : memref<1x256xf32, #tpu.memory_space<vmem>>, vector<1x256xf32>
    %413 = vector.broadcast %412 : vector<1x256xf32> to vector<64x256xf32>
    %414 = arith.addf %411, %413 : vector<64x256xf32>
    %c0_150 = arith.constant 0 : index
    %c0_151 = arith.constant 0 : index
    %c0_152 = arith.constant 0 : index
    %415 = vector.load %arg18[%c0_150, %c0_151, %c0_152] : memref<1x64x256xf32, #tpu.memory_space<vmem>>, vector<1x64x256xf32>
    %416 = vector.shape_cast %415 : vector<1x64x256xf32> to vector<64x256xf32>
    %417 = vector.shape_cast %414 : vector<64x256xf32> to vector<1x64x256xf32>
    tpu.vector_store %arg18[%c0_150, %c0_151, %c0_152], %417 {strides = array<i32>} : memref<1x64x256xf32, #tpu.memory_space<vmem>>, vector<1x64x256xf32>,
    return
  }
  func.func @transform_0(%arg0: i32) -> (i32, i32, i32) {
    %c0_i32 = arith.constant 0 : i32
    %c0_i32_0 = arith.constant 0 : i32
    %c0_i32_1 = arith.constant 0 : i32
    return %arg0, %c0_i32, %c0_i32_0 : i32, i32, i32
  }
  func.func @transform_1(%arg0: i32) -> (i32, i32) {
    %c0_i32 = arith.constant 0 : i32
    %c0_i32_0 = arith.constant 0 : i32
    %c0_i32_1 = arith.constant 0 : i32
    return %c0_i32, %c0_i32_0 : i32, i32
  }
  func.func @transform_2(%arg0: i32) -> (i32, i32) {
    %c0_i32 = arith.constant 0 : i32
    %c0_i32_0 = arith.constant 0 : i32
    %c0_i32_1 = arith.constant 0 : i32
    return %c0_i32, %c0_i32_0 : i32, i32
  }
  func.func @transform_3(%arg0: i32) -> (i32, i32, i32) {
    %c0_i32 = arith.constant 0 : i32
    %c0_i32_0 = arith.constant 0 : i32
    %c0_i32_1 = arith.constant 0 : i32
    %c0_i32_2 = arith.constant 0 : i32
    return %c0_i32, %c0_i32_0, %c0_i32_1 : i32, i32, i32
  }
  func.func @transform_4(%arg0: i32) -> (i32, i32) {
    %c0_i32 = arith.constant 0 : i32
    %c0_i32_0 = arith.constant 0 : i32
    %c0_i32_1 = arith.constant 0 : i32
    return %c0_i32, %c0_i32_0 : i32, i32
  }
  func.func @transform_5(%arg0: i32) -> (i32, i32, i32) {
    %c0_i32 = arith.constant 0 : i32
    %c0_i32_0 = arith.constant 0 : i32
    %c0_i32_1 = arith.constant 0 : i32
    %c0_i32_2 = arith.constant 0 : i32
    return %c0_i32, %c0_i32_0, %c0_i32_1 : i32, i32, i32
  }
  func.func @transform_6(%arg0: i32) -> (i32, i32) {
    %c0_i32 = arith.constant 0 : i32
    %c0_i32_0 = arith.constant 0 : i32
    %c0_i32_1 = arith.constant 0 : i32
    return %c0_i32, %c0_i32_0 : i32, i32
  }
  func.func @transform_7(%arg0: i32) -> (i32, i32) {
    %c0_i32 = arith.constant 0 : i32
    %c0_i32_0 = arith.constant 0 : i32
    %c0_i32_1 = arith.constant 0 : i32
    return %c0_i32, %c0_i32_0 : i32, i32
  }
  func.func @transform_8(%arg0: i32) -> (i32, i32) {
    %c0_i32 = arith.constant 0 : i32
    %c0_i32_0 = arith.constant 0 : i32
    %c0_i32_1 = arith.constant 0 : i32
    return %c0_i32, %c0_i32_0 : i32, i32
  }
  func.func @transform_9(%arg0: i32) -> (i32, i32, i32) {
    %c0_i32 = arith.constant 0 : i32
    %c0_i32_0 = arith.constant 0 : i32
    %c0_i32_1 = arith.constant 0 : i32
    %c0_i32_2 = arith.constant 0 : i32
    return %c0_i32, %c0_i32_0, %c0_i32_1 : i32, i32, i32
  }
  func.func @transform_10(%arg0: i32) -> (i32, i32) {
    %c0_i32 = arith.constant 0 : i32
    %c0_i32_0 = arith.constant 0 : i32
    %c0_i32_1 = arith.constant 0 : i32
    return %c0_i32, %c0_i32_0 : i32, i32
  }
  func.func @transform_11(%arg0: i32) -> (i32, i32, i32) {
    %c0_i32 = arith.constant 0 : i32
    %c0_i32_0 = arith.constant 0 : i32
    %c0_i32_1 = arith.constant 0 : i32
    %c0_i32_2 = arith.constant 0 : i32
    return %c0_i32, %c0_i32_0, %c0_i32_1 : i32, i32, i32
  }
  func.func @transform_12(%arg0: i32) -> (i32, i32) {
    %c0_i32 = arith.constant 0 : i32
    %c0_i32_0 = arith.constant 0 : i32
    %c0_i32_1 = arith.constant 0 : i32
    return %c0_i32, %c0_i32_0 : i32, i32
  }
  func.func @transform_13(%arg0: i32) -> (i32, i32) {
    %c0_i32 = arith.constant 0 : i32
    %c0_i32_0 = arith.constant 0 : i32
    %c0_i32_1 = arith.constant 0 : i32
    return %c0_i32, %c0_i32_0 : i32, i32
  }
  func.func @transform_14(%arg0: i32) -> (i32, i32) {
    %c0_i32 = arith.constant 0 : i32
    %c0_i32_0 = arith.constant 0 : i32
    %c0_i32_1 = arith.constant 0 : i32
    return %c0_i32, %c0_i32_0 : i32, i32
  }
  func.func @transform_15(%arg0: i32) -> (i32, i32) {
    %c0_i32 = arith.constant 0 : i32
    %c0_i32_0 = arith.constant 0 : i32
    %c0_i32_1 = arith.constant 0 : i32
    return %c0_i32, %c0_i32_0 : i32, i32
  }
  func.func @transform_16(%arg0: i32) -> (i32, i32) {
    %c0_i32 = arith.constant 0 : i32
    %c0_i32_0 = arith.constant 0 : i32
    %c0_i32_1 = arith.constant 0 : i32
    return %c0_i32, %c0_i32_0 : i32, i32
  }
  func.func @transform_17(%arg0: i32) -> (i32, i32, i32) {
    %c0_i32 = arith.constant 0 : i32
    %c0_i32_0 = arith.constant 0 : i32
    %c0_i32_1 = arith.constant 0 : i32
    return %arg0, %c0_i32, %c0_i32_0 : i32, i32, i32
  }
}

</mosaic_0001>

<llo_original>
// kernel: transformer_cla_forward.1
$region0: #{transformer_cla_forward.1}
  #allocation0 [shape = 'u32[]', space=smem, size = 0x4, offset = 0x4, fixed_abs, tag = 'smem constant byte address 0x4 - core index']
  #allocation1 [shape = 'u32[72,128]{1,0:T(1,128)}', space=vmem, size = 0x9000, scoped, tag = 'internal scratch']
  %s0 = inlined_call_operand.vmem [shape: f32[2,64,128], index: 0, kind: input, shape index: {}]
  %s1 = inlined_call_operand.vmem [shape: f32[2,128], index: 1, kind: input, shape index: {}]
  %s2 = inlined_call_operand.vmem [shape: f32[2,128], index: 2, kind: input, shape index: {}]
  %s3 = inlined_call_operand.vmem [shape: bf16[2,128,384], index: 3, kind: input, shape index: {}]
  %s4 = inlined_call_operand.vmem [shape: f32[2,384], index: 4, kind: input, shape index: {}]
  %s5 = inlined_call_operand.vmem [shape: bf16[2,128,128], index: 5, kind: input, shape index: {}]
  %s6 = inlined_call_operand.vmem [shape: f32[2,128], index: 6, kind: input, shape index: {}]
  %s7 = inlined_call_operand.vmem [shape: f32[2,128], index: 7, kind: input, shape index: {}]
  %s8 = inlined_call_operand.vmem [shape: f32[2,128], index: 8, kind: input, shape index: {}]
  %s9 = inlined_call_operand.vmem [shape: bf16[2,128,256], index: 9, kind: input, shape index: {}]
  %s10 = inlined_call_operand.vmem [shape: f32[2,256], index: 10, kind: input, shape index: {}]
  %s11 = inlined_call_operand.vmem [shape: bf16[2,256,128], index: 11, kind: input, shape index: {}]
  %s12 = inlined_call_operand.vmem [shape: f32[2,128], index: 12, kind: input, shape index: {}]
  %s13 = inlined_call_operand.vmem [shape: bf16[128,128], index: 13, kind: input, shape index: {}]
  %s14 = inlined_call_operand.vmem [shape: f32[1,128], index: 14, kind: input, shape index: {}]
  %s15 = inlined_call_operand.vmem [shape: bf16[128,256], index: 15, kind: input, shape index: {}]
  %s16 = inlined_call_operand.vmem [shape: f32[1,256], index: 16, kind: input, shape index: {}]
  %s17 = inlined_call_operand.hbm [shape: f32[2,64,256], index: 17, kind: output, shape index: {}]
  %s18 = sld [smem:[#allocation0]]
  $region101: #{transformer_cla_forward.1} parent=0
    _
  %s20 = ssub.s32 1, %s18
  %s21 = scalar_select 0, %s20, %s18
  $region1: #{transformer_cla_forward.1} parent=0
    #allocation2 [shape = 'u8[131072]{0}', space=vmem, size = 0x20000, scoped, tag = 'output window, operand 0']
    #allocation3 [shape = 's32[2]{0}', space=sflag, size = 0x8, scoped, tag = 'scoped memory for transformer_cla_forward.1']
    %22 = vsyncpa [#allocation3], 0
    %s23 = scalar_lea.sflag [#allocation3], 1
    %24 = vsyncpa %s23, 0
    loop: start=0, step=1, limit=4
    $region2: #{transformer_cla_forward.1} parent=1 // loop_pre_header
      _
    $region3: #{transformer_cla_forward.1} parent=1 // loop_header
      %s26 = sphi 0, %s30
      %p27 = scmp.ge.s32.totalorder %s26, 4
      %s36 = sphi 0, %s38
      %s39 = sphi 0, %s36
      %s40 = sphi 0, %s39
      %s56 = sphi 0, %s40
      %s60 = sphi 0, %s60
      %s62 = sphi 0, %s60
      %s63 = sphi 0, %s62
      %s77 = sphi 0, %s63
      %s81 = sphi 0, %s81
      %s83 = sphi 0, %s81
      %s84 = sphi 0, %s83
      %s98 = sphi 0, %s84
      %s102 = sphi 0, %s102
      %s104 = sphi 0, %s102
      %s105 = sphi 0, %s104
      %s119 = sphi 0, %s105
      %s123 = sphi 0, %s123
      %s125 = sphi 0, %s123
      %s126 = sphi 0, %s125
      %s140 = sphi 0, %s126
      %s144 = sphi 0, %s144
      %s146 = sphi 0, %s144
      %s147 = sphi 0, %s146
      %s161 = sphi 0, %s147
      %s165 = sphi 0, %s165
      %s167 = sphi 0, %s165
      %s168 = sphi 0, %s167
      %s182 = sphi 0, %s168
      %s186 = sphi 0, %s186
      %s188 = sphi 0, %s186
      %s189 = sphi 0, %s188
      %s203 = sphi 0, %s189
      %s207 = sphi 0, %s207
      %s209 = sphi 0, %s207
      %s210 = sphi 0, %s209
      %s224 = sphi 0, %s210
      %s228 = sphi 0, %s228
      %s230 = sphi 0, %s228
      %s231 = sphi 0, %s230
      %s245 = sphi 0, %s231
      %s249 = sphi 0, %s249
      %s251 = sphi 0, %s249
      %s252 = sphi 0, %s251
      %s266 = sphi 0, %s252
      %s270 = sphi 0, %s270
      %s272 = sphi 0, %s270
      %s273 = sphi 0, %s272
      %s287 = sphi 0, %s273
      %s291 = sphi 0, %s291
      %s293 = sphi 0, %s291
      %s294 = sphi 0, %s293
      %s308 = sphi 0, %s294
      %s312 = sphi 0, %s312
      %s314 = sphi 0, %s312
      %s315 = sphi 0, %s314
      %s329 = sphi 0, %s315
      %s333 = sphi 0, %s333
      %s335 = sphi 0, %s333
      %s336 = sphi 0, %s335
      %s350 = sphi 0, %s336
      %s354 = sphi 0, %s354
      %s356 = sphi 0, %s354
      %s357 = sphi 0, %s356
      %s371 = sphi 0, %s357
      %s375 = sphi 0, %s375
      %s377 = sphi 0, %s375
      %s378 = sphi 0, %s377
      %s392 = sphi 0, %s378
      %s398 = sphi 0, %s400
      %s401 = sphi 0, %s398
      %s402 = sphi 0, %s401
      %s418 = sphi 0, %s402
    $region4: #{transformer_cla_forward.1} parent=1 // loop_header_branch
      %29 = sbr.rel (%p27) target = $region8
    $region5: #{transformer_cla_forward.1} parent=1 // loop_body
      %s31 = ssub.s32 %s26, 1
      %s32 = ssub.s32 %s26, 2
      %s33 = sadd.s32 %s26, 1
      %s34 = ssub.s32 %s26, %s33
      %p35 = scmp.eq.s32.totalorder %s34, 0
      %s37 = sadd.s32 %s36, 1
      %s38 = scalar_select %p35, %s36, %s37
      %p41 = pneg %p35
      %p42 = scmp.eq.s32.totalorder %s26, 1
      %p43 = por %p41, %p42
      %p44 = scmp.ne.s32.totalorder %s36, %s39
      %p45 = scmp.eq.s32.totalorder %s26, 0
      %p46 = por %p44, %p45
      %p47 = scmp.ne.s32.totalorder %s36, %s39
      %p48 = scmp.eq.s32.totalorder %s31, 1
      %p49 = por %p47, %p48
      %p50 = scmp.ne.s32.totalorder %s39, %s40
      %p51 = scmp.eq.s32.totalorder %s31, 0
      %p52 = por %p50, %p51
      %p53 = scmp.ne.s32.totalorder %s39, %s40
      %p54 = scmp.eq.s32.totalorder %s32, 1
      %p55 = por %p53, %p54
      %p57 = scmp.ne.s32.totalorder %s40, %s56
      %p58 = scmp.eq.s32.totalorder %s32, 0
      %p59 = por %p57, %p58
      %s61 = sadd.s32 %s60, 1
      %p64 = scmp.eq.s32.totalorder %s26, 1
      %p65 = scmp.ne.s32.totalorder %s60, %s62
      %p66 = scmp.eq.s32.totalorder %s26, 0
      %p67 = por %p65, %p66
      %p68 = scmp.ne.s32.totalorder %s60, %s62
      %p69 = scmp.eq.s32.totalorder %s31, 1
      %p70 = por %p68, %p69
      %p71 = scmp.ne.s32.totalorder %s62, %s63
      %p72 = scmp.eq.s32.totalorder %s31, 0
      %p73 = por %p71, %p72
      %p74 = scmp.ne.s32.totalorder %s62, %s63
      %p75 = scmp.eq.s32.totalorder %s32, 1
      %p76 = por %p74, %p75
      %p78 = scmp.ne.s32.totalorder %s63, %s77
      %p79 = scmp.eq.s32.totalorder %s32, 0
      %p80 = por %p78, %p79
      %s82 = sadd.s32 %s81, 1
      %p85 = scmp.eq.s32.totalorder %s26, 1
      %p86 = scmp.ne.s32.totalorder %s81, %s83
      %p87 = scmp.eq.s32.totalorder %s26, 0
      %p88 = por %p86, %p87
      %p89 = scmp.ne.s32.totalorder %s81, %s83
      %p90 = scmp.eq.s32.totalorder %s31, 1
      %p91 = por %p89, %p90
      %p92 = scmp.ne.s32.totalorder %s83, %s84
      %p93 = scmp.eq.s32.totalorder %s31, 0
      %p94 = por %p92, %p93
      %p95 = scmp.ne.s32.totalorder %s83, %s84
      %p96 = scmp.eq.s32.totalorder %s32, 1
      %p97 = por %p95, %p96
      %p99 = scmp.ne.s32.totalorder %s84, %s98
      %p100 = scmp.eq.s32.totalorder %s32, 0
      %p101 = por %p99, %p100
      %s103 = sadd.s32 %s102, 1
      %p106 = scmp.eq.s32.totalorder %s26, 1
      %p107 = scmp.ne.s32.totalorder %s102, %s104
      %p108 = scmp.eq.s32.totalorder %s26, 0
      %p109 = por %p107, %p108
      %p110 = scmp.ne.s32.totalorder %s102, %s104
      %p111 = scmp.eq.s32.totalorder %s31, 1
      %p112 = por %p110, %p111
      %p113 = scmp.ne.s32.totalorder %s104, %s105
      %p114 = scmp.eq.s32.totalorder %s31, 0
      %p115 = por %p113, %p114
      %p116 = scmp.ne.s32.totalorder %s104, %s105
      %p117 = scmp.eq.s32.totalorder %s32, 1
      %p118 = por %p116, %p117
      %p120 = scmp.ne.s32.totalorder %s105, %s119
      %p121 = scmp.eq.s32.totalorder %s32, 0
      %p122 = por %p120, %p121
      %s124 = sadd.s32 %s123, 1
      %p127 = scmp.eq.s32.totalorder %s26, 1
      %p128 = scmp.ne.s32.totalorder %s123, %s125
      %p129 = scmp.eq.s32.totalorder %s26, 0
      %p130 = por %p128, %p129
      %p131 = scmp.ne.s32.totalorder %s123, %s125
      %p132 = scmp.eq.s32.totalorder %s31, 1
      %p133 = por %p131, %p132
      %p134 = scmp.ne.s32.totalorder %s125, %s126
      %p135 = scmp.eq.s32.totalorder %s31, 0
      %p136 = por %p134, %p135
      %p137 = scmp.ne.s32.totalorder %s125, %s126
      %p138 = scmp.eq.s32.totalorder %s32, 1
      %p139 = por %p137, %p138
      %p141 = scmp.ne.s32.totalorder %s126, %s140
      %p142 = scmp.eq.s32.totalorder %s32, 0
      %p143 = por %p141, %p142
      %s145 = sadd.s32 %s144, 1
      %p148 = scmp.eq.s32.totalorder %s26, 1
      %p149 = scmp.ne.s32.totalorder %s144, %s146
      %p150 = scmp.eq.s32.totalorder %s26, 0
      %p151 = por %p149, %p150
      %p152 = scmp.ne.s32.totalorder %s144, %s146
      %p153 = scmp.eq.s32.totalorder %s31, 1
      %p154 = por %p152, %p153
      %p155 = scmp.ne.s32.totalorder %s146, %s147
      %p156 = scmp.eq.s32.totalorder %s31, 0
      %p157 = por %p155, %p156
      %p158 = scmp.ne.s32.totalorder %s146, %s147
      %p159 = scmp.eq.s32.totalorder %s32, 1
      %p160 = por %p158, %p159
      %p162 = scmp.ne.s32.totalorder %s147, %s161
      %p163 = scmp.eq.s32.totalorder %s32, 0
      %p164 = por %p162, %p163
      %s166 = sadd.s32 %s165, 1
      %p169 = scmp.eq.s32.totalorder %s26, 1
      %p170 = scmp.ne.s32.totalorder %s165, %s167
      %p171 = scmp.eq.s32.totalorder %s26, 0
      %p172 = por %p170, %p171
      %p173 = scmp.ne.s32.totalorder %s165, %s167
      %p174 = scmp.eq.s32.totalorder %s31, 1
      %p175 = por %p173, %p174
      %p176 = scmp.ne.s32.totalorder %s167, %s168
      %p177 = scmp.eq.s32.totalorder %s31, 0
      %p178 = por %p176, %p177
      %p179 = scmp.ne.s32.totalorder %s167, %s168
      %p180 = scmp.eq.s32.totalorder %s32, 1
      %p181 = por %p179, %p180
      %p183 = scmp.ne.s32.totalorder %s168, %s182
      %p184 = scmp.eq.s32.totalorder %s32, 0
      %p185 = por %p183, %p184
      %s187 = sadd.s32 %s186, 1
      %p190 = scmp.eq.s32.totalorder %s26, 1
      %p191 = scmp.ne.s32.totalorder %s186, %s188
      %p192 = scmp.eq.s32.totalorder %s26, 0
      %p193 = por %p191, %p192
      %p194 = scmp.ne.s32.totalorder %s186, %s188
      %p195 = scmp.eq.s32.totalorder %s31, 1
      %p196 = por %p194, %p195
      %p197 = scmp.ne.s32.totalorder %s188, %s189
      %p198 = scmp.eq.s32.totalorder %s31, 0
      %p199 = por %p197, %p198
      %p200 = scmp.ne.s32.totalorder %s188, %s189
      %p201 = scmp.eq.s32.totalorder %s32, 1
      %p202 = por %p200, %p201
      %p204 = scmp.ne.s32.totalorder %s189, %s203
      %p205 = scmp.eq.s32.totalorder %s32, 0
      %p206 = por %p204, %p205
      %s208 = sadd.s32 %s207, 1
      %p211 = scmp.eq.s32.totalorder %s26, 1
      %p212 = scmp.ne.s32.totalorder %s207, %s209
      %p213 = scmp.eq.s32.totalorder %s26, 0
      %p214 = por %p212, %p213
      %p215 = scmp.ne.s32.totalorder %s207, %s209
      %p216 = scmp.eq.s32.totalorder %s31, 1
      %p217 = por %p215, %p216
      %p218 = scmp.ne.s32.totalorder %s209, %s210
      %p219 = scmp.eq.s32.totalorder %s31, 0
      %p220 = por %p218, %p219
      %p221 = scmp.ne.s32.totalorder %s209, %s210
      %p222 = scmp.eq.s32.totalorder %s32, 1
      %p223 = por %p221, %p222
      %p225 = scmp.ne.s32.totalorder %s210, %s224
      %p226 = scmp.eq.s32.totalorder %s32, 0
      %p227 = por %p225, %p226
      %s229 = sadd.s32 %s228, 1
      %p232 = scmp.eq.s32.totalorder %s26, 1
      %p233 = scmp.ne.s32.totalorder %s228, %s230
      %p234 = scmp.eq.s32.totalorder %s26, 0
      %p235 = por %p233, %p234
      %p236 = scmp.ne.s32.totalorder %s228, %s230
      %p237 = scmp.eq.s32.totalorder %s31, 1
      %p238 = por %p236, %p237
      %p239 = scmp.ne.s32.totalorder %s230, %s231
      %p240 = scmp.eq.s32.totalorder %s31, 0
      %p241 = por %p239, %p240
      %p242 = scmp.ne.s32.totalorder %s230, %s231
      %p243 = scmp.eq.s32.totalorder %s32, 1
      %p244 = por %p242, %p243
      %p246 = scmp.ne.s32.totalorder %s231, %s245
      %p247 = scmp.eq.s32.totalorder %s32, 0
      %p248 = por %p246, %p247
      %s250 = sadd.s32 %s249, 1
      %p253 = scmp.eq.s32.totalorder %s26, 1
      %p254 = scmp.ne.s32.totalorder %s249, %s251
      %p255 = scmp.eq.s32.totalorder %s26, 0
      %p256 = por %p254, %p255
      %p257 = scmp.ne.s32.totalorder %s249, %s251
      %p258 = scmp.eq.s32.totalorder %s31, 1
      %p259 = por %p257, %p258
      %p260 = scmp.ne.s32.totalorder %s251, %s252
      %p261 = scmp.eq.s32.totalorder %s31, 0
      %p262 = por %p260, %p261
      %p263 = scmp.ne.s32.totalorder %s251, %s252
      %p264 = scmp.eq.s32.totalorder %s32, 1
      %p265 = por %p263, %p264
      %p267 = scmp.ne.s32.totalorder %s252, %s266
      %p268 = scmp.eq.s32.totalorder %s32, 0
      %p269 = por %p267, %p268
      %s271 = sadd.s32 %s270, 1
      %p274 = scmp.eq.s32.totalorder %s26, 1
      %p275 = scmp.ne.s32.totalorder %s270, %s272
      %p276 = scmp.eq.s32.totalorder %s26, 0
      %p277 = por %p275, %p276
      %p278 = scmp.ne.s32.totalorder %s270, %s272
      %p279 = scmp.eq.s32.totalorder %s31, 1
      %p280 = por %p278, %p279
      %p281 = scmp.ne.s32.totalorder %s272, %s273
      %p282 = scmp.eq.s32.totalorder %s31, 0
      %p283 = por %p281, %p282
      %p284 = scmp.ne.s32.totalorder %s272, %s273
      %p285 = scmp.eq.s32.totalorder %s32, 1
      %p286 = por %p284, %p285
      %p288 = scmp.ne.s32.totalorder %s273, %s287
      %p289 = scmp.eq.s32.totalorder %s32, 0
      %p290 = por %p288, %p289
      %s292 = sadd.s32 %s291, 1
      %p295 = scmp.eq.s32.totalorder %s26, 1
      %p296 = scmp.ne.s32.totalorder %s291, %s293
      %p297 = scmp.eq.s32.totalorder %s26, 0
      %p298 = por %p296, %p297
      %p299 = scmp.ne.s32.totalorder %s291, %s293
      %p300 = scmp.eq.s32.totalorder %s31, 1
      %p301 = por %p299, %p300
      %p302 = scmp.ne.s32.totalorder %s293, %s294
      %p303 = scmp.eq.s32.totalorder %s31, 0
      %p304 = por %p302, %p303
      %p305 = scmp.ne.s32.totalorder %s293, %s294
      %p306 = scmp.eq.s32.totalorder %s32, 1
      %p307 = por %p305, %p306
      %p309 = scmp.ne.s32.totalorder %s294, %s308
      %p310 = scmp.eq.s32.totalorder %s32, 0
      %p311 = por %p309, %p310
      %s313 = sadd.s32 %s312, 1
      %p316 = scmp.eq.s32.totalorder %s26, 1
      %p317 = scmp.ne.s32.totalorder %s312, %s314
      %p318 = scmp.eq.s32.totalorder %s26, 0
      %p319 = por %p317, %p318
      %p320 = scmp.ne.s32.totalorder %s312, %s314
      %p321 = scmp.eq.s32.totalorder %s31, 1
      %p322 = por %p320, %p321
      %p323 = scmp.ne.s32.totalorder %s314, %s315
      %p324 = scmp.eq.s32.totalorder %s31, 0
      %p325 = por %p323, %p324
      %p326 = scmp.ne.s32.totalorder %s314, %s315
      %p327 = scmp.eq.s32.totalorder %s32, 1
      %p328 = por %p326, %p327
      %p330 = scmp.ne.s32.totalorder %s315, %s329
      %p331 = scmp.eq.s32.totalorder %s32, 0
      %p332 = por %p330, %p331
      %s334 = sadd.s32 %s333, 1
      %p337 = scmp.eq.s32.totalorder %s26, 1
      %p338 = scmp.ne.s32.totalorder %s333, %s335
      %p339 = scmp.eq.s32.totalorder %s26, 0
      %p340 = por %p338, %p339
      %p341 = scmp.ne.s32.totalorder %s333, %s335
      %p342 = scmp.eq.s32.totalorder %s31, 1
      %p343 = por %p341, %p342
      %p344 = scmp.ne.s32.totalorder %s335, %s336
      %p345 = scmp.eq.s32.totalorder %s31, 0
      %p346 = por %p344, %p345
      %p347 = scmp.ne.s32.totalorder %s335, %s336
      %p348 = scmp.eq.s32.totalorder %s32, 1
      %p349 = por %p347, %p348
      %p351 = scmp.ne.s32.totalorder %s336, %s350
      %p352 = scmp.eq.s32.totalorder %s32, 0
      %p353 = por %p351, %p352
      %s355 = sadd.s32 %s354, 1
      %p358 = scmp.eq.s32.totalorder %s26, 1
      %p359 = scmp.ne.s32.totalorder %s354, %s356
      %p360 = scmp.eq.s32.totalorder %s26, 0
      %p361 = por %p359, %p360
      %p362 = scmp.ne.s32.totalorder %s354, %s356
      %p363 = scmp.eq.s32.totalorder %s31, 1
      %p364 = por %p362, %p363
      %p365 = scmp.ne.s32.totalorder %s356, %s357
      %p366 = scmp.eq.s32.totalorder %s31, 0
      %p367 = por %p365, %p366
      %p368 = scmp.ne.s32.totalorder %s356, %s357
      %p369 = scmp.eq.s32.totalorder %s32, 1
      %p370 = por %p368, %p369
      %p372 = scmp.ne.s32.totalorder %s357, %s371
      %p373 = scmp.eq.s32.totalorder %s32, 0
      %p374 = por %p372, %p373
      %s376 = sadd.s32 %s375, 1
      %p379 = scmp.eq.s32.totalorder %s26, 1
      %p380 = scmp.ne.s32.totalorder %s375, %s377
      %p381 = scmp.eq.s32.totalorder %s26, 0
      %p382 = por %p380, %p381
      %p383 = scmp.ne.s32.totalorder %s375, %s377
      %p384 = scmp.eq.s32.totalorder %s31, 1
      %p385 = por %p383, %p384
      %p386 = scmp.ne.s32.totalorder %s377, %s378
      %p387 = scmp.eq.s32.totalorder %s31, 0
      %p388 = por %p386, %p387
      %p389 = scmp.ne.s32.totalorder %s377, %s378
      %p390 = scmp.eq.s32.totalorder %s32, 1
      %p391 = por %p389, %p390
      %p393 = scmp.ne.s32.totalorder %s378, %s392
      %p394 = scmp.eq.s32.totalorder %s32, 0
      %p395 = por %p393, %p394
      %s396 = ssub.s32 %s26, %s33
      %p397 = scmp.eq.s32.totalorder %s396, 0
      %s399 = sadd.s32 %s398, 1
      %s400 = scalar_select %p397, %s398, %s399
      %p403 = pneg %p397
      %p404 = scmp.eq.s32.totalorder %s26, 1
      %p405 = por %p403, %p404
      %p406 = scmp.ne.s32.totalorder %s398, %s401
      %p407 = scmp.eq.s32.totalorder %s26, 0
      %p408 = por %p406, %p407
      %p409 = scmp.ne.s32.totalorder %s398, %s401
      %p410 = scmp.eq.s32.totalorder %s31, 1
      %p411 = por %p409, %p410
      %p412 = scmp.ne.s32.totalorder %s401, %s402
      %p413 = scmp.eq.s32.totalorder %s31, 0
      %p414 = por %p412, %p413
      %p415 = scmp.ne.s32.totalorder %s401, %s402
      %p416 = scmp.eq.s32.totalorder %s32, 1
      %p417 = por %p415, %p416
      %p419 = scmp.ne.s32.totalorder %s402, %s418
      %p420 = scmp.eq.s32.totalorder %s32, 0
      %p421 = por %p419, %p420
      %p422 = scmp.le.s32.totalorder 1, %s26
      %p423 = scmp.lt.s32.totalorder %s26, 3
      %p424 = pnand %p422, %p423
      %p425 = pneg %p424
      // Predicated region
      $region9: #{transformer_cla_forward.1} parent=5 // pred_check
        _
      $region10: #{transformer_cla_forward.1} parent=5 // pred_check_branch
        %427 = sbr.rel (%p424) target = $region12
      $region11: #{transformer_cla_forward.1} parent=5 // pred_region
        %s428 = ssub.s32 %s26, 1
        // Predicated region
        $region13: #{transformer_cla_forward.1} parent=11 // pred_check
          %p429 = pneg %p73
        $region14: #{transformer_cla_forward.1} parent=11 // pred_check_branch
          %431 = sbr.rel (%p429) target = $region16
        $region15: #{transformer_cla_forward.1} parent=11 // pred_region
          _
        $region16: #{transformer_cla_forward.1} parent=11 // pred_fallthru
          _
        // Predicated region
        $region17: #{transformer_cla_forward.1} parent=11 // pred_check
          %p432 = pneg %p94
        $region18: #{transformer_cla_forward.1} parent=11 // pred_check_branch
          %434 = sbr.rel (%p432) target = $region20
        $region19: #{transformer_cla_forward.1} parent=11 // pred_region
          _
        $region20: #{transformer_cla_forward.1} parent=11 // pred_fallthru
          _
        // Predicated region
        $region21: #{transformer_cla_forward.1} parent=11 // pred_check
          %p435 = pneg %p115
        $region22: #{transformer_cla_forward.1} parent=11 // pred_check_branch
          %437 = sbr.rel (%p435) target = $region24
        $region23: #{transformer_cla_forward.1} parent=11 // pred_region
          _
        $region24: #{transformer_cla_forward.1} parent=11 // pred_fallthru
          _
        // Predicated region
        $region25: #{transformer_cla_forward.1} parent=11 // pred_check
          %p438 = pneg %p136
        $region26: #{transformer_cla_forward.1} parent=11 // pred_check_branch
          %440 = sbr.rel (%p438) target = $region28
        $region27: #{transformer_cla_forward.1} parent=11 // pred_region
          _
        $region28: #{transformer_cla_forward.1} parent=11 // pred_fallthru
          _
        // Predicated region
        $region29: #{transformer_cla_forward.1} parent=11 // pred_check
          %p441 = pneg %p157
        $region30: #{transformer_cla_forward.1} parent=11 // pred_check_branch
          %443 = sbr.rel (%p441) target = $region32
        $region31: #{transformer_cla_forward.1} parent=11 // pred_region
          _
        $region32: #{transformer_cla_forward.1} parent=11 // pred_fallthru
          _
        // Predicated region
        $region33: #{transformer_cla_forward.1} parent=11 // pred_check
          %p444 = pneg %p178
        $region34: #{transformer_cla_forward.1} parent=11 // pred_check_branch
          %446 = sbr.rel (%p444) target = $region36
        $region35: #{transformer_cla_forward.1} parent=11 // pred_region
          _
        $region36: #{transformer_cla_forward.1} parent=11 // pred_fallthru
          _
        // Predicated region
        $region37: #{transformer_cla_forward.1} parent=11 // pred_check
          %p447 = pneg %p199
        $region38: #{transformer_cla_forward.1} parent=11 // pred_check_branch
          %449 = sbr.rel (%p447) target = $region40
        $region39: #{transformer_cla_forward.1} parent=11 // pred_region
          _
        $region40: #{transformer_cla_forward.1} parent=11 // pred_fallthru
          _
        // Predicated region
        $region41: #{transformer_cla_forward.1} parent=11 // pred_check
          %p450 = pneg %p220
        $region42: #{transformer_cla_forward.1} parent=11 // pred_check_branch
          %452 = sbr.rel (%p450) target = $region44
        $region43: #{transformer_cla_forward.1} parent=11 // pred_region
          _
        $region44: #{transformer_cla_forward.1} parent=11 // pred_fallthru
          _
        // Predicated region
        $region45: #{transformer_cla_forward.1} parent=11 // pred_check
          %p453 = pneg %p241
        $region46: #{transformer_cla_forward.1} parent=11 // pred_check_branch
          %455 = sbr.rel (%p453) target = $region48
        $region47: #{transformer_cla_forward.1} parent=11 // pred_region
          _
        $region48: #{transformer_cla_forward.1} parent=11 // pred_fallthru
          _
        // Predicated region
        $region49: #{transformer_cla_forward.1} parent=11 // pred_check
          %p456 = pneg %p262
        $region50: #{transformer_cla_forward.1} parent=11 // pred_check_branch
          %458 = sbr.rel (%p456) target = $region52
        $region51: #{transformer_cla_forward.1} parent=11 // pred_region
          _
        $region52: #{transformer_cla_forward.1} parent=11 // pred_fallthru
          _
        // Predicated region
        $region53: #{transformer_cla_forward.1} parent=11 // pred_check
          %p459 = pneg %p283
        $region54: #{transformer_cla_forward.1} parent=11 // pred_check_branch
          %461 = sbr.rel (%p459) target = $region56
        $region55: #{transformer_cla_forward.1} parent=11 // pred_region
          _
        $region56: #{transformer_cla_forward.1} parent=11 // pred_fallthru
          _
        // Predicated region
        $region57: #{transformer_cla_forward.1} parent=11 // pred_check
          %p462 = pneg %p304
        $region58: #{transformer_cla_forward.1} parent=11 // pred_check_branch
          %464 = sbr.rel (%p462) target = $region60
        $region59: #{transformer_cla_forward.1} parent=11 // pred_region
          _
        $region60: #{transformer_cla_forward.1} parent=11 // pred_fallthru
          _
        // Predicated region
        $region61: #{transformer_cla_forward.1} parent=11 // pred_check
          %p465 = pneg %p325
        $region62: #{transformer_cla_forward.1} parent=11 // pred_check_branch
          %467 = sbr.rel (%p465) target = $region64
        $region63: #{transformer_cla_forward.1} parent=11 // pred_region
          _
        $region64: #{transformer_cla_forward.1} parent=11 // pred_fallthru
          _
        // Predicated region
        $region65: #{transformer_cla_forward.1} parent=11 // pred_check
          %p468 = pneg %p346
        $region66: #{transformer_cla_forward.1} parent=11 // pred_check_branch
          %470 = sbr.rel (%p468) target = $region68
        $region67: #{transformer_cla_forward.1} parent=11 // pred_region
          _
        $region68: #{transformer_cla_forward.1} parent=11 // pred_fallthru
          _
        // Predicated region
        $region69: #{transformer_cla_forward.1} parent=11 // pred_check
          %p471 = pneg %p367
        $region70: #{transformer_cla_forward.1} parent=11 // pred_check_branch
          %473 = sbr.rel (%p471) target = $region72
        $region71: #{transformer_cla_forward.1} parent=11 // pred_region
          _
        $region72: #{transformer_cla_forward.1} parent=11 // pred_fallthru
          _
        // Predicated region
        $region73: #{transformer_cla_forward.1} parent=11 // pred_check
          %p474 = pneg %p388
        $region74: #{transformer_cla_forward.1} parent=11 // pred_check_branch
          %476 = sbr.rel (%p474) target = $region76
        $region75: #{transformer_cla_forward.1} parent=11 // pred_region
          _
        $region76: #{transformer_cla_forward.1} parent=11 // pred_fallthru
          _
      $region12: #{transformer_cla_forward.1} parent=5 // pred_fallthru
        _
      %p477 = scmp.lt.s32.totalorder %s26, 2
      // Predicated region
      $region77: #{transformer_cla_forward.1} parent=5 // pred_check
        %p478 = pneg %p477
      $region78: #{transformer_cla_forward.1} parent=5 // pred_check_branch
        %480 = sbr.rel (%p478) target = $region80
      $region79: #{transformer_cla_forward.1} parent=5 // pred_region
        // Predicated region
        $region81: #{transformer_cla_forward.1} parent=79 // pred_check
          %p481 = pneg %p46
        $region82: #{transformer_cla_forward.1} parent=79 // pred_check_branch
          %483 = sbr.rel (%p481) target = $region84
        $region83: #{transformer_cla_forward.1} parent=79 // pred_region
          %p484 = scmp.lt.s32.totalorder %s26, 1
          %s485 = scalar_select %p484, %s26, 1
          %s486 = smul.addr %s485, 8
          %s487 = smul.addr %s486, 8
          %s488 = scalar_lea.vmem %s0, %s487
        $region84: #{transformer_cla_forward.1} parent=79 // pred_fallthru
          _
      $region80: #{transformer_cla_forward.1} parent=5 // pred_fallthru
        _
      %p489 = scmp.le.s32.totalorder 1, %s26
      %p490 = scmp.lt.s32.totalorder %s26, 3
      %p491 = pnand %p489, %p490
      %p492 = pneg %p491
      // Predicated region
      $region85: #{transformer_cla_forward.1} parent=5 // pred_check
        _
      $region86: #{transformer_cla_forward.1} parent=5 // pred_check_branch
        %494 = sbr.rel (%p491) target = $region88
      $region87: #{transformer_cla_forward.1} parent=5 // pred_region
        %s495 = ssub.s32 %s26, 1
        %p496 = scmp.lt.s32.totalorder %s31, 1
        %s497 = scalar_select %p496, %s31, 1
        %s498 = smul.addr %s497, 8
        %s499 = smul.addr %s498, 8
        %s500 = scalar_lea.vmem %s0, %s499
        %p501 = pneg %p52
        %p502 = pneg %p49
        %p503 = pneg %p73
        %p504 = pneg %p70
        %p505 = pneg %p94
        %p506 = pneg %p91
        %p507 = pneg %p115
        %p508 = pneg %p112
        %p509 = pneg %p136
        %p510 = pneg %p133
        %p511 = pneg %p157
        %p512 = pneg %p154
        %p513 = pneg %p178
        %p514 = pneg %p175
        %p515 = pneg %p199
        %p516 = pneg %p196
        %p517 = pneg %p220
        %p518 = pneg %p217
        %p519 = pneg %p241
        %p520 = pneg %p238
        %p521 = pneg %p262
        %p522 = pneg %p259
        %p523 = pneg %p283
        %p524 = pneg %p280
        %p525 = pneg %p304
        %p526 = pneg %p301
        %p527 = pneg %p325
        %p528 = pneg %p322
        %p529 = pneg %p346
        %p530 = pneg %p343
        %p531 = pneg %p367
        %p532 = pneg %p364
        %p533 = pneg %p388
        %p534 = pneg %p385
        %p535 = pneg %p414
        %p536 = pneg %p411
        %s537 = sand.u32 %s401, 1
        %s538 = scalar_lea.sflag [#allocation3], %s537
        %s539 = sand.u32 %s401, 1
        %s540 = smul.addr %s539, 128
        %s541 = scalar_lea.vmem [#allocation2], %s540
        %p542 = scmp.lt.s32.totalorder %s31, 1
        %s543 = scalar_select %p542, %s31, 1
        %s544 = smul.addr %s543, 8
        %s545 = smul.addr %s544, 8
        %s546 = scalar_lea.vmem %s0, %s545
        %v548 = vld [vmem:[%s546] sm:$0xff]
        %v549 = vld [vmem:[%s546 + $0x8] sm:$0xff]
        %v550 = vld [vmem:[%s546 + $0x10] sm:$0xff]
        %v551 = vld [vmem:[%s546 + $0x18] sm:$0xff]
        %v552 = vld [vmem:[%s546 + $0x20] sm:$0xff]
        %v553 = vld [vmem:[%s546 + $0x28] sm:$0xff]
        %v554 = vld [vmem:[%s546 + $0x30] sm:$0xff]
        %v555 = vld [vmem:[%s546 + $0x38] sm:$0xff]
        %v556 = vld [vmem:[%s1] sm:$0x1]
        %v557 = vld [vmem:[%s2] sm:$0x1]
        %558 = vadd.xlane.f32.xlu0 %v548
        %v559 = vpop.xlane.xlu0 %558
        %560 = vadd.xlane.f32.xlu0 %v549
        %v561 = vpop.xlane.xlu0 %560
        %562 = vadd.xlane.f32.xlu0 %v550
        %v563 = vpop.xlane.xlu0 %562
        %564 = vadd.xlane.f32.xlu0 %v551
        %v565 = vpop.xlane.xlu0 %564
        %566 = vadd.xlane.f32.xlu0 %v552
        %v567 = vpop.xlane.xlu0 %566
        %568 = vadd.xlane.f32.xlu0 %v553
        %v569 = vpop.xlane.xlu0 %568
        %570 = vadd.xlane.f32.xlu0 %v554
        %v571 = vpop.xlane.xlu0 %570
        %572 = vadd.xlane.f32.xlu0 %v555
        %v573 = vpop.xlane.xlu0 %572
        %v574 = vrcp.pop 128.0
        %v575 = vmul.f32 128.0, %v574
        %v576 = vsub.f32 1.0, %v575
        %v577 = vmul.f32 %v574, %v576
        %v578 = vadd.f32 %v574, %v577
        %vm579 = vweird.f32 %v574
        %v580 = vsel %vm579, %v574, %v578
        %v581 = vmul.f32 %v559, %v580
        %v582 = vmul.f32 %v561, %v580
        %v583 = vmul.f32 %v563, %v580
        %v584 = vmul.f32 %v565, %v580
        %v585 = vmul.f32 %v567, %v580
        %v586 = vmul.f32 %v569, %v580
        %v587 = vmul.f32 %v571, %v580
        %v588 = vmul.f32 %v573, %v580
        %v589 = vsub.f32 %v548, %v581
        %v590 = vsub.f32 %v549, %v582
        %v591 = vsub.f32 %v550, %v583
        %v592 = vsub.f32 %v551, %v584
        %v593 = vsub.f32 %v552, %v585
        %v594 = vsub.f32 %v553, %v586
        %v595 = vsub.f32 %v554, %v587
        %v596 = vsub.f32 %v555, %v588
        %v597 = vmul.f32 %v589, %v589
        %v598 = vmul.f32 %v590, %v590
        %v599 = vmul.f32 %v591, %v591
        %v600 = vmul.f32 %v592, %v592
        %v601 = vmul.f32 %v593, %v593
        %v602 = vmul.f32 %v594, %v594
        %v603 = vmul.f32 %v595, %v595
        %v604 = vmul.f32 %v596, %v596
        %605 = vadd.xlane.f32.xlu0 %v597
        %v606 = vpop.xlane.xlu0 %605
        %607 = vadd.xlane.f32.xlu0 %v598
        %v608 = vpop.xlane.xlu0 %607
        %609 = vadd.xlane.f32.xlu0 %v599
        %v610 = vpop.xlane.xlu0 %609
        %611 = vadd.xlane.f32.xlu0 %v600
        %v612 = vpop.xlane.xlu0 %611
        %613 = vadd.xlane.f32.xlu0 %v601
        %v614 = vpop.xlane.xlu0 %613
        %615 = vadd.xlane.f32.xlu0 %v602
        %v616 = vpop.xlane.xlu0 %615
        %617 = vadd.xlane.f32.xlu0 %v603
        %v618 = vpop.xlane.xlu0 %617
        %619 = vadd.xlane.f32.xlu0 %v604
        %v620 = vpop.xlane.xlu0 %619
        %v621 = vmul.f32 %v606, %v580
        %v622 = vmul.f32 %v608, %v580
        %v623 = vmul.f32 %v610, %v580
        %v624 = vmul.f32 %v612, %v580
        %v625 = vmul.f32 %v614, %v580
        %v626 = vmul.f32 %v616, %v580
        %v627 = vmul.f32 %v618, %v580
        %v628 = vmul.f32 %v620, %v580
        %v629 = vadd.f32 %v621, 1e-05
        %v630 = vadd.f32 %v622, 1e-05
        %v631 = vadd.f32 %v623, 1e-05
        %v632 = vadd.f32 %v624, 1e-05
        %v633 = vadd.f32 %v625, 1e-05
        %v634 = vadd.f32 %v626, 1e-05
        %v635 = vadd.f32 %v627, 1e-05
        %v636 = vadd.f32 %v628, 1e-05
        %v637 = vrsqrt.pop %v629
        %v638 = vmul.f32 %v637, %v629
        %v639 = vmul.f32 %v638, %v637
        %v640 = vmul.f32 0.5, %v639
        %v641 = vsub.f32 1.5, %v640
        %v642 = vmul.f32 %v637, %v641
        %vm643 = vweird.f32 %v629
        %vm644 = vweird.f32 %v637
        %vm645 = vmor %vm643, %vm644
        %v646 = vsel %vm645, %v637, %v642
        %v647 = vrsqrt.pop %v630
        %v648 = vmul.f32 %v647, %v630
        %v649 = vmul.f32 %v648, %v647
        %v650 = vmul.f32 0.5, %v649
        %v651 = vsub.f32 1.5, %v650
        %v652 = vmul.f32 %v647, %v651
        %vm653 = vweird.f32 %v630
        %vm654 = vweird.f32 %v647
        %vm655 = vmor %vm653, %vm654
        %v656 = vsel %vm655, %v647, %v652
        %v657 = vrsqrt.pop %v631
        %v658 = vmul.f32 %v657, %v631
        %v659 = vmul.f32 %v658, %v657
        %v660 = vmul.f32 0.5, %v659
        %v661 = vsub.f32 1.5, %v660
        %v662 = vmul.f32 %v657, %v661
        %vm663 = vweird.f32 %v631
        %vm664 = vweird.f32 %v657
        %vm665 = vmor %vm663, %vm664
        %v666 = vsel %vm665, %v657, %v662
        %v667 = vrsqrt.pop %v632
        %v668 = vmul.f32 %v667, %v632
        %v669 = vmul.f32 %v668, %v667
        %v670 = vmul.f32 0.5, %v669
        %v671 = vsub.f32 1.5, %v670
        %v672 = vmul.f32 %v667, %v671
        %vm673 = vweird.f32 %v632
        %vm674 = vweird.f32 %v667
        %vm675 = vmor %vm673, %vm674
        %v676 = vsel %vm675, %v667, %v672
        %v677 = vrsqrt.pop %v633
        %v678 = vmul.f32 %v677, %v633
        %v679 = vmul.f32 %v678, %v677
        %v680 = vmul.f32 0.5, %v679
        %v681 = vsub.f32 1.5, %v680
        %v682 = vmul.f32 %v677, %v681
        %vm683 = vweird.f32 %v633
        %vm684 = vweird.f32 %v677
        %vm685 = vmor %vm683, %vm684
        %v686 = vsel %vm685, %v677, %v682
        %v687 = vrsqrt.pop %v634
        %v688 = vmul.f32 %v687, %v634
        %v689 = vmul.f32 %v688, %v687
        %v690 = vmul.f32 0.5, %v689
        %v691 = vsub.f32 1.5, %v690
        %v692 = vmul.f32 %v687, %v691
        %vm693 = vweird.f32 %v634
        %vm694 = vweird.f32 %v687
        %vm695 = vmor %vm693, %vm694
        %v696 = vsel %vm695, %v687, %v692
        %v697 = vrsqrt.pop %v635
        %v698 = vmul.f32 %v697, %v635
        %v699 = vmul.f32 %v698, %v697
        %v700 = vmul.f32 0.5, %v699
        %v701 = vsub.f32 1.5, %v700
        %v702 = vmul.f32 %v697, %v701
        %vm703 = vweird.f32 %v635
        %vm704 = vweird.f32 %v697
        %vm705 = vmor %vm703, %vm704
        %v706 = vsel %vm705, %v697, %v702
        %v707 = vrsqrt.pop %v636
        %v708 = vmul.f32 %v707, %v636
        %v709 = vmul.f32 %v708, %v707
        %v710 = vmul.f32 0.5, %v709
        %v711 = vsub.f32 1.5, %v710
        %v712 = vmul.f32 %v707, %v711
        %vm713 = vweird.f32 %v636
        %vm714 = vweird.f32 %v707
        %vm715 = vmor %vm713, %vm714
        %v716 = vsel %vm715, %v707, %v712
        %v717 = vmul.f32 %v589, %v646
        %v718 = vmul.f32 %v590, %v656
        %v719 = vmul.f32 %v591, %v666
        %v720 = vmul.f32 %v592, %v676
        %v721 = vmul.f32 %v593, %v686
        %v722 = vmul.f32 %v594, %v696
        %v723 = vmul.f32 %v595, %v706
        %v724 = vmul.f32 %v596, %v716
        %v725 = vperm.slane %v556, 0
        %v726 = vmul.f32 %v717, %v725
        %v727 = vmul.f32 %v718, %v725
        %v728 = vmul.f32 %v719, %v725
        %v729 = vmul.f32 %v720, %v725
        %v730 = vmul.f32 %v721, %v725
        %v731 = vmul.f32 %v722, %v725
        %v732 = vmul.f32 %v723, %v725
        %v733 = vmul.f32 %v724, %v725
        %v734 = vperm.slane %v557, 0
        %v735 = vadd.f32 %v726, %v734
        %v736 = vadd.f32 %v727, %v734
        %v737 = vadd.f32 %v728, %v734
        %v738 = vadd.f32 %v729, %v734
        %v739 = vadd.f32 %v730, %v734
        %v740 = vadd.f32 %v731, %v734
        %v741 = vadd.f32 %v732, %v734
        %v742 = vadd.f32 %v733, %v734
        %v743 = vpack.c.bf16 %v736, %v735
        %v744 = vpack.c.bf16 %v738, %v737
        %v745 = vpack.c.bf16 %v740, %v739
        %v746 = vpack.c.bf16 %v742, %v741
        %v747 = vld [vmem:[%s3] sm:$0xff]
        %v748 = vld [vmem:[%s3 + $0x8] sm:$0xf]
        %v749 = vld [vmem:[%s3 + $0xc] sm:$0xff]
        %v750 = vld [vmem:[%s3 + $0x14] sm:$0xf]
        %v751 = vld [vmem:[%s3 + $0x18] sm:$0xff]
        %v752 = vld [vmem:[%s3 + $0x20] sm:$0xf]
        %v753 = vld [vmem:[%s3 + $0x24] sm:$0xff]
        %v754 = vld [vmem:[%s3 + $0x2c] sm:$0xf]
        %v755 = vld [vmem:[%s3 + $0x30] sm:$0xff]
        %v756 = vld [vmem:[%s3 + $0x38] sm:$0xf]
        %v757 = vld [vmem:[%s3 + $0x3c] sm:$0xff]
        %v758 = vld [vmem:[%s3 + $0x44] sm:$0xf]
        %v759 = vld [vmem:[%s3 + $0x48] sm:$0xff]
        %v760 = vld [vmem:[%s3 + $0x50] sm:$0xf]
        %v761 = vld [vmem:[%s3 + $0x54] sm:$0xff]
        %v762 = vld [vmem:[%s3 + $0x5c] sm:$0xf]
        %v763 = vld [vmem:[%s3 + $0x60] sm:$0xff]
        %v764 = vld [vmem:[%s3 + $0x68] sm:$0xf]
        %v765 = vld [vmem:[%s3 + $0x6c] sm:$0xff]
        %v766 = vld [vmem:[%s3 + $0x74] sm:$0xf]
        %v767 = vld [vmem:[%s3 + $0x78] sm:$0xff]
        %v768 = vld [vmem:[%s3 + $0x80] sm:$0xf]
        %v769 = vld [vmem:[%s3 + $0x84] sm:$0xff]
        %v770 = vld [vmem:[%s3 + $0x8c] sm:$0xf]
        %v771 = vld [vmem:[%s3 + $0x90] sm:$0xff]
        %v772 = vld [vmem:[%s3 + $0x98] sm:$0xf]
        %v773 = vld [vmem:[%s3 + $0x9c] sm:$0xff]
        %v774 = vld [vmem:[%s3 + $0xa4] sm:$0xf]
        %v775 = vld [vmem:[%s3 + $0xa8] sm:$0xff]
        %v776 = vld [vmem:[%s3 + $0xb0] sm:$0xf]
        %v777 = vld [vmem:[%s3 + $0xb4] sm:$0xff]
        %v778 = vld [vmem:[%s3 + $0xbc] sm:$0xf]
        %v779 = vld [vmem:[%s4] ss:$2 sm:$0x7]
        %v781 = vperm.slane %v779, 0
        %v782 = vperm.slane %v779, 1
        %v783 = vperm.slane %v779, 2
        %v819 = vunpack.c.l.b16 %v747
        %v820 = vunpack.c.h.b16 %v747
        %v821 = vunpack.c.l.b16 %v748
        %v822 = vunpack.c.l.b16 %v749
        %v823 = vunpack.c.h.b16 %v749
        %v824 = vunpack.c.l.b16 %v750
        %v825 = vunpack.c.l.b16 %v751
        %v826 = vunpack.c.h.b16 %v751
        %v827 = vunpack.c.l.b16 %v752
        %v828 = vunpack.c.l.b16 %v753
        %v829 = vunpack.c.h.b16 %v753
        %v830 = vunpack.c.l.b16 %v754
        %v831 = vunpack.c.l.b16 %v755
        %v832 = vunpack.c.h.b16 %v755
        %v833 = vunpack.c.l.b16 %v756
        %v834 = vunpack.c.l.b16 %v757
        %v835 = vunpack.c.h.b16 %v757
        %v836 = vunpack.c.l.b16 %v758
        %v837 = vunpack.c.l.b16 %v759
        %v838 = vunpack.c.h.b16 %v759
        %v839 = vunpack.c.l.b16 %v760
        %v840 = vunpack.c.l.b16 %v761
        %v841 = vunpack.c.h.b16 %v761
        %v842 = vunpack.c.l.b16 %v762
        %v843 = vunpack.c.l.b16 %v763
        %v844 = vunpack.c.h.b16 %v763
        %v845 = vunpack.c.l.b16 %v764
        %v846 = vunpack.c.l.b16 %v765
        %v847 = vunpack.c.h.b16 %v765
        %v848 = vunpack.c.l.b16 %v766
        %v849 = vunpack.c.l.b16 %v767
        %v850 = vunpack.c.h.b16 %v767
        %v851 = vunpack.c.l.b16 %v768
        %v852 = vunpack.c.l.b16 %v769
        %v853 = vunpack.c.h.b16 %v769
        %v854 = vunpack.c.l.b16 %v770
        %v855 = vunpack.c.l.b16 %v771
        %v856 = vunpack.c.h.b16 %v771
        %v857 = vunpack.c.l.b16 %v772
        %v858 = vunpack.c.l.b16 %v773
        %v859 = vunpack.c.h.b16 %v773
        %v860 = vunpack.c.l.b16 %v774
        %v861 = vunpack.c.l.b16 %v775
        %v862 = vunpack.c.h.b16 %v775
        %v863 = vunpack.c.l.b16 %v776
        %v864 = vunpack.c.l.b16 %v777
        %v865 = vunpack.c.h.b16 %v777
        %v866 = vunpack.c.l.b16 %v778
        %v867 = vpack.c.b16 %v822, %v819
        %v868 = vpack.c.b16 %v823, %v820
        %v869 = vpack.c.b16 %v824, %v821
        %v870 = vpack.c.b16 %v828, %v825
        %v871 = vpack.c.b16 %v829, %v826
        %v872 = vpack.c.b16 %v830, %v827
        %v873 = vpack.c.b16 %v834, %v831
        %v874 = vpack.c.b16 %v835, %v832
        %v875 = vpack.c.b16 %v836, %v833
        %v876 = vpack.c.b16 %v840, %v837
        %v877 = vpack.c.b16 %v841, %v838
        %v878 = vpack.c.b16 %v842, %v839
        %v879 = vpack.c.b16 %v846, %v843
        %v880 = vpack.c.b16 %v847, %v844
        %v881 = vpack.c.b16 %v848, %v845
        %v882 = vpack.c.b16 %v852, %v849
        %v883 = vpack.c.b16 %v853, %v850
        %v884 = vpack.c.b16 %v854, %v851
        %v885 = vpack.c.b16 %v858, %v855
        %v886 = vpack.c.b16 %v859, %v856
        %v887 = vpack.c.b16 %v860, %v857
        %v888 = vpack.c.b16 %v864, %v861
        %v889 = vpack.c.b16 %v865, %v862
        %v890 = vpack.c.b16 %v866, %v863
        %915 = vmatpush.bf16.msra.mxu0 %v888
        %916 = vmatpush.bf16.msra.mxu0 %v885
        %917 = vmatpush.bf16.msra.mxu0 %v882
        %918 = vmatpush.bf16.msra.mxu0 %v879
        %919 = vmatpush.bf16.msra.mxu0 %v876
        %920 = vmatpush.bf16.msra.mxu0 %v873
        %921 = vmatpush.bf16.msra.mxu0 %v870
        %922 = vmatpush.bf16.msra.mxu0 %v867
        %923 = vmatmul.bf16.gmra.mxu0 %v743
        %v924 = vpop.f32.mrf.mxu0
        %v925 = vadd.f32 %v781, %v924
        %v926 = vpop.f32.mrf.mxu0
        %v927 = vadd.f32 %v781, %v926
        %928 = vmatmul.bf16.gmra.mxu0 %v744
        %v929 = vpop.f32.mrf.mxu0
        %v930 = vadd.f32 %v781, %v929
        %v931 = vpop.f32.mrf.mxu0
        %v932 = vadd.f32 %v781, %v931
        %933 = vmatmul.bf16.gmra.mxu0 %v745
        %v934 = vpop.f32.mrf.mxu0
        %v935 = vadd.f32 %v781, %v934
        %v936 = vpop.f32.mrf.mxu0
        %v937 = vadd.f32 %v781, %v936
        %938 = vmatmul.bf16.gmra.mxu0 %v746
        %v939 = vpop.f32.mrf.mxu0
        %v940 = vadd.f32 %v781, %v939
        %v941 = vpop.f32.mrf.mxu0
        %v942 = vadd.f32 %v781, %v941
        %943 = vdwg.mxu0
        %944 = vmatpush.bf16.msra.mxu0 %v889
        %945 = vmatpush.bf16.msra.mxu0 %v886
        %946 = vmatpush.bf16.msra.mxu0 %v883
        %947 = vmatpush.bf16.msra.mxu0 %v880
        %948 = vmatpush.bf16.msra.mxu0 %v877
        %949 = vmatpush.bf16.msra.mxu0 %v874
        %950 = vmatpush.bf16.msra.mxu0 %v871
        %951 = vmatpush.bf16.msra.mxu0 %v868
        %952 = vmatmul.bf16.gmra.mxu0 %v743
        %v953 = vpop.f32.mrf.mxu0
        %v954 = vadd.f32 %v782, %v953
        %v955 = vpop.f32.mrf.mxu0
        %v956 = vadd.f32 %v782, %v955
        %957 = vmatmul.bf16.gmra.mxu0 %v744
        %v958 = vpop.f32.mrf.mxu0
        %v959 = vadd.f32 %v782, %v958
        %v960 = vpop.f32.mrf.mxu0
        %v961 = vadd.f32 %v782, %v960
        %962 = vmatmul.bf16.gmra.mxu0 %v745
        %v963 = vpop.f32.mrf.mxu0
        %v964 = vadd.f32 %v782, %v963
        %v965 = vpop.f32.mrf.mxu0
        %v966 = vadd.f32 %v782, %v965
        %967 = vmatmul.bf16.gmra.mxu0 %v746
        %v968 = vpop.f32.mrf.mxu0
        %v969 = vadd.f32 %v782, %v968
        %v970 = vpop.f32.mrf.mxu0
        %v971 = vadd.f32 %v782, %v970
        %972 = vdwg.mxu0
        %973 = vmatpush.bf16.msra.mxu0 %v890
        %974 = vmatpush.bf16.msra.mxu0 %v887
        %975 = vmatpush.bf16.msra.mxu0 %v884
        %976 = vmatpush.bf16.msra.mxu0 %v881
        %977 = vmatpush.bf16.msra.mxu0 %v878
        %978 = vmatpush.bf16.msra.mxu0 %v875
        %979 = vmatpush.bf16.msra.mxu0 %v872
        %980 = vmatpush.bf16.msra.mxu0 %v869
        %981 = vmatmul.bf16.gmra.mxu0 %v743
        %v982 = vpop.f32.mrf.mxu0
        %v983 = vadd.f32 %v783, %v982
        %v984 = vpop.f32.mrf.mxu0
        %v985 = vadd.f32 %v783, %v984
        %986 = vmatmul.bf16.gmra.mxu0 %v744
        %v987 = vpop.f32.mrf.mxu0
        %v988 = vadd.f32 %v783, %v987
        %v989 = vpop.f32.mrf.mxu0
        %v990 = vadd.f32 %v783, %v989
        %991 = vmatmul.bf16.gmra.mxu0 %v745
        %v992 = vpop.f32.mrf.mxu0
        %v993 = vadd.f32 %v783, %v992
        %v994 = vpop.f32.mrf.mxu0
        %v995 = vadd.f32 %v783, %v994
        %996 = vmatmul.bf16.gmra.mxu0 %v746
        %v997 = vpop.f32.mrf.mxu0
        %v998 = vadd.f32 %v783, %v997
        %v999 = vpop.f32.mrf.mxu0
        %v1000 = vadd.f32 %v783, %v999
        %1001 = vdwg.mxu0
        %v1002 = vpack.c.bf16 %v925, %v925
        %v1003 = vpack.c.bf16 %v927, %v927
        %v1004 = vpack.c.bf16 %v930, %v930
        %v1005 = vpack.c.bf16 %v932, %v932
        %v1006 = vpack.c.bf16 %v935, %v935
        %v1007 = vpack.c.bf16 %v937, %v937
        %v1008 = vpack.c.bf16 %v940, %v940
        %v1009 = vpack.c.bf16 %v942, %v942
        %v1010 = vpack.c.bf16 %v954, %v954
        %v1011 = vpack.c.bf16 %v956, %v956
        %v1012 = vpack.c.bf16 %v959, %v959
        %v1013 = vpack.c.bf16 %v961, %v961
        %v1014 = vpack.c.bf16 %v964, %v964
        %v1015 = vpack.c.bf16 %v966, %v966
        %v1016 = vpack.c.bf16 %v969, %v969
        %v1017 = vpack.c.bf16 %v971, %v971
        %v1018 = vpack.c.bf16 %v983, %v983
        %v1019 = vpack.c.bf16 %v985, %v985
        %v1020 = vpack.c.bf16 %v988, %v988
        %v1021 = vpack.c.bf16 %v990, %v990
        %v1022 = vpack.c.bf16 %v993, %v993
        %v1023 = vpack.c.bf16 %v995, %v995
        %v1024 = vpack.c.bf16 %v998, %v998
        %v1025 = vpack.c.bf16 %v1000, %v1000
        %v1026 = vld [vmem:[%s5] sm:$0xf]
        %v1027 = vld [vmem:[%s5 + $0x4] sm:$0xf]
        %v1028 = vld [vmem:[%s5 + $0x8] sm:$0xf]
        %v1029 = vld [vmem:[%s5 + $0xc] sm:$0xf]
        %v1030 = vld [vmem:[%s5 + $0x10] sm:$0xf]
        %v1031 = vld [vmem:[%s5 + $0x14] sm:$0xf]
        %v1032 = vld [vmem:[%s5 + $0x18] sm:$0xf]
        %v1033 = vld [vmem:[%s5 + $0x1c] sm:$0xf]
        %v1034 = vld [vmem:[%s5 + $0x20] sm:$0xf]
        %v1035 = vld [vmem:[%s5 + $0x24] sm:$0xf]
        %v1036 = vld [vmem:[%s5 + $0x28] sm:$0xf]
        %v1037 = vld [vmem:[%s5 + $0x2c] sm:$0xf]
        %v1038 = vld [vmem:[%s5 + $0x30] sm:$0xf]
        %v1039 = vld [vmem:[%s5 + $0x34] sm:$0xf]
        %v1040 = vld [vmem:[%s5 + $0x38] sm:$0xf]
        %v1041 = vld [vmem:[%s5 + $0x3c] sm:$0xf]
        %v1050 = vunpack.c.l.b16 %v1002
        %v1051 = vunpack.c.l.b16 %v1003
        %v1052 = vunpack.c.l.b16 %v1004
        %v1053 = vunpack.c.l.b16 %v1005
        %v1054 = vunpack.c.l.b16 %v1006
        %v1055 = vunpack.c.l.b16 %v1007
        %v1056 = vunpack.c.l.b16 %v1008
        %v1057 = vunpack.c.l.b16 %v1009
        %v1058 = vpack.c.b16 %v1051, %v1050
        %v1059 = vpack.c.b16 %v1053, %v1052
        %v1060 = vpack.c.b16 %v1055, %v1054
        %v1061 = vpack.c.b16 %v1057, %v1056
        %v1070 = vunpack.c.l.b16 %v1010
        %v1071 = vunpack.c.l.b16 %v1011
        %v1072 = vunpack.c.l.b16 %v1012
        %v1073 = vunpack.c.l.b16 %v1013
        %v1074 = vunpack.c.l.b16 %v1014
        %v1075 = vunpack.c.l.b16 %v1015
        %v1076 = vunpack.c.l.b16 %v1016
        %v1077 = vunpack.c.l.b16 %v1017
        %v1078 = vpack.c.b16 %v1071, %v1070
        %v1079 = vpack.c.b16 %v1073, %v1072
        %v1080 = vpack.c.b16 %v1075, %v1074
        %v1081 = vpack.c.b16 %v1077, %v1076
        %vm1082 = vcmask 261120
        %v1084 = vsel %vm1082, %v1058, 0
        %v1087 = vsel %vm1082, %v1059, 0
        %v1090 = vsel %vm1082, %v1060, 0
        %v1093 = vsel %vm1082, %v1061, 0
        %v1096 = vsel %vm1082, %v1078, 0
        %v1099 = vsel %vm1082, %v1079, 0
        %v1102 = vsel %vm1082, %v1080, 0
        %v1105 = vsel %vm1082, %v1081, 0
        %1107 = vmatpush.bf16.xpose.msra.mxu0 0
        %1108 = vmatpush.bf16.xpose.msra.mxu0 0
        %1109 = vmatpush.bf16.xpose.msra.mxu0 0
        %1110 = vmatpush.bf16.xpose.msra.mxu0 0
        %1111 = vmatpush.bf16.xpose.msra.mxu0 %v1105
        %1112 = vmatpush.bf16.xpose.msra.mxu0 %v1102
        %1113 = vmatpush.bf16.xpose.msra.mxu0 %v1099
        %1114 = vmatpush.bf16.xpose.msra.mxu0 %v1096
        %1115 = vmatmul.bf16.gmra.mxu0 %v1084
        %v1116 = vpop.f32.mrf.mxu0
        %v1117 = vadd.f32 0.0, %v1116
        %v1118 = vpop.f32.mrf.mxu0
        %v1119 = vadd.f32 0.0, %v1118
        %1120 = vmatmul.bf16.gmra.mxu0 %v1087
        %v1121 = vpop.f32.mrf.mxu0
        %v1122 = vadd.f32 0.0, %v1121
        %v1123 = vpop.f32.mrf.mxu0
        %v1124 = vadd.f32 0.0, %v1123
        %1125 = vmatmul.bf16.gmra.mxu0 %v1090
        %v1126 = vpop.f32.mrf.mxu0
        %v1127 = vadd.f32 0.0, %v1126
        %v1128 = vpop.f32.mrf.mxu0
        %v1129 = vadd.f32 0.0, %v1128
        %1130 = vmatmul.bf16.gmra.mxu0 %v1093
        %v1131 = vpop.f32.mrf.mxu0
        %v1132 = vadd.f32 0.0, %v1131
        %v1133 = vpop.f32.mrf.mxu0
        %v1134 = vadd.f32 0.0, %v1133
        %1135 = vdwg.mxu0
        %v1136 = vmul.f32 %v1117, 0.17677669
        %v1137 = vmul.f32 %v1119, 0.17677669
        %v1138 = vmul.f32 %v1122, 0.17677669
        %v1139 = vmul.f32 %v1124, 0.17677669
        %v1140 = vmul.f32 %v1127, 0.17677669
        %v1141 = vmul.f32 %v1129, 0.17677669
        %v1142 = vmul.f32 %v1132, 0.17677669
        %v1143 = vmul.f32 %v1134, 0.17677669
        %vm1144 = vcmask 523264
        %v1145 = vsel %vm1144, %v1136, -inf
        %1146 = vmax.xlane.f32.xlu0 %v1145
        %v1147 = vpop.xlane.xlu0 %1146
        %v1148 = vsel %vm1144, %v1137, -inf
        %1149 = vmax.xlane.f32.xlu0 %v1148
        %v1150 = vpop.xlane.xlu0 %1149
        %v1151 = vsel %vm1144, %v1138, -inf
        %1152 = vmax.xlane.f32.xlu0 %v1151
        %v1153 = vpop.xlane.xlu0 %1152
        %v1154 = vsel %vm1144, %v1139, -inf
        %1155 = vmax.xlane.f32.xlu0 %v1154
        %v1156 = vpop.xlane.xlu0 %1155
        %v1157 = vsel %vm1144, %v1140, -inf
        %1158 = vmax.xlane.f32.xlu0 %v1157
        %v1159 = vpop.xlane.xlu0 %1158
        %v1160 = vsel %vm1144, %v1141, -inf
        %1161 = vmax.xlane.f32.xlu0 %v1160
        %v1162 = vpop.xlane.xlu0 %1161
        %v1163 = vsel %vm1144, %v1142, -inf
        %1164 = vmax.xlane.f32.xlu0 %v1163
        %v1165 = vpop.xlane.xlu0 %1164
        %v1166 = vsel %vm1144, %v1143, -inf
        %1167 = vmax.xlane.f32.xlu0 %v1166
        %v1168 = vpop.xlane.xlu0 %1167
        %v1169 = vsub.f32 %v1136, %v1147
        %v1170 = vsub.f32 %v1137, %v1150
        %v1171 = vsub.f32 %v1138, %v1153
        %v1172 = vsub.f32 %v1139, %v1156
        %v1173 = vsub.f32 %v1140, %v1159
        %v1174 = vsub.f32 %v1141, %v1162
        %v1175 = vsub.f32 %v1142, %v1165
        %v1176 = vsub.f32 %v1143, %v1168
        %v1177 = vmul.f32 %v1169, 1.442695
        %v1178 = vpow.pop %v1177
        %v1179 = vmul.f32 %v1170, 1.442695
        %v1180 = vpow.pop %v1179
        %v1181 = vmul.f32 %v1171, 1.442695
        %v1182 = vpow.pop %v1181
        %v1183 = vmul.f32 %v1172, 1.442695
        %v1184 = vpow.pop %v1183
        %v1185 = vmul.f32 %v1173, 1.442695
        %v1186 = vpow.pop %v1185
        %v1187 = vmul.f32 %v1174, 1.442695
        %v1188 = vpow.pop %v1187
        %v1189 = vmul.f32 %v1175, 1.442695
        %v1190 = vpow.pop %v1189
        %v1191 = vmul.f32 %v1176, 1.442695
        %v1192 = vpow.pop %v1191
        %v1193 = vsel %vm1144, %v1178, 0.0
        %1194 = vadd.xlane.f32.xlu0 %v1193
        %v1195 = vpop.xlane.xlu0 %1194
        %v1196 = vsel %vm1144, %v1180, 0.0
        %1197 = vadd.xlane.f32.xlu0 %v1196
        %v1198 = vpop.xlane.xlu0 %1197
        %v1199 = vsel %vm1144, %v1182, 0.0
        %1200 = vadd.xlane.f32.xlu0 %v1199
        %v1201 = vpop.xlane.xlu0 %1200
        %v1202 = vsel %vm1144, %v1184, 0.0
        %1203 = vadd.xlane.f32.xlu0 %v1202
        %v1204 = vpop.xlane.xlu0 %1203
        %v1205 = vsel %vm1144, %v1186, 0.0
        %1206 = vadd.xlane.f32.xlu0 %v1205
        %v1207 = vpop.xlane.xlu0 %1206
        %v1208 = vsel %vm1144, %v1188, 0.0
        %1209 = vadd.xlane.f32.xlu0 %v1208
        %v1210 = vpop.xlane.xlu0 %1209
        %v1211 = vsel %vm1144, %v1190, 0.0
        %1212 = vadd.xlane.f32.xlu0 %v1211
        %v1213 = vpop.xlane.xlu0 %1212
        %v1214 = vsel %vm1144, %v1192, 0.0
        %1215 = vadd.xlane.f32.xlu0 %v1214
        %v1216 = vpop.xlane.xlu0 %1215
        %v1217 = vrcp.pop %v1195
        %v1218 = vrcp.pop %v1198
        %v1219 = vrcp.pop %v1201
        %v1220 = vrcp.pop %v1204
        %v1221 = vrcp.pop %v1207
        %v1222 = vrcp.pop %v1210
        %v1223 = vrcp.pop %v1213
        %v1224 = vrcp.pop %v1216
        %v1225 = vmul.f32 %v1178, %v1217
        %v1226 = vmul.f32 %v1180, %v1218
        %v1227 = vmul.f32 %v1182, %v1219
        %v1228 = vmul.f32 %v1184, %v1220
        %v1229 = vmul.f32 %v1186, %v1221
        %v1230 = vmul.f32 %v1188, %v1222
        %v1231 = vmul.f32 %v1190, %v1223
        %v1232 = vmul.f32 %v1192, %v1224
        %v1233 = vpack.c.bf16 %v1226, %v1225
        %v1234 = vpack.c.bf16 %v1228, %v1227
        %v1235 = vpack.c.bf16 %v1230, %v1229
        %v1236 = vpack.c.bf16 %v1232, %v1231
        %v1245 = vunpack.c.l.b16 %v1018
        %v1246 = vunpack.c.l.b16 %v1019
        %v1247 = vunpack.c.l.b16 %v1020
        %v1248 = vunpack.c.l.b16 %v1021
        %v1249 = vunpack.c.l.b16 %v1022
        %v1250 = vunpack.c.l.b16 %v1023
        %v1251 = vunpack.c.l.b16 %v1024
        %v1252 = vunpack.c.l.b16 %v1025
        %v1253 = vpack.c.b16 %v1246, %v1245
        %v1254 = vpack.c.b16 %v1248, %v1247
        %v1255 = vpack.c.b16 %v1250, %v1249
        %v1256 = vpack.c.b16 %v1252, %v1251
        %v1262 = vsel %vm1144, %v1233, 0
        %v1265 = vsel %vm1144, %v1234, 0
        %v1268 = vsel %vm1144, %v1235, 0
        %v1271 = vsel %vm1144, %v1236, 0
        %1273 = vmatpush.bf16.msra.mxu0 0
        %1274 = vmatpush.bf16.msra.mxu0 0
        %1275 = vmatpush.bf16.msra.mxu0 0
        %1276 = vmatpush.bf16.msra.mxu0 0
        %1277 = vmatpush.bf16.msra.mxu0 %v1256
        %1278 = vmatpush.bf16.msra.mxu0 %v1255
        %1279 = vmatpush.bf16.msra.mxu0 %v1254
        %1280 = vmatpush.bf16.msra.mxu0 %v1253
        %1281 = vmatmul.bf16.gmra.mxu0 %v1262
        %v1282 = vpop.f32.mrf.mxu0
        %v1283 = vadd.f32 0.0, %v1282
        %v1284 = vpop.f32.mrf.mxu0
        %v1285 = vadd.f32 0.0, %v1284
        %1286 = vmatmul.bf16.gmra.mxu0 %v1265
        %v1287 = vpop.f32.mrf.mxu0
        %v1288 = vadd.f32 0.0, %v1287
        %v1289 = vpop.f32.mrf.mxu0
        %v1290 = vadd.f32 0.0, %v1289
        %1291 = vmatmul.bf16.gmra.mxu0 %v1268
        %v1292 = vpop.f32.mrf.mxu0
        %v1293 = vadd.f32 0.0, %v1292
        %v1294 = vpop.f32.mrf.mxu0
        %v1295 = vadd.f32 0.0, %v1294
        %1296 = vmatmul.bf16.gmra.mxu0 %v1271
        %v1297 = vpop.f32.mrf.mxu0
        %v1298 = vadd.f32 0.0, %v1297
        %v1299 = vpop.f32.mrf.mxu0
        %v1300 = vadd.f32 0.0, %v1299
        %1301 = vdwg.mxu0
        %v1302 = vpack.c.bf16 %v1285, %v1283
        %v1303 = vpack.c.bf16 %v1290, %v1288
        %v1304 = vpack.c.bf16 %v1295, %v1293
        %v1305 = vpack.c.bf16 %v1300, %v1298
        %1306 = vrot.lane.b32.xlu0 %v1058, 96
        %v1307 = vpop.permute.xlu0 %1306
        %1308 = vrot.lane.b32.xlu0 %v1059, 96
        %v1309 = vpop.permute.xlu0 %1308
        %1310 = vrot.lane.b32.xlu0 %v1060, 96
        %v1311 = vpop.permute.xlu0 %1310
        %1312 = vrot.lane.b32.xlu0 %v1061, 96
        %v1313 = vpop.permute.xlu0 %1312
        %1314 = vrot.lane.b32.xlu0 %v1078, 96
        %v1315 = vpop.permute.xlu0 %1314
        %1316 = vrot.lane.b32.xlu0 %v1079, 96
        %v1317 = vpop.permute.xlu0 %1316
        %1318 = vrot.lane.b32.xlu0 %v1080, 96
        %v1319 = vpop.permute.xlu0 %1318
        %1320 = vrot.lane.b32.xlu0 %v1081, 96
        %v1321 = vpop.permute.xlu0 %1320
        %v1323 = vsel %vm1082, %v1307, 0
        %v1326 = vsel %vm1082, %v1309, 0
        %v1329 = vsel %vm1082, %v1311, 0
        %v1332 = vsel %vm1082, %v1313, 0
        %v1335 = vsel %vm1082, %v1315, 0
        %v1338 = vsel %vm1082, %v1317, 0
        %v1341 = vsel %vm1082, %v1319, 0
        %v1344 = vsel %vm1082, %v1321, 0
        %1346 = vmatpush.bf16.xpose.msra.mxu0 0
        %1347 = vmatpush.bf16.xpose.msra.mxu0 0
        %1348 = vmatpush.bf16.xpose.msra.mxu0 0
        %1349 = vmatpush.bf16.xpose.msra.mxu0 0
        %1350 = vmatpush.bf16.xpose.msra.mxu0 %v1344
        %1351 = vmatpush.bf16.xpose.msra.mxu0 %v1341
        %1352 = vmatpush.bf16.xpose.msra.mxu0 %v1338
        %1353 = vmatpush.bf16.xpose.msra.mxu0 %v1335
        %1354 = vmatmul.bf16.gmra.mxu0 %v1323
        %v1355 = vpop.f32.mrf.mxu0
        %v1356 = vadd.f32 0.0, %v1355
        %v1357 = vpop.f32.mrf.mxu0
        %v1358 = vadd.f32 0.0, %v1357
        %1359 = vmatmul.bf16.gmra.mxu0 %v1326
        %v1360 = vpop.f32.mrf.mxu0
        %v1361 = vadd.f32 0.0, %v1360
        %v1362 = vpop.f32.mrf.mxu0
        %v1363 = vadd.f32 0.0, %v1362
        %1364 = vmatmul.bf16.gmra.mxu0 %v1329
        %v1365 = vpop.f32.mrf.mxu0
        %v1366 = vadd.f32 0.0, %v1365
        %v1367 = vpop.f32.mrf.mxu0
        %v1368 = vadd.f32 0.0, %v1367
        %1369 = vmatmul.bf16.gmra.mxu0 %v1332
        %v1370 = vpop.f32.mrf.mxu0
        %v1371 = vadd.f32 0.0, %v1370
        %v1372 = vpop.f32.mrf.mxu0
        %v1373 = vadd.f32 0.0, %v1372
        %1374 = vdwg.mxu0
        %v1375 = vmul.f32 %v1356, 0.17677669
        %v1376 = vmul.f32 %v1358, 0.17677669
        %v1377 = vmul.f32 %v1361, 0.17677669
        %v1378 = vmul.f32 %v1363, 0.17677669
        %v1379 = vmul.f32 %v1366, 0.17677669
        %v1380 = vmul.f32 %v1368, 0.17677669
        %v1381 = vmul.f32 %v1371, 0.17677669
        %v1382 = vmul.f32 %v1373, 0.17677669
        %v1383 = vsel %vm1144, %v1375, -inf
        %1384 = vmax.xlane.f32.xlu0 %v1383
        %v1385 = vpop.xlane.xlu0 %1384
        %v1386 = vsel %vm1144, %v1376, -inf
        %1387 = vmax.xlane.f32.xlu0 %v1386
        %v1388 = vpop.xlane.xlu0 %1387
        %v1389 = vsel %vm1144, %v1377, -inf
        %1390 = vmax.xlane.f32.xlu0 %v1389
        %v1391 = vpop.xlane.xlu0 %1390
        %v1392 = vsel %vm1144, %v1378, -inf
        %1393 = vmax.xlane.f32.xlu0 %v1392
        %v1394 = vpop.xlane.xlu0 %1393
        %v1395 = vsel %vm1144, %v1379, -inf
        %1396 = vmax.xlane.f32.xlu0 %v1395
        %v1397 = vpop.xlane.xlu0 %1396
        %v1398 = vsel %vm1144, %v1380, -inf
        %1399 = vmax.xlane.f32.xlu0 %v1398
        %v1400 = vpop.xlane.xlu0 %1399
        %v1401 = vsel %vm1144, %v1381, -inf
        %1402 = vmax.xlane.f32.xlu0 %v1401
        %v1403 = vpop.xlane.xlu0 %1402
        %v1404 = vsel %vm1144, %v1382, -inf
        %1405 = vmax.xlane.f32.xlu0 %v1404
        %v1406 = vpop.xlane.xlu0 %1405
        %v1407 = vsub.f32 %v1375, %v1385
        %v1408 = vsub.f32 %v1376, %v1388
        %v1409 = vsub.f32 %v1377, %v1391
        %v1410 = vsub.f32 %v1378, %v1394
        %v1411 = vsub.f32 %v1379, %v1397
        %v1412 = vsub.f32 %v1380, %v1400
        %v1413 = vsub.f32 %v1381, %v1403
        %v1414 = vsub.f32 %v1382, %v1406
        %v1415 = vmul.f32 %v1407, 1.442695
        %v1416 = vpow.pop %v1415
        %v1417 = vmul.f32 %v1408, 1.442695
        %v1418 = vpow.pop %v1417
        %v1419 = vmul.f32 %v1409, 1.442695
        %v1420 = vpow.pop %v1419
        %v1421 = vmul.f32 %v1410, 1.442695
        %v1422 = vpow.pop %v1421
        %v1423 = vmul.f32 %v1411, 1.442695
        %v1424 = vpow.pop %v1423
        %v1425 = vmul.f32 %v1412, 1.442695
        %v1426 = vpow.pop %v1425
        %v1427 = vmul.f32 %v1413, 1.442695
        %v1428 = vpow.pop %v1427
        %v1429 = vmul.f32 %v1414, 1.442695
        %v1430 = vpow.pop %v1429
        %v1431 = vsel %vm1144, %v1416, 0.0
        %1432 = vadd.xlane.f32.xlu0 %v1431
        %v1433 = vpop.xlane.xlu0 %1432
        %v1434 = vsel %vm1144, %v1418, 0.0
        %1435 = vadd.xlane.f32.xlu0 %v1434
        %v1436 = vpop.xlane.xlu0 %1435
        %v1437 = vsel %vm1144, %v1420, 0.0
        %1438 = vadd.xlane.f32.xlu0 %v1437
        %v1439 = vpop.xlane.xlu0 %1438
        %v1440 = vsel %vm1144, %v1422, 0.0
        %1441 = vadd.xlane.f32.xlu0 %v1440
        %v1442 = vpop.xlane.xlu0 %1441
        %v1443 = vsel %vm1144, %v1424, 0.0
        %1444 = vadd.xlane.f32.xlu0 %v1443
        %v1445 = vpop.xlane.xlu0 %1444
        %v1446 = vsel %vm1144, %v1426, 0.0
        %1447 = vadd.xlane.f32.xlu0 %v1446
        %v1448 = vpop.xlane.xlu0 %1447
        %v1449 = vsel %vm1144, %v1428, 0.0
        %1450 = vadd.xlane.f32.xlu0 %v1449
        %v1451 = vpop.xlane.xlu0 %1450
        %v1452 = vsel %vm1144, %v1430, 0.0
        %1453 = vadd.xlane.f32.xlu0 %v1452
        %v1454 = vpop.xlane.xlu0 %1453
        %v1455 = vrcp.pop %v1433
        %v1456 = vrcp.pop %v1436
        %v1457 = vrcp.pop %v1439
        %v1458 = vrcp.pop %v1442
        %v1459 = vrcp.pop %v1445
        %v1460 = vrcp.pop %v1448
        %v1461 = vrcp.pop %v1451
        %v1462 = vrcp.pop %v1454
        %v1463 = vmul.f32 %v1416, %v1455
        %v1464 = vmul.f32 %v1418, %v1456
        %v1465 = vmul.f32 %v1420, %v1457
        %v1466 = vmul.f32 %v1422, %v1458
        %v1467 = vmul.f32 %v1424, %v1459
        %v1468 = vmul.f32 %v1426, %v1460
        %v1469 = vmul.f32 %v1428, %v1461
        %v1470 = vmul.f32 %v1430, %v1462
        %v1471 = vpack.c.bf16 %v1464, %v1463
        %v1472 = vpack.c.bf16 %v1466, %v1465
        %v1473 = vpack.c.bf16 %v1468, %v1467
        %v1474 = vpack.c.bf16 %v1470, %v1469
        %1475 = vrot.lane.b32.xlu0 %v1253, 96
        %v1476 = vpop.permute.xlu0 %1475
        %1477 = vrot.lane.b32.xlu0 %v1254, 96
        %v1478 = vpop.permute.xlu0 %1477
        %1479 = vrot.lane.b32.xlu0 %v1255, 96
        %v1480 = vpop.permute.xlu0 %1479
        %1481 = vrot.lane.b32.xlu0 %v1256, 96
        %v1482 = vpop.permute.xlu0 %1481
        %v1488 = vsel %vm1144, %v1471, 0
        %v1491 = vsel %vm1144, %v1472, 0
        %v1494 = vsel %vm1144, %v1473, 0
        %v1497 = vsel %vm1144, %v1474, 0
        %1499 = vmatpush.bf16.msra.mxu0 0
        %1500 = vmatpush.bf16.msra.mxu0 0
        %1501 = vmatpush.bf16.msra.mxu0 0
        %1502 = vmatpush.bf16.msra.mxu0 0
        %1503 = vmatpush.bf16.msra.mxu0 %v1482
        %1504 = vmatpush.bf16.msra.mxu0 %v1480
        %1505 = vmatpush.bf16.msra.mxu0 %v1478
        %1506 = vmatpush.bf16.msra.mxu0 %v1476
        %1507 = vmatmul.bf16.gmra.mxu0 %v1488
        %v1508 = vpop.f32.mrf.mxu0
        %v1509 = vadd.f32 0.0, %v1508
        %v1510 = vpop.f32.mrf.mxu0
        %v1511 = vadd.f32 0.0, %v1510
        %1512 = vmatmul.bf16.gmra.mxu0 %v1491
        %v1513 = vpop.f32.mrf.mxu0
        %v1514 = vadd.f32 0.0, %v1513
        %v1515 = vpop.f32.mrf.mxu0
        %v1516 = vadd.f32 0.0, %v1515
        %1517 = vmatmul.bf16.gmra.mxu0 %v1494
        %v1518 = vpop.f32.mrf.mxu0
        %v1519 = vadd.f32 0.0, %v1518
        %v1520 = vpop.f32.mrf.mxu0
        %v1521 = vadd.f32 0.0, %v1520
        %1522 = vmatmul.bf16.gmra.mxu0 %v1497
        %v1523 = vpop.f32.mrf.mxu0
        %v1524 = vadd.f32 0.0, %v1523
        %v1525 = vpop.f32.mrf.mxu0
        %v1526 = vadd.f32 0.0, %v1525
        %1527 = vdwg.mxu0
        %v1528 = vpack.c.bf16 %v1511, %v1509
        %v1529 = vpack.c.bf16 %v1516, %v1514
        %v1530 = vpack.c.bf16 %v1521, %v1519
        %v1531 = vpack.c.bf16 %v1526, %v1524
        %v1536 = vunpack.c.l.b16 %v1030
        %v1537 = vunpack.c.l.b16 %v1031
        %v1538 = vunpack.c.l.b16 %v1032
        %v1539 = vunpack.c.l.b16 %v1033
        %v1540 = vpack.c.b16 %v1537, %v1536
        %v1541 = vpack.c.b16 %v1539, %v1538
        %v1545 = vsel %vm1082, %v1528, 0
        %v1548 = vsel %vm1082, %v1529, 0
        %v1551 = vsel %vm1082, %v1530, 0
        %v1554 = vsel %vm1082, %v1531, 0
        %1556 = vmatpush.bf16.msra.mxu0 0
        %1557 = vmatpush.bf16.msra.mxu0 0
        %1558 = vmatpush.bf16.msra.mxu0 0
        %1559 = vmatpush.bf16.msra.mxu0 0
        %1560 = vmatpush.bf16.msra.mxu0 0
        %1561 = vmatpush.bf16.msra.mxu0 0
        %1562 = vmatpush.bf16.msra.mxu0 %v1541
        %1563 = vmatpush.bf16.msra.mxu0 %v1540
        %1564 = vmatmul.bf16.gmra.mxu0 %v1545
        %v1565 = vpop.f32.mrf.mxu0
        %v1566 = vadd.f32 0.0, %v1565
        %v1567 = vpop.f32.mrf.mxu0
        %v1568 = vadd.f32 0.0, %v1567
        %1569 = vmatmul.bf16.gmra.mxu0 %v1548
        %v1570 = vpop.f32.mrf.mxu0
        %v1571 = vadd.f32 0.0, %v1570
        %v1572 = vpop.f32.mrf.mxu0
        %v1573 = vadd.f32 0.0, %v1572
        %1574 = vmatmul.bf16.gmra.mxu0 %v1551
        %v1575 = vpop.f32.mrf.mxu0
        %v1576 = vadd.f32 0.0, %v1575
        %v1577 = vpop.f32.mrf.mxu0
        %v1578 = vadd.f32 0.0, %v1577
        %1579 = vmatmul.bf16.gmra.mxu0 %v1554
        %v1580 = vpop.f32.mrf.mxu0
        %v1581 = vadd.f32 0.0, %v1580
        %v1582 = vpop.f32.mrf.mxu0
        %v1583 = vadd.f32 0.0, %v1582
        %1584 = vdwg.mxu0
        %v1589 = vunpack.c.l.b16 %v1026
        %v1590 = vunpack.c.l.b16 %v1027
        %v1591 = vunpack.c.l.b16 %v1028
        %v1592 = vunpack.c.l.b16 %v1029
        %v1593 = vpack.c.b16 %v1590, %v1589
        %v1594 = vpack.c.b16 %v1592, %v1591
        %v1598 = vsel %vm1082, %v1302, 0
        %v1601 = vsel %vm1082, %v1303, 0
        %v1604 = vsel %vm1082, %v1304, 0
        %v1607 = vsel %vm1082, %v1305, 0
        %1609 = vmatpush.bf16.msra.mxu0 0
        %1610 = vmatpush.bf16.msra.mxu0 0
        %1611 = vmatpush.bf16.msra.mxu0 0
        %1612 = vmatpush.bf16.msra.mxu0 0
        %1613 = vmatpush.bf16.msra.mxu0 0
        %1614 = vmatpush.bf16.msra.mxu0 0
        %1615 = vmatpush.bf16.msra.mxu0 %v1594
        %1616 = vmatpush.bf16.msra.mxu0 %v1593
        %1617 = vmatmul.bf16.gmra.mxu0 %v1598
        %v1618 = vpop.f32.mrf.mxu0
        %v1619 = vadd.f32 %v1566, %v1618
        %v1620 = vpop.f32.mrf.mxu0
        %v1621 = vadd.f32 %v1568, %v1620
        %1622 = vmatmul.bf16.gmra.mxu0 %v1601
        %v1623 = vpop.f32.mrf.mxu0
        %v1624 = vadd.f32 %v1571, %v1623
        %v1625 = vpop.f32.mrf.mxu0
        %v1626 = vadd.f32 %v1573, %v1625
        %1627 = vmatmul.bf16.gmra.mxu0 %v1604
        %v1628 = vpop.f32.mrf.mxu0
        %v1629 = vadd.f32 %v1576, %v1628
        %v1630 = vpop.f32.mrf.mxu0
        %v1631 = vadd.f32 %v1578, %v1630
        %1632 = vmatmul.bf16.gmra.mxu0 %v1607
        %v1633 = vpop.f32.mrf.mxu0
        %v1634 = vadd.f32 %v1581, %v1633
        %v1635 = vpop.f32.mrf.mxu0
        %v1636 = vadd.f32 %v1583, %v1635
        %1637 = vdwg.mxu0
        %1638 = vrot.lane.b32.xlu0 %v1058, 64
        %v1639 = vpop.permute.xlu0 %1638
        %1640 = vrot.lane.b32.xlu0 %v1059, 64
        %v1641 = vpop.permute.xlu0 %1640
        %1642 = vrot.lane.b32.xlu0 %v1060, 64
        %v1643 = vpop.permute.xlu0 %1642
        %1644 = vrot.lane.b32.xlu0 %v1061, 64
        %v1645 = vpop.permute.xlu0 %1644
        %1646 = vrot.lane.b32.xlu0 %v1078, 64
        %v1647 = vpop.permute.xlu0 %1646
        %1648 = vrot.lane.b32.xlu0 %v1079, 64
        %v1649 = vpop.permute.xlu0 %1648
        %1650 = vrot.lane.b32.xlu0 %v1080, 64
        %v1651 = vpop.permute.xlu0 %1650
        %1652 = vrot.lane.b32.xlu0 %v1081, 64
        %v1653 = vpop.permute.xlu0 %1652
        %v1655 = vsel %vm1082, %v1639, 0
        %v1658 = vsel %vm1082, %v1641, 0
        %v1661 = vsel %vm1082, %v1643, 0
        %v1664 = vsel %vm1082, %v1645, 0
        %v1667 = vsel %vm1082, %v1647, 0
        %v1670 = vsel %vm1082, %v1649, 0
        %v1673 = vsel %vm1082, %v1651, 0
        %v1676 = vsel %vm1082, %v1653, 0
        %1678 = vmatpush.bf16.xpose.msra.mxu0 0
        %1679 = vmatpush.bf16.xpose.msra.mxu0 0
        %1680 = vmatpush.bf16.xpose.msra.mxu0 0
        %1681 = vmatpush.bf16.xpose.msra.mxu0 0
        %1682 = vmatpush.bf16.xpose.msra.mxu0 %v1676
        %1683 = vmatpush.bf16.xpose.msra.mxu0 %v1673
        %1684 = vmatpush.bf16.xpose.msra.mxu0 %v1670
        %1685 = vmatpush.bf16.xpose.msra.mxu0 %v1667
        %1686 = vmatmul.bf16.gmra.mxu0 %v1655
        %v1687 = vpop.f32.mrf.mxu0
        %v1688 = vadd.f32 0.0, %v1687
        %v1689 = vpop.f32.mrf.mxu0
        %v1690 = vadd.f32 0.0, %v1689
        %1691 = vmatmul.bf16.gmra.mxu0 %v1658
        %v1692 = vpop.f32.mrf.mxu0
        %v1693 = vadd.f32 0.0, %v1692
        %v1694 = vpop.f32.mrf.mxu0
        %v1695 = vadd.f32 0.0, %v1694
        %1696 = vmatmul.bf16.gmra.mxu0 %v1661
        %v1697 = vpop.f32.mrf.mxu0
        %v1698 = vadd.f32 0.0, %v1697
        %v1699 = vpop.f32.mrf.mxu0
        %v1700 = vadd.f32 0.0, %v1699
        %1701 = vmatmul.bf16.gmra.mxu0 %v1664
        %v1702 = vpop.f32.mrf.mxu0
        %v1703 = vadd.f32 0.0, %v1702
        %v1704 = vpop.f32.mrf.mxu0
        %v1705 = vadd.f32 0.0, %v1704
        %1706 = vdwg.mxu0
        %v1707 = vmul.f32 %v1688, 0.17677669
        %v1708 = vmul.f32 %v1690, 0.17677669
        %v1709 = vmul.f32 %v1693, 0.17677669
        %v1710 = vmul.f32 %v1695, 0.17677669
        %v1711 = vmul.f32 %v1698, 0.17677669
        %v1712 = vmul.f32 %v1700, 0.17677669
        %v1713 = vmul.f32 %v1703, 0.17677669
        %v1714 = vmul.f32 %v1705, 0.17677669
        %v1715 = vsel %vm1144, %v1707, -inf
        %1716 = vmax.xlane.f32.xlu0 %v1715
        %v1717 = vpop.xlane.xlu0 %1716
        %v1718 = vsel %vm1144, %v1708, -inf
        %1719 = vmax.xlane.f32.xlu0 %v1718
        %v1720 = vpop.xlane.xlu0 %1719
        %v1721 = vsel %vm1144, %v1709, -inf
        %1722 = vmax.xlane.f32.xlu0 %v1721
        %v1723 = vpop.xlane.xlu0 %1722
        %v1724 = vsel %vm1144, %v1710, -inf
        %1725 = vmax.xlane.f32.xlu0 %v1724
        %v1726 = vpop.xlane.xlu0 %1725
        %v1727 = vsel %vm1144, %v1711, -inf
        %1728 = vmax.xlane.f32.xlu0 %v1727
        %v1729 = vpop.xlane.xlu0 %1728
        %v1730 = vsel %vm1144, %v1712, -inf
        %1731 = vmax.xlane.f32.xlu0 %v1730
        %v1732 = vpop.xlane.xlu0 %1731
        %v1733 = vsel %vm1144, %v1713, -inf
        %1734 = vmax.xlane.f32.xlu0 %v1733
        %v1735 = vpop.xlane.xlu0 %1734
        %v1736 = vsel %vm1144, %v1714, -inf
        %1737 = vmax.xlane.f32.xlu0 %v1736
        %v1738 = vpop.xlane.xlu0 %1737
        %v1739 = vsub.f32 %v1707, %v1717
        %v1740 = vsub.f32 %v1708, %v1720
        %v1741 = vsub.f32 %v1709, %v1723
        %v1742 = vsub.f32 %v1710, %v1726
        %v1743 = vsub.f32 %v1711, %v1729
        %v1744 = vsub.f32 %v1712, %v1732
        %v1745 = vsub.f32 %v1713, %v1735
        %v1746 = vsub.f32 %v1714, %v1738
        %v1747 = vmul.f32 %v1739, 1.442695
        %v1748 = vpow.pop %v1747
        %v1749 = vmul.f32 %v1740, 1.442695
        %v1750 = vpow.pop %v1749
        %v1751 = vmul.f32 %v1741, 1.442695
        %v1752 = vpow.pop %v1751
        %v1753 = vmul.f32 %v1742, 1.442695
        %v1754 = vpow.pop %v1753
        %v1755 = vmul.f32 %v1743, 1.442695
        %v1756 = vpow.pop %v1755
        %v1757 = vmul.f32 %v1744, 1.442695
        %v1758 = vpow.pop %v1757
        %v1759 = vmul.f32 %v1745, 1.442695
        %v1760 = vpow.pop %v1759
        %v1761 = vmul.f32 %v1746, 1.442695
        %v1762 = vpow.pop %v1761
        %v1763 = vsel %vm1144, %v1748, 0.0
        %1764 = vadd.xlane.f32.xlu0 %v1763
        %v1765 = vpop.xlane.xlu0 %1764
        %v1766 = vsel %vm1144, %v1750, 0.0
        %1767 = vadd.xlane.f32.xlu0 %v1766
        %v1768 = vpop.xlane.xlu0 %1767
        %v1769 = vsel %vm1144, %v1752, 0.0
        %1770 = vadd.xlane.f32.xlu0 %v1769
        %v1771 = vpop.xlane.xlu0 %1770
        %v1772 = vsel %vm1144, %v1754, 0.0
        %1773 = vadd.xlane.f32.xlu0 %v1772
        %v1774 = vpop.xlane.xlu0 %1773
        %v1775 = vsel %vm1144, %v1756, 0.0
        %1776 = vadd.xlane.f32.xlu0 %v1775
        %v1777 = vpop.xlane.xlu0 %1776
        %v1778 = vsel %vm1144, %v1758, 0.0
        %1779 = vadd.xlane.f32.xlu0 %v1778
        %v1780 = vpop.xlane.xlu0 %1779
        %v1781 = vsel %vm1144, %v1760, 0.0
        %1782 = vadd.xlane.f32.xlu0 %v1781
        %v1783 = vpop.xlane.xlu0 %1782
        %v1784 = vsel %vm1144, %v1762, 0.0
        %1785 = vadd.xlane.f32.xlu0 %v1784
        %v1786 = vpop.xlane.xlu0 %1785
        %v1787 = vrcp.pop %v1765
        %v1788 = vrcp.pop %v1768
        %v1789 = vrcp.pop %v1771
        %v1790 = vrcp.pop %v1774
        %v1791 = vrcp.pop %v1777
        %v1792 = vrcp.pop %v1780
        %v1793 = vrcp.pop %v1783
        %v1794 = vrcp.pop %v1786
        %v1795 = vmul.f32 %v1748, %v1787
        %v1796 = vmul.f32 %v1750, %v1788
        %v1797 = vmul.f32 %v1752, %v1789
        %v1798 = vmul.f32 %v1754, %v1790
        %v1799 = vmul.f32 %v1756, %v1791
        %v1800 = vmul.f32 %v1758, %v1792
        %v1801 = vmul.f32 %v1760, %v1793
        %v1802 = vmul.f32 %v1762, %v1794
        %v1803 = vpack.c.bf16 %v1796, %v1795
        %v1804 = vpack.c.bf16 %v1798, %v1797
        %v1805 = vpack.c.bf16 %v1800, %v1799
        %v1806 = vpack.c.bf16 %v1802, %v1801
        %1807 = vrot.lane.b32.xlu0 %v1253, 64
        %v1808 = vpop.permute.xlu0 %1807
        %1809 = vrot.lane.b32.xlu0 %v1254, 64
        %v1810 = vpop.permute.xlu0 %1809
        %1811 = vrot.lane.b32.xlu0 %v1255, 64
        %v1812 = vpop.permute.xlu0 %1811
        %1813 = vrot.lane.b32.xlu0 %v1256, 64
        %v1814 = vpop.permute.xlu0 %1813
        %v1820 = vsel %vm1144, %v1803, 0
        %v1823 = vsel %vm1144, %v1804, 0
        %v1826 = vsel %vm1144, %v1805, 0
        %v1829 = vsel %vm1144, %v1806, 0
        %1831 = vmatpush.bf16.msra.mxu0 0
        %1832 = vmatpush.bf16.msra.mxu0 0
        %1833 = vmatpush.bf16.msra.mxu0 0
        %1834 = vmatpush.bf16.msra.mxu0 0
        %1835 = vmatpush.bf16.msra.mxu0 %v1814
        %1836 = vmatpush.bf16.msra.mxu0 %v1812
        %1837 = vmatpush.bf16.msra.mxu0 %v1810
        %1838 = vmatpush.bf16.msra.mxu0 %v1808
        %1839 = vmatmul.bf16.gmra.mxu0 %v1820
        %v1840 = vpop.f32.mrf.mxu0
        %v1841 = vadd.f32 0.0, %v1840
        %v1842 = vpop.f32.mrf.mxu0
        %v1843 = vadd.f32 0.0, %v1842
        %1844 = vmatmul.bf16.gmra.mxu0 %v1823
        %v1845 = vpop.f32.mrf.mxu0
        %v1846 = vadd.f32 0.0, %v1845
        %v1847 = vpop.f32.mrf.mxu0
        %v1848 = vadd.f32 0.0, %v1847
        %1849 = vmatmul.bf16.gmra.mxu0 %v1826
        %v1850 = vpop.f32.mrf.mxu0
        %v1851 = vadd.f32 0.0, %v1850
        %v1852 = vpop.f32.mrf.mxu0
        %v1853 = vadd.f32 0.0, %v1852
        %1854 = vmatmul.bf16.gmra.mxu0 %v1829
        %v1855 = vpop.f32.mrf.mxu0
        %v1856 = vadd.f32 0.0, %v1855
        %v1857 = vpop.f32.mrf.mxu0
        %v1858 = vadd.f32 0.0, %v1857
        %1859 = vdwg.mxu0
        %v1860 = vpack.c.bf16 %v1843, %v1841
        %v1861 = vpack.c.bf16 %v1848, %v1846
        %v1862 = vpack.c.bf16 %v1853, %v1851
        %v1863 = vpack.c.bf16 %v1858, %v1856
        %v1868 = vunpack.c.l.b16 %v1034
        %v1869 = vunpack.c.l.b16 %v1035
        %v1870 = vunpack.c.l.b16 %v1036
        %v1871 = vunpack.c.l.b16 %v1037
        %v1872 = vpack.c.b16 %v1869, %v1868
        %v1873 = vpack.c.b16 %v1871, %v1870
        %v1877 = vsel %vm1082, %v1860, 0
        %v1880 = vsel %vm1082, %v1861, 0
        %v1883 = vsel %vm1082, %v1862, 0
        %v1886 = vsel %vm1082, %v1863, 0
        %1888 = vmatpush.bf16.msra.mxu0 0
        %1889 = vmatpush.bf16.msra.mxu0 0
        %1890 = vmatpush.bf16.msra.mxu0 0
        %1891 = vmatpush.bf16.msra.mxu0 0
        %1892 = vmatpush.bf16.msra.mxu0 0
        %1893 = vmatpush.bf16.msra.mxu0 0
        %1894 = vmatpush.bf16.msra.mxu0 %v1873
        %1895 = vmatpush.bf16.msra.mxu0 %v1872
        %1896 = vmatmul.bf16.gmra.mxu0 %v1877
        %v1897 = vpop.f32.mrf.mxu0
        %v1898 = vadd.f32 0.0, %v1897
        %v1899 = vpop.f32.mrf.mxu0
        %v1900 = vadd.f32 0.0, %v1899
        %1901 = vmatmul.bf16.gmra.mxu0 %v1880
        %v1902 = vpop.f32.mrf.mxu0
        %v1903 = vadd.f32 0.0, %v1902
        %v1904 = vpop.f32.mrf.mxu0
        %v1905 = vadd.f32 0.0, %v1904
        %1906 = vmatmul.bf16.gmra.mxu0 %v1883
        %v1907 = vpop.f32.mrf.mxu0
        %v1908 = vadd.f32 0.0, %v1907
        %v1909 = vpop.f32.mrf.mxu0
        %v1910 = vadd.f32 0.0, %v1909
        %1911 = vmatmul.bf16.gmra.mxu0 %v1886
        %v1912 = vpop.f32.mrf.mxu0
        %v1913 = vadd.f32 0.0, %v1912
        %v1914 = vpop.f32.mrf.mxu0
        %v1915 = vadd.f32 0.0, %v1914
        %1916 = vdwg.mxu0
        %v1917 = vadd.f32 %v1619, %v1898
        %v1918 = vadd.f32 %v1621, %v1900
        %v1919 = vadd.f32 %v1624, %v1903
        %v1920 = vadd.f32 %v1626, %v1905
        %v1921 = vadd.f32 %v1629, %v1908
        %v1922 = vadd.f32 %v1631, %v1910
        %v1923 = vadd.f32 %v1634, %v1913
        %v1924 = vadd.f32 %v1636, %v1915
        %1925 = vrot.lane.b32.xlu0 %v1058, 32
        %v1926 = vpop.permute.xlu0 %1925
        %1927 = vrot.lane.b32.xlu0 %v1059, 32
        %v1928 = vpop.permute.xlu0 %1927
        %1929 = vrot.lane.b32.xlu0 %v1060, 32
        %v1930 = vpop.permute.xlu0 %1929
        %1931 = vrot.lane.b32.xlu0 %v1061, 32
        %v1932 = vpop.permute.xlu0 %1931
        %1933 = vrot.lane.b32.xlu0 %v1078, 32
        %v1934 = vpop.permute.xlu0 %1933
        %1935 = vrot.lane.b32.xlu0 %v1079, 32
        %v1936 = vpop.permute.xlu0 %1935
        %1937 = vrot.lane.b32.xlu0 %v1080, 32
        %v1938 = vpop.permute.xlu0 %1937
        %1939 = vrot.lane.b32.xlu0 %v1081, 32
        %v1940 = vpop.permute.xlu0 %1939
        %v1942 = vsel %vm1082, %v1926, 0
        %v1945 = vsel %vm1082, %v1928, 0
        %v1948 = vsel %vm1082, %v1930, 0
        %v1951 = vsel %vm1082, %v1932, 0
        %v1954 = vsel %vm1082, %v1934, 0
        %v1957 = vsel %vm1082, %v1936, 0
        %v1960 = vsel %vm1082, %v1938, 0
        %v1963 = vsel %vm1082, %v1940, 0
        %1965 = vmatpush.bf16.xpose.msra.mxu0 0
        %1966 = vmatpush.bf16.xpose.msra.mxu0 0
        %1967 = vmatpush.bf16.xpose.msra.mxu0 0
        %1968 = vmatpush.bf16.xpose.msra.mxu0 0
        %1969 = vmatpush.bf16.xpose.msra.mxu0 %v1963
        %1970 = vmatpush.bf16.xpose.msra.mxu0 %v1960
        %1971 = vmatpush.bf16.xpose.msra.mxu0 %v1957
        %1972 = vmatpush.bf16.xpose.msra.mxu0 %v1954
        %1973 = vmatmul.bf16.gmra.mxu0 %v1942
        %v1974 = vpop.f32.mrf.mxu0
        %v1975 = vadd.f32 0.0, %v1974
        %v1976 = vpop.f32.mrf.mxu0
        %v1977 = vadd.f32 0.0, %v1976
        %1978 = vmatmul.bf16.gmra.mxu0 %v1945
        %v1979 = vpop.f32.mrf.mxu0
        %v1980 = vadd.f32 0.0, %v1979
        %v1981 = vpop.f32.mrf.mxu0
        %v1982 = vadd.f32 0.0, %v1981
        %1983 = vmatmul.bf16.gmra.mxu0 %v1948
        %v1984 = vpop.f32.mrf.mxu0
        %v1985 = vadd.f32 0.0, %v1984
        %v1986 = vpop.f32.mrf.mxu0
        %v1987 = vadd.f32 0.0, %v1986
        %1988 = vmatmul.bf16.gmra.mxu0 %v1951
        %v1989 = vpop.f32.mrf.mxu0
        %v1990 = vadd.f32 0.0, %v1989
        %v1991 = vpop.f32.mrf.mxu0
        %v1992 = vadd.f32 0.0, %v1991
        %1993 = vdwg.mxu0
        %v1994 = vmul.f32 %v1975, 0.17677669
        %v1995 = vmul.f32 %v1977, 0.17677669
        %v1996 = vmul.f32 %v1980, 0.17677669
        %v1997 = vmul.f32 %v1982, 0.17677669
        %v1998 = vmul.f32 %v1985, 0.17677669
        %v1999 = vmul.f32 %v1987, 0.17677669
        %v2000 = vmul.f32 %v1990, 0.17677669
        %v2001 = vmul.f32 %v1992, 0.17677669
        %v2002 = vsel %vm1144, %v1994, -inf
        %2003 = vmax.xlane.f32.xlu0 %v2002
        %v2004 = vpop.xlane.xlu0 %2003
        %v2005 = vsel %vm1144, %v1995, -inf
        %2006 = vmax.xlane.f32.xlu0 %v2005
        %v2007 = vpop.xlane.xlu0 %2006
        %v2008 = vsel %vm1144, %v1996, -inf
        %2009 = vmax.xlane.f32.xlu0 %v2008
        %v2010 = vpop.xlane.xlu0 %2009
        %v2011 = vsel %vm1144, %v1997, -inf
        %2012 = vmax.xlane.f32.xlu0 %v2011
        %v2013 = vpop.xlane.xlu0 %2012
        %v2014 = vsel %vm1144, %v1998, -inf
        %2015 = vmax.xlane.f32.xlu0 %v2014
        %v2016 = vpop.xlane.xlu0 %2015
        %v2017 = vsel %vm1144, %v1999, -inf
        %2018 = vmax.xlane.f32.xlu0 %v2017
        %v2019 = vpop.xlane.xlu0 %2018
        %v2020 = vsel %vm1144, %v2000, -inf
        %2021 = vmax.xlane.f32.xlu0 %v2020
        %v2022 = vpop.xlane.xlu0 %2021
        %v2023 = vsel %vm1144, %v2001, -inf
        %2024 = vmax.xlane.f32.xlu0 %v2023
        %v2025 = vpop.xlane.xlu0 %2024
        %v2026 = vsub.f32 %v1994, %v2004
        %v2027 = vsub.f32 %v1995, %v2007
        %v2028 = vsub.f32 %v1996, %v2010
        %v2029 = vsub.f32 %v1997, %v2013
        %v2030 = vsub.f32 %v1998, %v2016
        %v2031 = vsub.f32 %v1999, %v2019
        %v2032 = vsub.f32 %v2000, %v2022
        %v2033 = vsub.f32 %v2001, %v2025
        %v2034 = vmul.f32 %v2026, 1.442695
        %v2035 = vpow.pop %v2034
        %v2036 = vmul.f32 %v2027, 1.442695
        %v2037 = vpow.pop %v2036
        %v2038 = vmul.f32 %v2028, 1.442695
        %v2039 = vpow.pop %v2038
        %v2040 = vmul.f32 %v2029, 1.442695
        %v2041 = vpow.pop %v2040
        %v2042 = vmul.f32 %v2030, 1.442695
        %v2043 = vpow.pop %v2042
        %v2044 = vmul.f32 %v2031, 1.442695
        %v2045 = vpow.pop %v2044
        %v2046 = vmul.f32 %v2032, 1.442695
        %v2047 = vpow.pop %v2046
        %v2048 = vmul.f32 %v2033, 1.442695
        %v2049 = vpow.pop %v2048
        %v2050 = vsel %vm1144, %v2035, 0.0
        %2051 = vadd.xlane.f32.xlu0 %v2050
        %v2052 = vpop.xlane.xlu0 %2051
        %v2053 = vsel %vm1144, %v2037, 0.0
        %2054 = vadd.xlane.f32.xlu0 %v2053
        %v2055 = vpop.xlane.xlu0 %2054
        %v2056 = vsel %vm1144, %v2039, 0.0
        %2057 = vadd.xlane.f32.xlu0 %v2056
        %v2058 = vpop.xlane.xlu0 %2057
        %v2059 = vsel %vm1144, %v2041, 0.0
        %2060 = vadd.xlane.f32.xlu0 %v2059
        %v2061 = vpop.xlane.xlu0 %2060
        %v2062 = vsel %vm1144, %v2043, 0.0
        %2063 = vadd.xlane.f32.xlu0 %v2062
        %v2064 = vpop.xlane.xlu0 %2063
        %v2065 = vsel %vm1144, %v2045, 0.0
        %2066 = vadd.xlane.f32.xlu0 %v2065
        %v2067 = vpop.xlane.xlu0 %2066
        %v2068 = vsel %vm1144, %v2047, 0.0
        %2069 = vadd.xlane.f32.xlu0 %v2068
        %v2070 = vpop.xlane.xlu0 %2069
        %v2071 = vsel %vm1144, %v2049, 0.0
        %2072 = vadd.xlane.f32.xlu0 %v2071
        %v2073 = vpop.xlane.xlu0 %2072
        %v2074 = vrcp.pop %v2052
        %v2075 = vrcp.pop %v2055
        %v2076 = vrcp.pop %v2058
        %v2077 = vrcp.pop %v2061
        %v2078 = vrcp.pop %v2064
        %v2079 = vrcp.pop %v2067
        %v2080 = vrcp.pop %v2070
        %v2081 = vrcp.pop %v2073
        %v2082 = vmul.f32 %v2035, %v2074
        %v2083 = vmul.f32 %v2037, %v2075
        %v2084 = vmul.f32 %v2039, %v2076
        %v2085 = vmul.f32 %v2041, %v2077
        %v2086 = vmul.f32 %v2043, %v2078
        %v2087 = vmul.f32 %v2045, %v2079
        %v2088 = vmul.f32 %v2047, %v2080
        %v2089 = vmul.f32 %v2049, %v2081
        %v2090 = vpack.c.bf16 %v2083, %v2082
        %v2091 = vpack.c.bf16 %v2085, %v2084
        %v2092 = vpack.c.bf16 %v2087, %v2086
        %v2093 = vpack.c.bf16 %v2089, %v2088
        %2094 = vrot.lane.b32.xlu0 %v1253, 32
        %v2095 = vpop.permute.xlu0 %2094
        %2096 = vrot.lane.b32.xlu0 %v1254, 32
        %v2097 = vpop.permute.xlu0 %2096
        %2098 = vrot.lane.b32.xlu0 %v1255, 32
        %v2099 = vpop.permute.xlu0 %2098
        %2100 = vrot.lane.b32.xlu0 %v1256, 32
        %v2101 = vpop.permute.xlu0 %2100
        %v2107 = vsel %vm1144, %v2090, 0
        %v2110 = vsel %vm1144, %v2091, 0
        %v2113 = vsel %vm1144, %v2092, 0
        %v2116 = vsel %vm1144, %v2093, 0
        %2118 = vmatpush.bf16.msra.mxu0 0
        %2119 = vmatpush.bf16.msra.mxu0 0
        %2120 = vmatpush.bf16.msra.mxu0 0
        %2121 = vmatpush.bf16.msra.mxu0 0
        %2122 = vmatpush.bf16.msra.mxu0 %v2101
        %2123 = vmatpush.bf16.msra.mxu0 %v2099
        %2124 = vmatpush.bf16.msra.mxu0 %v2097
        %2125 = vmatpush.bf16.msra.mxu0 %v2095
        %2126 = vmatmul.bf16.gmra.mxu0 %v2107
        %v2127 = vpop.f32.mrf.mxu0
        %v2128 = vadd.f32 0.0, %v2127
        %v2129 = vpop.f32.mrf.mxu0
        %v2130 = vadd.f32 0.0, %v2129
        %2131 = vmatmul.bf16.gmra.mxu0 %v2110
        %v2132 = vpop.f32.mrf.mxu0
        %v2133 = vadd.f32 0.0, %v2132
        %v2134 = vpop.f32.mrf.mxu0
        %v2135 = vadd.f32 0.0, %v2134
        %2136 = vmatmul.bf16.gmra.mxu0 %v2113
        %v2137 = vpop.f32.mrf.mxu0
        %v2138 = vadd.f32 0.0, %v2137
        %v2139 = vpop.f32.mrf.mxu0
        %v2140 = vadd.f32 0.0, %v2139
        %2141 = vmatmul.bf16.gmra.mxu0 %v2116
        %v2142 = vpop.f32.mrf.mxu0
        %v2143 = vadd.f32 0.0, %v2142
        %v2144 = vpop.f32.mrf.mxu0
        %v2145 = vadd.f32 0.0, %v2144
        %2146 = vdwg.mxu0
        %v2147 = vpack.c.bf16 %v2130, %v2128
        %v2148 = vpack.c.bf16 %v2135, %v2133
        %v2149 = vpack.c.bf16 %v2140, %v2138
        %v2150 = vpack.c.bf16 %v2145, %v2143
        %v2155 = vunpack.c.l.b16 %v1038
        %v2156 = vunpack.c.l.b16 %v1039
        %v2157 = vunpack.c.l.b16 %v1040
        %v2158 = vunpack.c.l.b16 %v1041
        %v2159 = vpack.c.b16 %v2156, %v2155
        %v2160 = vpack.c.b16 %v2158, %v2157
        %v2164 = vsel %vm1082, %v2147, 0
        %v2167 = vsel %vm1082, %v2148, 0
        %v2170 = vsel %vm1082, %v2149, 0
        %v2173 = vsel %vm1082, %v2150, 0
        %2175 = vmatpush.bf16.msra.mxu0 0
        %2176 = vmatpush.bf16.msra.mxu0 0
        %2177 = vmatpush.bf16.msra.mxu0 0
        %2178 = vmatpush.bf16.msra.mxu0 0
        %2179 = vmatpush.bf16.msra.mxu0 0
        %2180 = vmatpush.bf16.msra.mxu0 0
        %2181 = vmatpush.bf16.msra.mxu0 %v2160
        %2182 = vmatpush.bf16.msra.mxu0 %v2159
        %2183 = vmatmul.bf16.gmra.mxu0 %v2164
        %v2184 = vpop.f32.mrf.mxu0
        %v2185 = vadd.f32 0.0, %v2184
        %v2186 = vpop.f32.mrf.mxu0
        %v2187 = vadd.f32 0.0, %v2186
        %2188 = vmatmul.bf16.gmra.mxu0 %v2167
        %v2189 = vpop.f32.mrf.mxu0
        %v2190 = vadd.f32 0.0, %v2189
        %v2191 = vpop.f32.mrf.mxu0
        %v2192 = vadd.f32 0.0, %v2191
        %2193 = vmatmul.bf16.gmra.mxu0 %v2170
        %v2194 = vpop.f32.mrf.mxu0
        %v2195 = vadd.f32 0.0, %v2194
        %v2196 = vpop.f32.mrf.mxu0
        %v2197 = vadd.f32 0.0, %v2196
        %2198 = vmatmul.bf16.gmra.mxu0 %v2173
        %v2199 = vpop.f32.mrf.mxu0
        %v2200 = vadd.f32 0.0, %v2199
        %v2201 = vpop.f32.mrf.mxu0
        %v2202 = vadd.f32 0.0, %v2201
        %2203 = vdwg.mxu0
        %v2204 = vadd.f32 %v1917, %v2185
        %v2205 = vadd.f32 %v1918, %v2187
        %v2206 = vadd.f32 %v1919, %v2190
        %v2207 = vadd.f32 %v1920, %v2192
        %v2208 = vadd.f32 %v1921, %v2195
        %v2209 = vadd.f32 %v1922, %v2197
        %v2210 = vadd.f32 %v1923, %v2200
        %v2211 = vadd.f32 %v1924, %v2202
        %v2212 = vadd.f32 %v548, %v2204
        %v2213 = vadd.f32 %v549, %v2205
        %v2214 = vadd.f32 %v550, %v2206
        %v2215 = vadd.f32 %v551, %v2207
        %v2216 = vadd.f32 %v552, %v2208
        %v2217 = vadd.f32 %v553, %v2209
        %v2218 = vadd.f32 %v554, %v2210
        %v2219 = vadd.f32 %v555, %v2211
        %v2220 = vld [vmem:[%s6] sm:$0x1]
        %v2221 = vperm.slane %v2220, 0
        %v2222 = vadd.f32 %v2212, %v2221
        %v2223 = vadd.f32 %v2213, %v2221
        %v2224 = vadd.f32 %v2214, %v2221
        %v2225 = vadd.f32 %v2215, %v2221
        %v2226 = vadd.f32 %v2216, %v2221
        %v2227 = vadd.f32 %v2217, %v2221
        %v2228 = vadd.f32 %v2218, %v2221
        %v2229 = vadd.f32 %v2219, %v2221
        %v2230 = vld [vmem:[%s7] sm:$0x1]
        %v2231 = vld [vmem:[%s8] sm:$0x1]
        %2232 = vadd.xlane.f32.xlu0 %v2222
        %v2233 = vpop.xlane.xlu0 %2232
        %2234 = vadd.xlane.f32.xlu0 %v2223
        %v2235 = vpop.xlane.xlu0 %2234
        %2236 = vadd.xlane.f32.xlu0 %v2224
        %v2237 = vpop.xlane.xlu0 %2236
        %2238 = vadd.xlane.f32.xlu0 %v2225
        %v2239 = vpop.xlane.xlu0 %2238
        %2240 = vadd.xlane.f32.xlu0 %v2226
        %v2241 = vpop.xlane.xlu0 %2240
        %2242 = vadd.xlane.f32.xlu0 %v2227
        %v2243 = vpop.xlane.xlu0 %2242
        %2244 = vadd.xlane.f32.xlu0 %v2228
        %v2245 = vpop.xlane.xlu0 %2244
        %2246 = vadd.xlane.f32.xlu0 %v2229
        %v2247 = vpop.xlane.xlu0 %2246
        %v2248 = vmul.f32 %v2233, %v580
        %v2249 = vmul.f32 %v2235, %v580
        %v2250 = vmul.f32 %v2237, %v580
        %v2251 = vmul.f32 %v2239, %v580
        %v2252 = vmul.f32 %v2241, %v580
        %v2253 = vmul.f32 %v2243, %v580
        %v2254 = vmul.f32 %v2245, %v580
        %v2255 = vmul.f32 %v2247, %v580
        %v2256 = vsub.f32 %v2222, %v2248
        %v2257 = vsub.f32 %v2223, %v2249
        %v2258 = vsub.f32 %v2224, %v2250
        %v2259 = vsub.f32 %v2225, %v2251
        %v2260 = vsub.f32 %v2226, %v2252
        %v2261 = vsub.f32 %v2227, %v2253
        %v2262 = vsub.f32 %v2228, %v2254
        %v2263 = vsub.f32 %v2229, %v2255
        %v2264 = vmul.f32 %v2256, %v2256
        %v2265 = vmul.f32 %v2257, %v2257
        %v2266 = vmul.f32 %v2258, %v2258
        %v2267 = vmul.f32 %v2259, %v2259
        %v2268 = vmul.f32 %v2260, %v2260
        %v2269 = vmul.f32 %v2261, %v2261
        %v2270 = vmul.f32 %v2262, %v2262
        %v2271 = vmul.f32 %v2263, %v2263
        %2272 = vadd.xlane.f32.xlu0 %v2264
        %v2273 = vpop.xlane.xlu0 %2272
        %2274 = vadd.xlane.f32.xlu0 %v2265
        %v2275 = vpop.xlane.xlu0 %2274
        %2276 = vadd.xlane.f32.xlu0 %v2266
        %v2277 = vpop.xlane.xlu0 %2276
        %2278 = vadd.xlane.f32.xlu0 %v2267
        %v2279 = vpop.xlane.xlu0 %2278
        %2280 = vadd.xlane.f32.xlu0 %v2268
        %v2281 = vpop.xlane.xlu0 %2280
        %2282 = vadd.xlane.f32.xlu0 %v2269
        %v2283 = vpop.xlane.xlu0 %2282
        %2284 = vadd.xlane.f32.xlu0 %v2270
        %v2285 = vpop.xlane.xlu0 %2284
        %2286 = vadd.xlane.f32.xlu0 %v2271
        %v2287 = vpop.xlane.xlu0 %2286
        %v2288 = vmul.f32 %v2273, %v580
        %v2289 = vmul.f32 %v2275, %v580
        %v2290 = vmul.f32 %v2277, %v580
        %v2291 = vmul.f32 %v2279, %v580
        %v2292 = vmul.f32 %v2281, %v580
        %v2293 = vmul.f32 %v2283, %v580
        %v2294 = vmul.f32 %v2285, %v580
        %v2295 = vmul.f32 %v2287, %v580
        %v2296 = vadd.f32 %v2288, 1e-05
        %v2297 = vadd.f32 %v2289, 1e-05
        %v2298 = vadd.f32 %v2290, 1e-05
        %v2299 = vadd.f32 %v2291, 1e-05
        %v2300 = vadd.f32 %v2292, 1e-05
        %v2301 = vadd.f32 %v2293, 1e-05
        %v2302 = vadd.f32 %v2294, 1e-05
        %v2303 = vadd.f32 %v2295, 1e-05
        %v2304 = vrsqrt.pop %v2296
        %v2305 = vmul.f32 %v2304, %v2296
        %v2306 = vmul.f32 %v2305, %v2304
        %v2307 = vmul.f32 0.5, %v2306
        %v2308 = vsub.f32 1.5, %v2307
        %v2309 = vmul.f32 %v2304, %v2308
        %vm2310 = vweird.f32 %v2296
        %vm2311 = vweird.f32 %v2304
        %vm2312 = vmor %vm2310, %vm2311
        %v2313 = vsel %vm2312, %v2304, %v2309
        %v2314 = vrsqrt.pop %v2297
        %v2315 = vmul.f32 %v2314, %v2297
        %v2316 = vmul.f32 %v2315, %v2314
        %v2317 = vmul.f32 0.5, %v2316
        %v2318 = vsub.f32 1.5, %v2317
        %v2319 = vmul.f32 %v2314, %v2318
        %vm2320 = vweird.f32 %v2297
        %vm2321 = vweird.f32 %v2314
        %vm2322 = vmor %vm2320, %vm2321
        %v2323 = vsel %vm2322, %v2314, %v2319
        %v2324 = vrsqrt.pop %v2298
        %v2325 = vmul.f32 %v2324, %v2298
        %v2326 = vmul.f32 %v2325, %v2324
        %v2327 = vmul.f32 0.5, %v2326
        %v2328 = vsub.f32 1.5, %v2327
        %v2329 = vmul.f32 %v2324, %v2328
        %vm2330 = vweird.f32 %v2298
        %vm2331 = vweird.f32 %v2324
        %vm2332 = vmor %vm2330, %vm2331
        %v2333 = vsel %vm2332, %v2324, %v2329
        %v2334 = vrsqrt.pop %v2299
        %v2335 = vmul.f32 %v2334, %v2299
        %v2336 = vmul.f32 %v2335, %v2334
        %v2337 = vmul.f32 0.5, %v2336
        %v2338 = vsub.f32 1.5, %v2337
        %v2339 = vmul.f32 %v2334, %v2338
        %vm2340 = vweird.f32 %v2299
        %vm2341 = vweird.f32 %v2334
        %vm2342 = vmor %vm2340, %vm2341
        %v2343 = vsel %vm2342, %v2334, %v2339
        %v2344 = vrsqrt.pop %v2300
        %v2345 = vmul.f32 %v2344, %v2300
        %v2346 = vmul.f32 %v2345, %v2344
        %v2347 = vmul.f32 0.5, %v2346
        %v2348 = vsub.f32 1.5, %v2347
        %v2349 = vmul.f32 %v2344, %v2348
        %vm2350 = vweird.f32 %v2300
        %vm2351 = vweird.f32 %v2344
        %vm2352 = vmor %vm2350, %vm2351
        %v2353 = vsel %vm2352, %v2344, %v2349
        %v2354 = vrsqrt.pop %v2301
        %v2355 = vmul.f32 %v2354, %v2301
        %v2356 = vmul.f32 %v2355, %v2354
        %v2357 = vmul.f32 0.5, %v2356
        %v2358 = vsub.f32 1.5, %v2357
        %v2359 = vmul.f32 %v2354, %v2358
        %vm2360 = vweird.f32 %v2301
        %vm2361 = vweird.f32 %v2354
        %vm2362 = vmor %vm2360, %vm2361
        %v2363 = vsel %vm2362, %v2354, %v2359
        %v2364 = vrsqrt.pop %v2302
        %v2365 = vmul.f32 %v2364, %v2302
        %v2366 = vmul.f32 %v2365, %v2364
        %v2367 = vmul.f32 0.5, %v2366
        %v2368 = vsub.f32 1.5, %v2367
        %v2369 = vmul.f32 %v2364, %v2368
        %vm2370 = vweird.f32 %v2302
        %vm2371 = vweird.f32 %v2364
        %vm2372 = vmor %vm2370, %vm2371
        %v2373 = vsel %vm2372, %v2364, %v2369
        %v2374 = vrsqrt.pop %v2303
        %v2375 = vmul.f32 %v2374, %v2303
        %v2376 = vmul.f32 %v2375, %v2374
        %v2377 = vmul.f32 0.5, %v2376
        %v2378 = vsub.f32 1.5, %v2377
        %v2379 = vmul.f32 %v2374, %v2378
        %vm2380 = vweird.f32 %v2303
        %vm2381 = vweird.f32 %v2374
        %vm2382 = vmor %vm2380, %vm2381
        %v2383 = vsel %vm2382, %v2374, %v2379
        %v2384 = vmul.f32 %v2256, %v2313
        %v2385 = vmul.f32 %v2257, %v2323
        %v2386 = vmul.f32 %v2258, %v2333
        %v2387 = vmul.f32 %v2259, %v2343
        %v2388 = vmul.f32 %v2260, %v2353
        %v2389 = vmul.f32 %v2261, %v2363
        %v2390 = vmul.f32 %v2262, %v2373
        %v2391 = vmul.f32 %v2263, %v2383
        %v2392 = vperm.slane %v2230, 0
        %v2393 = vmul.f32 %v2384, %v2392
        %v2394 = vmul.f32 %v2385, %v2392
        %v2395 = vmul.f32 %v2386, %v2392
        %v2396 = vmul.f32 %v2387, %v2392
        %v2397 = vmul.f32 %v2388, %v2392
        %v2398 = vmul.f32 %v2389, %v2392
        %v2399 = vmul.f32 %v2390, %v2392
        %v2400 = vmul.f32 %v2391, %v2392
        %v2401 = vperm.slane %v2231, 0
        %v2402 = vadd.f32 %v2393, %v2401
        %v2403 = vadd.f32 %v2394, %v2401
        %v2404 = vadd.f32 %v2395, %v2401
        %v2405 = vadd.f32 %v2396, %v2401
        %v2406 = vadd.f32 %v2397, %v2401
        %v2407 = vadd.f32 %v2398, %v2401
        %v2408 = vadd.f32 %v2399, %v2401
        %v2409 = vadd.f32 %v2400, %v2401
        %v2410 = vpack.c.bf16 %v2403, %v2402
        %v2411 = vpack.c.bf16 %v2405, %v2404
        %v2412 = vpack.c.bf16 %v2407, %v2406
        %v2413 = vpack.c.bf16 %v2409, %v2408
        %v2414 = vld [vmem:[%s9] sm:$0xff]
        %v2415 = vld [vmem:[%s9 + $0x8] sm:$0xff]
        %v2416 = vld [vmem:[%s9 + $0x10] sm:$0xff]
        %v2417 = vld [vmem:[%s9 + $0x18] sm:$0xff]
        %v2418 = vld [vmem:[%s9 + $0x20] sm:$0xff]
        %v2419 = vld [vmem:[%s9 + $0x28] sm:$0xff]
        %v2420 = vld [vmem:[%s9 + $0x30] sm:$0xff]
        %v2421 = vld [vmem:[%s9 + $0x38] sm:$0xff]
        %v2422 = vld [vmem:[%s9 + $0x40] sm:$0xff]
        %v2423 = vld [vmem:[%s9 + $0x48] sm:$0xff]
        %v2424 = vld [vmem:[%s9 + $0x50] sm:$0xff]
        %v2425 = vld [vmem:[%s9 + $0x58] sm:$0xff]
        %v2426 = vld [vmem:[%s9 + $0x60] sm:$0xff]
        %v2427 = vld [vmem:[%s9 + $0x68] sm:$0xff]
        %v2428 = vld [vmem:[%s9 + $0x70] sm:$0xff]
        %v2429 = vld [vmem:[%s9 + $0x78] sm:$0xff]
        %v2430 = vld [vmem:[%s10] ss:$2 sm:$0x3]
        %v2432 = vperm.slane %v2430, 0
        %v2433 = vperm.slane %v2430, 1
        %v2452 = vunpack.c.l.b16 %v2414
        %v2453 = vunpack.c.h.b16 %v2414
        %v2454 = vunpack.c.l.b16 %v2415
        %v2455 = vunpack.c.h.b16 %v2415
        %v2456 = vunpack.c.l.b16 %v2416
        %v2457 = vunpack.c.h.b16 %v2416
        %v2458 = vunpack.c.l.b16 %v2417
        %v2459 = vunpack.c.h.b16 %v2417
        %v2460 = vunpack.c.l.b16 %v2418
        %v2461 = vunpack.c.h.b16 %v2418
        %v2462 = vunpack.c.l.b16 %v2419
        %v2463 = vunpack.c.h.b16 %v2419
        %v2464 = vunpack.c.l.b16 %v2420
        %v2465 = vunpack.c.h.b16 %v2420
        %v2466 = vunpack.c.l.b16 %v2421
        %v2467 = vunpack.c.h.b16 %v2421
        %v2468 = vunpack.c.l.b16 %v2422
        %v2469 = vunpack.c.h.b16 %v2422
        %v2470 = vunpack.c.l.b16 %v2423
        %v2471 = vunpack.c.h.b16 %v2423
        %v2472 = vunpack.c.l.b16 %v2424
        %v2473 = vunpack.c.h.b16 %v2424
        %v2474 = vunpack.c.l.b16 %v2425
        %v2475 = vunpack.c.h.b16 %v2425
        %v2476 = vunpack.c.l.b16 %v2426
        %v2477 = vunpack.c.h.b16 %v2426
        %v2478 = vunpack.c.l.b16 %v2427
        %v2479 = vunpack.c.h.b16 %v2427
        %v2480 = vunpack.c.l.b16 %v2428
        %v2481 = vunpack.c.h.b16 %v2428
        %v2482 = vunpack.c.l.b16 %v2429
        %v2483 = vunpack.c.h.b16 %v2429
        %v2484 = vpack.c.b16 %v2454, %v2452
        %v2485 = vpack.c.b16 %v2455, %v2453
        %v2486 = vpack.c.b16 %v2458, %v2456
        %v2487 = vpack.c.b16 %v2459, %v2457
        %v2488 = vpack.c.b16 %v2462, %v2460
        %v2489 = vpack.c.b16 %v2463, %v2461
        %v2490 = vpack.c.b16 %v2466, %v2464
        %v2491 = vpack.c.b16 %v2467, %v2465
        %v2492 = vpack.c.b16 %v2470, %v2468
        %v2493 = vpack.c.b16 %v2471, %v2469
        %v2494 = vpack.c.b16 %v2474, %v2472
        %v2495 = vpack.c.b16 %v2475, %v2473
        %v2496 = vpack.c.b16 %v2478, %v2476
        %v2497 = vpack.c.b16 %v2479, %v2477
        %v2498 = vpack.c.b16 %v2482, %v2480
        %v2499 = vpack.c.b16 %v2483, %v2481
        %2516 = vmatpush.bf16.msra.mxu0 %v2498
        %2517 = vmatpush.bf16.msra.mxu0 %v2496
        %2518 = vmatpush.bf16.msra.mxu0 %v2494
        %2519 = vmatpush.bf16.msra.mxu0 %v2492
        %2520 = vmatpush.bf16.msra.mxu0 %v2490
        %2521 = vmatpush.bf16.msra.mxu0 %v2488
        %2522 = vmatpush.bf16.msra.mxu0 %v2486
        %2523 = vmatpush.bf16.msra.mxu0 %v2484
        %2524 = vmatmul.bf16.gmra.mxu0 %v2410
        %v2525 = vpop.f32.mrf.mxu0
        %v2526 = vadd.f32 %v2432, %v2525
        %v2527 = vpop.f32.mrf.mxu0
        %v2528 = vadd.f32 %v2432, %v2527
        %2529 = vmatmul.bf16.gmra.mxu0 %v2411
        %v2530 = vpop.f32.mrf.mxu0
        %v2531 = vadd.f32 %v2432, %v2530
        %v2532 = vpop.f32.mrf.mxu0
        %v2533 = vadd.f32 %v2432, %v2532
        %2534 = vmatmul.bf16.gmra.mxu0 %v2412
        %v2535 = vpop.f32.mrf.mxu0
        %v2536 = vadd.f32 %v2432, %v2535
        %v2537 = vpop.f32.mrf.mxu0
        %v2538 = vadd.f32 %v2432, %v2537
        %2539 = vmatmul.bf16.gmra.mxu0 %v2413
        %v2540 = vpop.f32.mrf.mxu0
        %v2541 = vadd.f32 %v2432, %v2540
        %v2542 = vpop.f32.mrf.mxu0
        %v2543 = vadd.f32 %v2432, %v2542
        %2544 = vdwg.mxu0
        %2545 = vmatpush.bf16.msra.mxu0 %v2499
        %2546 = vmatpush.bf16.msra.mxu0 %v2497
        %2547 = vmatpush.bf16.msra.mxu0 %v2495
        %2548 = vmatpush.bf16.msra.mxu0 %v2493
        %2549 = vmatpush.bf16.msra.mxu0 %v2491
        %2550 = vmatpush.bf16.msra.mxu0 %v2489
        %2551 = vmatpush.bf16.msra.mxu0 %v2487
        %2552 = vmatpush.bf16.msra.mxu0 %v2485
        %2553 = vmatmul.bf16.gmra.mxu0 %v2410
        %v2554 = vpop.f32.mrf.mxu0
        %v2555 = vadd.f32 %v2433, %v2554
        %v2556 = vpop.f32.mrf.mxu0
        %v2557 = vadd.f32 %v2433, %v2556
        %2558 = vmatmul.bf16.gmra.mxu0 %v2411
        %v2559 = vpop.f32.mrf.mxu0
        %v2560 = vadd.f32 %v2433, %v2559
        %v2561 = vpop.f32.mrf.mxu0
        %v2562 = vadd.f32 %v2433, %v2561
        %2563 = vmatmul.bf16.gmra.mxu0 %v2412
        %v2564 = vpop.f32.mrf.mxu0
        %v2565 = vadd.f32 %v2433, %v2564
        %v2566 = vpop.f32.mrf.mxu0
        %v2567 = vadd.f32 %v2433, %v2566
        %2568 = vmatmul.bf16.gmra.mxu0 %v2413
        %v2569 = vpop.f32.mrf.mxu0
        %v2570 = vadd.f32 %v2433, %v2569
        %v2571 = vpop.f32.mrf.mxu0
        %v2572 = vadd.f32 %v2433, %v2571
        %2573 = vdwg.mxu0
        %v2574 = vmul.f32 %v2526, 0.5
        %v2575 = vmul.f32 %v2555, 0.5
        %v2576 = vmul.f32 %v2528, 0.5
        %v2577 = vmul.f32 %v2557, 0.5
        %v2578 = vmul.f32 %v2531, 0.5
        %v2579 = vmul.f32 %v2560, 0.5
        %v2580 = vmul.f32 %v2533, 0.5
        %v2581 = vmul.f32 %v2562, 0.5
        %v2582 = vmul.f32 %v2536, 0.5
        %v2583 = vmul.f32 %v2565, 0.5
        %v2584 = vmul.f32 %v2538, 0.5
        %v2585 = vmul.f32 %v2567, 0.5
        %v2586 = vmul.f32 %v2541, 0.5
        %v2587 = vmul.f32 %v2570, 0.5
        %v2588 = vmul.f32 %v2543, 0.5
        %v2589 = vmul.f32 %v2572, 0.5
        %v2590 = vmul.f32 %v2526, 0.044715
        %v2591 = vmul.f32 %v2555, 0.044715
        %v2592 = vmul.f32 %v2528, 0.044715
        %v2593 = vmul.f32 %v2557, 0.044715
        %v2594 = vmul.f32 %v2531, 0.044715
        %v2595 = vmul.f32 %v2560, 0.044715
        %v2596 = vmul.f32 %v2533, 0.044715
        %v2597 = vmul.f32 %v2562, 0.044715
        %v2598 = vmul.f32 %v2536, 0.044715
        %v2599 = vmul.f32 %v2565, 0.044715
        %v2600 = vmul.f32 %v2538, 0.044715
        %v2601 = vmul.f32 %v2567, 0.044715
        %v2602 = vmul.f32 %v2541, 0.044715
        %v2603 = vmul.f32 %v2570, 0.044715
        %v2604 = vmul.f32 %v2543, 0.044715
        %v2605 = vmul.f32 %v2572, 0.044715
        %v2606 = vmul.f32 %v2590, %v2526
        %v2607 = vmul.f32 %v2591, %v2555
        %v2608 = vmul.f32 %v2592, %v2528
        %v2609 = vmul.f32 %v2593, %v2557
        %v2610 = vmul.f32 %v2594, %v2531
        %v2611 = vmul.f32 %v2595, %v2560
        %v2612 = vmul.f32 %v2596, %v2533
        %v2613 = vmul.f32 %v2597, %v2562
        %v2614 = vmul.f32 %v2598, %v2536
        %v2615 = vmul.f32 %v2599, %v2565
        %v2616 = vmul.f32 %v2600, %v2538
        %v2617 = vmul.f32 %v2601, %v2567
        %v2618 = vmul.f32 %v2602, %v2541
        %v2619 = vmul.f32 %v2603, %v2570
        %v2620 = vmul.f32 %v2604, %v2543
        %v2621 = vmul.f32 %v2605, %v2572
        %v2622 = vmul.f32 %v2606, %v2526
        %v2623 = vmul.f32 %v2607, %v2555
        %v2624 = vmul.f32 %v2608, %v2528
        %v2625 = vmul.f32 %v2609, %v2557
        %v2626 = vmul.f32 %v2610, %v2531
        %v2627 = vmul.f32 %v2611, %v2560
        %v2628 = vmul.f32 %v2612, %v2533
        %v2629 = vmul.f32 %v2613, %v2562
        %v2630 = vmul.f32 %v2614, %v2536
        %v2631 = vmul.f32 %v2615, %v2565
        %v2632 = vmul.f32 %v2616, %v2538
        %v2633 = vmul.f32 %v2617, %v2567
        %v2634 = vmul.f32 %v2618, %v2541
        %v2635 = vmul.f32 %v2619, %v2570
        %v2636 = vmul.f32 %v2620, %v2543
        %v2637 = vmul.f32 %v2621, %v2572
        %v2638 = vadd.f32 %v2526, %v2622
        %v2639 = vadd.f32 %v2555, %v2623
        %v2640 = vadd.f32 %v2528, %v2624
        %v2641 = vadd.f32 %v2557, %v2625
        %v2642 = vadd.f32 %v2531, %v2626
        %v2643 = vadd.f32 %v2560, %v2627
        %v2644 = vadd.f32 %v2533, %v2628
        %v2645 = vadd.f32 %v2562, %v2629
        %v2646 = vadd.f32 %v2536, %v2630
        %v2647 = vadd.f32 %v2565, %v2631
        %v2648 = vadd.f32 %v2538, %v2632
        %v2649 = vadd.f32 %v2567, %v2633
        %v2650 = vadd.f32 %v2541, %v2634
        %v2651 = vadd.f32 %v2570, %v2635
        %v2652 = vadd.f32 %v2543, %v2636
        %v2653 = vadd.f32 %v2572, %v2637
        %v2654 = vmul.f32 %v2638, 0.7978846
        %v2655 = vmul.f32 %v2639, 0.7978846
        %v2656 = vmul.f32 %v2640, 0.7978846
        %v2657 = vmul.f32 %v2641, 0.7978846
        %v2658 = vmul.f32 %v2642, 0.7978846
        %v2659 = vmul.f32 %v2643, 0.7978846
        %v2660 = vmul.f32 %v2644, 0.7978846
        %v2661 = vmul.f32 %v2645, 0.7978846
        %v2662 = vmul.f32 %v2646, 0.7978846
        %v2663 = vmul.f32 %v2647, 0.7978846
        %v2664 = vmul.f32 %v2648, 0.7978846
        %v2665 = vmul.f32 %v2649, 0.7978846
        %v2666 = vmul.f32 %v2650, 0.7978846
        %v2667 = vmul.f32 %v2651, 0.7978846
        %v2668 = vmul.f32 %v2652, 0.7978846
        %v2669 = vmul.f32 %v2653, 0.7978846
        %v2670 = vtanh.pop %v2654
        %v2671 = vtanh.pop %v2655
        %v2672 = vtanh.pop %v2656
        %v2673 = vtanh.pop %v2657
        %v2674 = vtanh.pop %v2658
        %v2675 = vtanh.pop %v2659
        %v2676 = vtanh.pop %v2660
        %v2677 = vtanh.pop %v2661
        %v2678 = vtanh.pop %v2662
        %v2679 = vtanh.pop %v2663
        %v2680 = vtanh.pop %v2664
        %v2681 = vtanh.pop %v2665
        %v2682 = vtanh.pop %v2666
        %v2683 = vtanh.pop %v2667
        %v2684 = vtanh.pop %v2668
        %v2685 = vtanh.pop %v2669
        %v2686 = vadd.f32 %v2670, 1.0
        %v2687 = vadd.f32 %v2671, 1.0
        %v2688 = vadd.f32 %v2672, 1.0
        %v2689 = vadd.f32 %v2673, 1.0
        %v2690 = vadd.f32 %v2674, 1.0
        %v2691 = vadd.f32 %v2675, 1.0
        %v2692 = vadd.f32 %v2676, 1.0
        %v2693 = vadd.f32 %v2677, 1.0
        %v2694 = vadd.f32 %v2678, 1.0
        %v2695 = vadd.f32 %v2679, 1.0
        %v2696 = vadd.f32 %v2680, 1.0
        %v2697 = vadd.f32 %v2681, 1.0
        %v2698 = vadd.f32 %v2682, 1.0
        %v2699 = vadd.f32 %v2683, 1.0
        %v2700 = vadd.f32 %v2684, 1.0
        %v2701 = vadd.f32 %v2685, 1.0
        %v2702 = vmul.f32 %v2574, %v2686
        %v2703 = vmul.f32 %v2575, %v2687
        %v2704 = vmul.f32 %v2576, %v2688
        %v2705 = vmul.f32 %v2577, %v2689
        %v2706 = vmul.f32 %v2578, %v2690
        %v2707 = vmul.f32 %v2579, %v2691
        %v2708 = vmul.f32 %v2580, %v2692
        %v2709 = vmul.f32 %v2581, %v2693
        %v2710 = vmul.f32 %v2582, %v2694
        %v2711 = vmul.f32 %v2583, %v2695
        %v2712 = vmul.f32 %v2584, %v2696
        %v2713 = vmul.f32 %v2585, %v2697
        %v2714 = vmul.f32 %v2586, %v2698
        %v2715 = vmul.f32 %v2587, %v2699
        %v2716 = vmul.f32 %v2588, %v2700
        %v2717 = vmul.f32 %v2589, %v2701
        %v2718 = vpack.c.bf16 %v2704, %v2702
        %v2719 = vpack.c.bf16 %v2705, %v2703
        %v2720 = vpack.c.bf16 %v2708, %v2706
        %v2721 = vpack.c.bf16 %v2709, %v2707
        %v2722 = vpack.c.bf16 %v2712, %v2710
        %v2723 = vpack.c.bf16 %v2713, %v2711
        %v2724 = vpack.c.bf16 %v2716, %v2714
        %v2725 = vpack.c.bf16 %v2717, %v2715
        %v2726 = vld [vmem:[%s11] sm:$0xf]
        %v2727 = vld [vmem:[%s11 + $0x4] sm:$0xf]
        %v2728 = vld [vmem:[%s11 + $0x8] sm:$0xf]
        %v2729 = vld [vmem:[%s11 + $0xc] sm:$0xf]
        %v2730 = vld [vmem:[%s11 + $0x10] sm:$0xf]
        %v2731 = vld [vmem:[%s11 + $0x14] sm:$0xf]
        %v2732 = vld [vmem:[%s11 + $0x18] sm:$0xf]
        %v2733 = vld [vmem:[%s11 + $0x1c] sm:$0xf]
        %v2734 = vld [vmem:[%s11 + $0x20] sm:$0xf]
        %v2735 = vld [vmem:[%s11 + $0x24] sm:$0xf]
        %v2736 = vld [vmem:[%s11 + $0x28] sm:$0xf]
        %v2737 = vld [vmem:[%s11 + $0x2c] sm:$0xf]
        %v2738 = vld [vmem:[%s11 + $0x30] sm:$0xf]
        %v2739 = vld [vmem:[%s11 + $0x34] sm:$0xf]
        %v2740 = vld [vmem:[%s11 + $0x38] sm:$0xf]
        %v2741 = vld [vmem:[%s11 + $0x3c] sm:$0xf]
        %v2742 = vld [vmem:[%s11 + $0x40] sm:$0xf]
        %v2743 = vld [vmem:[%s11 + $0x44] sm:$0xf]
        %v2744 = vld [vmem:[%s11 + $0x48] sm:$0xf]
        %v2745 = vld [vmem:[%s11 + $0x4c] sm:$0xf]
        %v2746 = vld [vmem:[%s11 + $0x50] sm:$0xf]
        %v2747 = vld [vmem:[%s11 + $0x54] sm:$0xf]
        %v2748 = vld [vmem:[%s11 + $0x58] sm:$0xf]
        %v2749 = vld [vmem:[%s11 + $0x5c] sm:$0xf]
        %v2750 = vld [vmem:[%s11 + $0x60] sm:$0xf]
        %v2751 = vld [vmem:[%s11 + $0x64] sm:$0xf]
        %v2752 = vld [vmem:[%s11 + $0x68] sm:$0xf]
        %v2753 = vld [vmem:[%s11 + $0x6c] sm:$0xf]
        %v2754 = vld [vmem:[%s11 + $0x70] sm:$0xf]
        %v2755 = vld [vmem:[%s11 + $0x74] sm:$0xf]
        %v2756 = vld [vmem:[%s11 + $0x78] sm:$0xf]
        %v2757 = vld [vmem:[%s11 + $0x7c] sm:$0xf]
        %v2758 = vld [vmem:[%s12] sm:$0x1]
        %v2759 = vperm.slane %v2758, 0
        %v2792 = vunpack.c.l.b16 %v2726
        %v2793 = vunpack.c.l.b16 %v2727
        %v2794 = vunpack.c.l.b16 %v2728
        %v2795 = vunpack.c.l.b16 %v2729
        %v2796 = vunpack.c.l.b16 %v2730
        %v2797 = vunpack.c.l.b16 %v2731
        %v2798 = vunpack.c.l.b16 %v2732
        %v2799 = vunpack.c.l.b16 %v2733
        %v2800 = vunpack.c.l.b16 %v2734
        %v2801 = vunpack.c.l.b16 %v2735
        %v2802 = vunpack.c.l.b16 %v2736
        %v2803 = vunpack.c.l.b16 %v2737
        %v2804 = vunpack.c.l.b16 %v2738
        %v2805 = vunpack.c.l.b16 %v2739
        %v2806 = vunpack.c.l.b16 %v2740
        %v2807 = vunpack.c.l.b16 %v2741
        %v2808 = vunpack.c.l.b16 %v2742
        %v2809 = vunpack.c.l.b16 %v2743
        %v2810 = vunpack.c.l.b16 %v2744
        %v2811 = vunpack.c.l.b16 %v2745
        %v2812 = vunpack.c.l.b16 %v2746
        %v2813 = vunpack.c.l.b16 %v2747
        %v2814 = vunpack.c.l.b16 %v2748
        %v2815 = vunpack.c.l.b16 %v2749
        %v2816 = vunpack.c.l.b16 %v2750
        %v2817 = vunpack.c.l.b16 %v2751
        %v2818 = vunpack.c.l.b16 %v2752
        %v2819 = vunpack.c.l.b16 %v2753
        %v2820 = vunpack.c.l.b16 %v2754
        %v2821 = vunpack.c.l.b16 %v2755
        %v2822 = vunpack.c.l.b16 %v2756
        %v2823 = vunpack.c.l.b16 %v2757
        %v2824 = vpack.c.b16 %v2793, %v2792
        %v2825 = vpack.c.b16 %v2795, %v2794
        %v2826 = vpack.c.b16 %v2797, %v2796
        %v2827 = vpack.c.b16 %v2799, %v2798
        %v2828 = vpack.c.b16 %v2801, %v2800
        %v2829 = vpack.c.b16 %v2803, %v2802
        %v2830 = vpack.c.b16 %v2805, %v2804
        %v2831 = vpack.c.b16 %v2807, %v2806
        %v2832 = vpack.c.b16 %v2809, %v2808
        %v2833 = vpack.c.b16 %v2811, %v2810
        %v2834 = vpack.c.b16 %v2813, %v2812
        %v2835 = vpack.c.b16 %v2815, %v2814
        %v2836 = vpack.c.b16 %v2817, %v2816
        %v2837 = vpack.c.b16 %v2819, %v2818
        %v2838 = vpack.c.b16 %v2821, %v2820
        %v2839 = vpack.c.b16 %v2823, %v2822
        %2856 = vmatpush.bf16.msra.mxu0 %v2831
        %2857 = vmatpush.bf16.msra.mxu0 %v2830
        %2858 = vmatpush.bf16.msra.mxu0 %v2829
        %2859 = vmatpush.bf16.msra.mxu0 %v2828
        %2860 = vmatpush.bf16.msra.mxu0 %v2827
        %2861 = vmatpush.bf16.msra.mxu0 %v2826
        %2862 = vmatpush.bf16.msra.mxu0 %v2825
        %2863 = vmatpush.bf16.msra.mxu0 %v2824
        %2864 = vmatmul.bf16.gmra.mxu0 %v2718
        %v2865 = vpop.f32.mrf.mxu0
        %v2866 = vadd.f32 %v2759, %v2865
        %v2867 = vpop.f32.mrf.mxu0
        %v2868 = vadd.f32 %v2759, %v2867
        %2869 = vmatmul.bf16.gmra.mxu0 %v2720
        %v2870 = vpop.f32.mrf.mxu0
        %v2871 = vadd.f32 %v2759, %v2870
        %v2872 = vpop.f32.mrf.mxu0
        %v2873 = vadd.f32 %v2759, %v2872
        %2874 = vmatmul.bf16.gmra.mxu0 %v2722
        %v2875 = vpop.f32.mrf.mxu0
        %v2876 = vadd.f32 %v2759, %v2875
        %v2877 = vpop.f32.mrf.mxu0
        %v2878 = vadd.f32 %v2759, %v2877
        %2879 = vmatmul.bf16.gmra.mxu0 %v2724
        %v2880 = vpop.f32.mrf.mxu0
        %v2881 = vadd.f32 %v2759, %v2880
        %v2882 = vpop.f32.mrf.mxu0
        %v2883 = vadd.f32 %v2759, %v2882
        %2884 = vdwg.mxu0
        %2885 = vmatpush.bf16.msra.mxu0 %v2839
        %2886 = vmatpush.bf16.msra.mxu0 %v2838
        %2887 = vmatpush.bf16.msra.mxu0 %v2837
        %2888 = vmatpush.bf16.msra.mxu0 %v2836
        %2889 = vmatpush.bf16.msra.mxu0 %v2835
        %2890 = vmatpush.bf16.msra.mxu0 %v2834
        %2891 = vmatpush.bf16.msra.mxu0 %v2833
        %2892 = vmatpush.bf16.msra.mxu0 %v2832
        %2893 = vmatmul.bf16.gmra.mxu0 %v2719
        %v2894 = vpop.f32.mrf.mxu0
        %v2895 = vadd.f32 %v2866, %v2894
        %v2896 = vpop.f32.mrf.mxu0
        %v2897 = vadd.f32 %v2868, %v2896
        %2898 = vmatmul.bf16.gmra.mxu0 %v2721
        %v2899 = vpop.f32.mrf.mxu0
        %v2900 = vadd.f32 %v2871, %v2899
        %v2901 = vpop.f32.mrf.mxu0
        %v2902 = vadd.f32 %v2873, %v2901
        %2903 = vmatmul.bf16.gmra.mxu0 %v2723
        %v2904 = vpop.f32.mrf.mxu0
        %v2905 = vadd.f32 %v2876, %v2904
        %v2906 = vpop.f32.mrf.mxu0
        %v2907 = vadd.f32 %v2878, %v2906
        %2908 = vmatmul.bf16.gmra.mxu0 %v2725
        %v2909 = vpop.f32.mrf.mxu0
        %v2910 = vadd.f32 %v2881, %v2909
        %v2911 = vpop.f32.mrf.mxu0
        %v2912 = vadd.f32 %v2883, %v2911
        %2913 = vdwg.mxu0
        %v2914 = vadd.f32 %v2222, %v2895
        %v2915 = vadd.f32 %v2223, %v2897
        %v2916 = vadd.f32 %v2224, %v2900
        %v2917 = vadd.f32 %v2225, %v2902
        %v2918 = vadd.f32 %v2226, %v2905
        %v2919 = vadd.f32 %v2227, %v2907
        %v2920 = vadd.f32 %v2228, %v2910
        %v2921 = vadd.f32 %v2229, %v2912
        %v2922 = vld [vmem:[%s1 + $0x1] sm:$0x1]
        %v2923 = vld [vmem:[%s2 + $0x1] sm:$0x1]
        %2924 = vadd.xlane.f32.xlu0 %v2914
        %v2925 = vpop.xlane.xlu0 %2924
        %2926 = vadd.xlane.f32.xlu0 %v2915
        %v2927 = vpop.xlane.xlu0 %2926
        %2928 = vadd.xlane.f32.xlu0 %v2916
        %v2929 = vpop.xlane.xlu0 %2928
        %2930 = vadd.xlane.f32.xlu0 %v2917
        %v2931 = vpop.xlane.xlu0 %2930
        %2932 = vadd.xlane.f32.xlu0 %v2918
        %v2933 = vpop.xlane.xlu0 %2932
        %2934 = vadd.xlane.f32.xlu0 %v2919
        %v2935 = vpop.xlane.xlu0 %2934
        %2936 = vadd.xlane.f32.xlu0 %v2920
        %v2937 = vpop.xlane.xlu0 %2936
        %2938 = vadd.xlane.f32.xlu0 %v2921
        %v2939 = vpop.xlane.xlu0 %2938
        %v2940 = vmul.f32 %v2925, %v580
        %v2941 = vmul.f32 %v2927, %v580
        %v2942 = vmul.f32 %v2929, %v580
        %v2943 = vmul.f32 %v2931, %v580
        %v2944 = vmul.f32 %v2933, %v580
        %v2945 = vmul.f32 %v2935, %v580
        %v2946 = vmul.f32 %v2937, %v580
        %v2947 = vmul.f32 %v2939, %v580
        %v2948 = vsub.f32 %v2914, %v2940
        %v2949 = vsub.f32 %v2915, %v2941
        %v2950 = vsub.f32 %v2916, %v2942
        %v2951 = vsub.f32 %v2917, %v2943
        %v2952 = vsub.f32 %v2918, %v2944
        %v2953 = vsub.f32 %v2919, %v2945
        %v2954 = vsub.f32 %v2920, %v2946
        %v2955 = vsub.f32 %v2921, %v2947
        %v2956 = vmul.f32 %v2948, %v2948
        %v2957 = vmul.f32 %v2949, %v2949
        %v2958 = vmul.f32 %v2950, %v2950
        %v2959 = vmul.f32 %v2951, %v2951
        %v2960 = vmul.f32 %v2952, %v2952
        %v2961 = vmul.f32 %v2953, %v2953
        %v2962 = vmul.f32 %v2954, %v2954
        %v2963 = vmul.f32 %v2955, %v2955
        %2964 = vadd.xlane.f32.xlu0 %v2956
        %v2965 = vpop.xlane.xlu0 %2964
        %2966 = vadd.xlane.f32.xlu0 %v2957
        %v2967 = vpop.xlane.xlu0 %2966
        %2968 = vadd.xlane.f32.xlu0 %v2958
        %v2969 = vpop.xlane.xlu0 %2968
        %2970 = vadd.xlane.f32.xlu0 %v2959
        %v2971 = vpop.xlane.xlu0 %2970
        %2972 = vadd.xlane.f32.xlu0 %v2960
        %v2973 = vpop.xlane.xlu0 %2972
        %2974 = vadd.xlane.f32.xlu0 %v2961
        %v2975 = vpop.xlane.xlu0 %2974
        %2976 = vadd.xlane.f32.xlu0 %v2962
        %v2977 = vpop.xlane.xlu0 %2976
        %2978 = vadd.xlane.f32.xlu0 %v2963
        %v2979 = vpop.xlane.xlu0 %2978
        %v2980 = vmul.f32 %v2965, %v580
        %v2981 = vmul.f32 %v2967, %v580
        %v2982 = vmul.f32 %v2969, %v580
        %v2983 = vmul.f32 %v2971, %v580
        %v2984 = vmul.f32 %v2973, %v580
        %v2985 = vmul.f32 %v2975, %v580
        %v2986 = vmul.f32 %v2977, %v580
        %v2987 = vmul.f32 %v2979, %v580
        %v2988 = vadd.f32 %v2980, 1e-05
        %v2989 = vadd.f32 %v2981, 1e-05
        %v2990 = vadd.f32 %v2982, 1e-05
        %v2991 = vadd.f32 %v2983, 1e-05
        %v2992 = vadd.f32 %v2984, 1e-05
        %v2993 = vadd.f32 %v2985, 1e-05
        %v2994 = vadd.f32 %v2986, 1e-05
        %v2995 = vadd.f32 %v2987, 1e-05
        %v2996 = vrsqrt.pop %v2988
        %v2997 = vmul.f32 %v2996, %v2988
        %v2998 = vmul.f32 %v2997, %v2996
        %v2999 = vmul.f32 0.5, %v2998
        %v3000 = vsub.f32 1.5, %v2999
        %v3001 = vmul.f32 %v2996, %v3000
        %vm3002 = vweird.f32 %v2988
        %vm3003 = vweird.f32 %v2996
        %vm3004 = vmor %vm3002, %vm3003
        %v3005 = vsel %vm3004, %v2996, %v3001
        %v3006 = vrsqrt.pop %v2989
        %v3007 = vmul.f32 %v3006, %v2989
        %v3008 = vmul.f32 %v3007, %v3006
        %v3009 = vmul.f32 0.5, %v3008
        %v3010 = vsub.f32 1.5, %v3009
        %v3011 = vmul.f32 %v3006, %v3010
        %vm3012 = vweird.f32 %v2989
        %vm3013 = vweird.f32 %v3006
        %vm3014 = vmor %vm3012, %vm3013
        %v3015 = vsel %vm3014, %v3006, %v3011
        %v3016 = vrsqrt.pop %v2990
        %v3017 = vmul.f32 %v3016, %v2990
        %v3018 = vmul.f32 %v3017, %v3016
        %v3019 = vmul.f32 0.5, %v3018
        %v3020 = vsub.f32 1.5, %v3019
        %v3021 = vmul.f32 %v3016, %v3020
        %vm3022 = vweird.f32 %v2990
        %vm3023 = vweird.f32 %v3016
        %vm3024 = vmor %vm3022, %vm3023
        %v3025 = vsel %vm3024, %v3016, %v3021
        %v3026 = vrsqrt.pop %v2991
        %v3027 = vmul.f32 %v3026, %v2991
        %v3028 = vmul.f32 %v3027, %v3026
        %v3029 = vmul.f32 0.5, %v3028
        %v3030 = vsub.f32 1.5, %v3029
        %v3031 = vmul.f32 %v3026, %v3030
        %vm3032 = vweird.f32 %v2991
        %vm3033 = vweird.f32 %v3026
        %vm3034 = vmor %vm3032, %vm3033
        %v3035 = vsel %vm3034, %v3026, %v3031
        %v3036 = vrsqrt.pop %v2992
        %v3037 = vmul.f32 %v3036, %v2992
        %v3038 = vmul.f32 %v3037, %v3036
        %v3039 = vmul.f32 0.5, %v3038
        %v3040 = vsub.f32 1.5, %v3039
        %v3041 = vmul.f32 %v3036, %v3040
        %vm3042 = vweird.f32 %v2992
        %vm3043 = vweird.f32 %v3036
        %vm3044 = vmor %vm3042, %vm3043
        %v3045 = vsel %vm3044, %v3036, %v3041
        %v3046 = vrsqrt.pop %v2993
        %v3047 = vmul.f32 %v3046, %v2993
        %v3048 = vmul.f32 %v3047, %v3046
        %v3049 = vmul.f32 0.5, %v3048
        %v3050 = vsub.f32 1.5, %v3049
        %v3051 = vmul.f32 %v3046, %v3050
        %vm3052 = vweird.f32 %v2993
        %vm3053 = vweird.f32 %v3046
        %vm3054 = vmor %vm3052, %vm3053
        %v3055 = vsel %vm3054, %v3046, %v3051
        %v3056 = vrsqrt.pop %v2994
        %v3057 = vmul.f32 %v3056, %v2994
        %v3058 = vmul.f32 %v3057, %v3056
        %v3059 = vmul.f32 0.5, %v3058
        %v3060 = vsub.f32 1.5, %v3059
        %v3061 = vmul.f32 %v3056, %v3060
        %vm3062 = vweird.f32 %v2994
        %vm3063 = vweird.f32 %v3056
        %vm3064 = vmor %vm3062, %vm3063
        %v3065 = vsel %vm3064, %v3056, %v3061
        %v3066 = vrsqrt.pop %v2995
        %v3067 = vmul.f32 %v3066, %v2995
        %v3068 = vmul.f32 %v3067, %v3066
        %v3069 = vmul.f32 0.5, %v3068
        %v3070 = vsub.f32 1.5, %v3069
        %v3071 = vmul.f32 %v3066, %v3070
        %vm3072 = vweird.f32 %v2995
        %vm3073 = vweird.f32 %v3066
        %vm3074 = vmor %vm3072, %vm3073
        %v3075 = vsel %vm3074, %v3066, %v3071
        %v3076 = vmul.f32 %v2948, %v3005
        %v3077 = vmul.f32 %v2949, %v3015
        %v3078 = vmul.f32 %v2950, %v3025
        %v3079 = vmul.f32 %v2951, %v3035
        %v3080 = vmul.f32 %v2952, %v3045
        %v3081 = vmul.f32 %v2953, %v3055
        %v3082 = vmul.f32 %v2954, %v3065
        %v3083 = vmul.f32 %v2955, %v3075
        %v3084 = vperm.slane %v2922, 0
        %v3085 = vmul.f32 %v3076, %v3084
        %v3086 = vmul.f32 %v3077, %v3084
        %v3087 = vmul.f32 %v3078, %v3084
        %v3088 = vmul.f32 %v3079, %v3084
        %v3089 = vmul.f32 %v3080, %v3084
        %v3090 = vmul.f32 %v3081, %v3084
        %v3091 = vmul.f32 %v3082, %v3084
        %v3092 = vmul.f32 %v3083, %v3084
        %v3093 = vperm.slane %v2923, 0
        %v3094 = vadd.f32 %v3085, %v3093
        %v3095 = vadd.f32 %v3086, %v3093
        %v3096 = vadd.f32 %v3087, %v3093
        %v3097 = vadd.f32 %v3088, %v3093
        %v3098 = vadd.f32 %v3089, %v3093
        %v3099 = vadd.f32 %v3090, %v3093
        %v3100 = vadd.f32 %v3091, %v3093
        %v3101 = vadd.f32 %v3092, %v3093
        %v3102 = vpack.c.bf16 %v3095, %v3094
        %v3103 = vpack.c.bf16 %v3097, %v3096
        %v3104 = vpack.c.bf16 %v3099, %v3098
        %v3105 = vpack.c.bf16 %v3101, %v3100
        %s3106 = scalar_lea.vmem %s3, 192
        %v3107 = vld [vmem:[%s3106] sm:$0xff]
        %v3108 = vld [vmem:[%s3106 + $0x8] sm:$0xf]
        %v3109 = vld [vmem:[%s3106 + $0xc] sm:$0xff]
        %v3110 = vld [vmem:[%s3106 + $0x14] sm:$0xf]
        %v3111 = vld [vmem:[%s3106 + $0x18] sm:$0xff]
        %v3112 = vld [vmem:[%s3106 + $0x20] sm:$0xf]
        %v3113 = vld [vmem:[%s3106 + $0x24] sm:$0xff]
        %v3114 = vld [vmem:[%s3106 + $0x2c] sm:$0xf]
        %v3115 = vld [vmem:[%s3106 + $0x30] sm:$0xff]
        %v3116 = vld [vmem:[%s3106 + $0x38] sm:$0xf]
        %v3117 = vld [vmem:[%s3106 + $0x3c] sm:$0xff]
        %v3118 = vld [vmem:[%s3106 + $0x44] sm:$0xf]
        %v3119 = vld [vmem:[%s3106 + $0x48] sm:$0xff]
        %v3120 = vld [vmem:[%s3106 + $0x50] sm:$0xf]
        %v3121 = vld [vmem:[%s3106 + $0x54] sm:$0xff]
        %v3122 = vld [vmem:[%s3106 + $0x5c] sm:$0xf]
        %v3123 = vld [vmem:[%s3106 + $0x60] sm:$0xff]
        %v3124 = vld [vmem:[%s3106 + $0x68] sm:$0xf]
        %v3125 = vld [vmem:[%s3106 + $0x6c] sm:$0xff]
        %v3126 = vld [vmem:[%s3106 + $0x74] sm:$0xf]
        %v3127 = vld [vmem:[%s3106 + $0x78] sm:$0xff]
        %v3128 = vld [vmem:[%s3106 + $0x80] sm:$0xf]
        %v3129 = vld [vmem:[%s3106 + $0x84] sm:$0xff]
        %v3130 = vld [vmem:[%s3106 + $0x8c] sm:$0xf]
        %v3131 = vld [vmem:[%s3106 + $0x90] sm:$0xff]
        %v3132 = vld [vmem:[%s3106 + $0x98] sm:$0xf]
        %v3133 = vld [vmem:[%s3106 + $0x9c] sm:$0xff]
        %v3134 = vld [vmem:[%s3106 + $0xa4] sm:$0xf]
        %v3135 = vld [vmem:[%s3106 + $0xa8] sm:$0xff]
        %v3136 = vld [vmem:[%s3106 + $0xb0] sm:$0xf]
        %v3137 = vld [vmem:[%s3106 + $0xb4] sm:$0xff]
        %v3138 = vld [vmem:[%s3106 + $0xbc] sm:$0xf]
        %s3139 = scalar_lea.vmem %s4, 1
        %v3140 = vld [vmem:[%s3139] ss:$2 sm:$0x7]
        %v3142 = vperm.slane %v3140, 0
        %v3143 = vperm.slane %v3140, 1
        %v3144 = vperm.slane %v3140, 2
        %v3180 = vunpack.c.l.b16 %v3107
        %v3181 = vunpack.c.h.b16 %v3107
        %v3182 = vunpack.c.l.b16 %v3108
        %v3183 = vunpack.c.l.b16 %v3109
        %v3184 = vunpack.c.h.b16 %v3109
        %v3185 = vunpack.c.l.b16 %v3110
        %v3186 = vunpack.c.l.b16 %v3111
        %v3187 = vunpack.c.h.b16 %v3111
        %v3188 = vunpack.c.l.b16 %v3112
        %v3189 = vunpack.c.l.b16 %v3113
        %v3190 = vunpack.c.h.b16 %v3113
        %v3191 = vunpack.c.l.b16 %v3114
        %v3192 = vunpack.c.l.b16 %v3115
        %v3193 = vunpack.c.h.b16 %v3115
        %v3194 = vunpack.c.l.b16 %v3116
        %v3195 = vunpack.c.l.b16 %v3117
        %v3196 = vunpack.c.h.b16 %v3117
        %v3197 = vunpack.c.l.b16 %v3118
        %v3198 = vunpack.c.l.b16 %v3119
        %v3199 = vunpack.c.h.b16 %v3119
        %v3200 = vunpack.c.l.b16 %v3120
        %v3201 = vunpack.c.l.b16 %v3121
        %v3202 = vunpack.c.h.b16 %v3121
        %v3203 = vunpack.c.l.b16 %v3122
        %v3204 = vunpack.c.l.b16 %v3123
        %v3205 = vunpack.c.h.b16 %v3123
        %v3206 = vunpack.c.l.b16 %v3124
        %v3207 = vunpack.c.l.b16 %v3125
        %v3208 = vunpack.c.h.b16 %v3125
        %v3209 = vunpack.c.l.b16 %v3126
        %v3210 = vunpack.c.l.b16 %v3127
        %v3211 = vunpack.c.h.b16 %v3127
        %v3212 = vunpack.c.l.b16 %v3128
        %v3213 = vunpack.c.l.b16 %v3129
        %v3214 = vunpack.c.h.b16 %v3129
        %v3215 = vunpack.c.l.b16 %v3130
        %v3216 = vunpack.c.l.b16 %v3131
        %v3217 = vunpack.c.h.b16 %v3131
        %v3218 = vunpack.c.l.b16 %v3132
        %v3219 = vunpack.c.l.b16 %v3133
        %v3220 = vunpack.c.h.b16 %v3133
        %v3221 = vunpack.c.l.b16 %v3134
        %v3222 = vunpack.c.l.b16 %v3135
        %v3223 = vunpack.c.h.b16 %v3135
        %v3224 = vunpack.c.l.b16 %v3136
        %v3225 = vunpack.c.l.b16 %v3137
        %v3226 = vunpack.c.h.b16 %v3137
        %v3227 = vunpack.c.l.b16 %v3138
        %v3228 = vpack.c.b16 %v3183, %v3180
        %v3229 = vpack.c.b16 %v3184, %v3181
        %v3230 = vpack.c.b16 %v3185, %v3182
        %v3231 = vpack.c.b16 %v3189, %v3186
        %v3232 = vpack.c.b16 %v3190, %v3187
        %v3233 = vpack.c.b16 %v3191, %v3188
        %v3234 = vpack.c.b16 %v3195, %v3192
        %v3235 = vpack.c.b16 %v3196, %v3193
        %v3236 = vpack.c.b16 %v3197, %v3194
        %v3237 = vpack.c.b16 %v3201, %v3198
        %v3238 = vpack.c.b16 %v3202, %v3199
        %v3239 = vpack.c.b16 %v3203, %v3200
        %v3240 = vpack.c.b16 %v3207, %v3204
        %v3241 = vpack.c.b16 %v3208, %v3205
        %v3242 = vpack.c.b16 %v3209, %v3206
        %v3243 = vpack.c.b16 %v3213, %v3210
        %v3244 = vpack.c.b16 %v3214, %v3211
        %v3245 = vpack.c.b16 %v3215, %v3212
        %v3246 = vpack.c.b16 %v3219, %v3216
        %v3247 = vpack.c.b16 %v3220, %v3217
        %v3248 = vpack.c.b16 %v3221, %v3218
        %v3249 = vpack.c.b16 %v3225, %v3222
        %v3250 = vpack.c.b16 %v3226, %v3223
        %v3251 = vpack.c.b16 %v3227, %v3224
        %3276 = vmatpush.bf16.msra.mxu0 %v3249
        %3277 = vmatpush.bf16.msra.mxu0 %v3246
        %3278 = vmatpush.bf16.msra.mxu0 %v3243
        %3279 = vmatpush.bf16.msra.mxu0 %v3240
        %3280 = vmatpush.bf16.msra.mxu0 %v3237
        %3281 = vmatpush.bf16.msra.mxu0 %v3234
        %3282 = vmatpush.bf16.msra.mxu0 %v3231
        %3283 = vmatpush.bf16.msra.mxu0 %v3228
        %3284 = vmatmul.bf16.gmra.mxu0 %v3102
        %v3285 = vpop.f32.mrf.mxu0
        %v3286 = vadd.f32 %v3142, %v3285
        %v3287 = vpop.f32.mrf.mxu0
        %v3288 = vadd.f32 %v3142, %v3287
        %3289 = vmatmul.bf16.gmra.mxu0 %v3103
        %v3290 = vpop.f32.mrf.mxu0
        %v3291 = vadd.f32 %v3142, %v3290
        %v3292 = vpop.f32.mrf.mxu0
        %v3293 = vadd.f32 %v3142, %v3292
        %3294 = vmatmul.bf16.gmra.mxu0 %v3104
        %v3295 = vpop.f32.mrf.mxu0
        %v3296 = vadd.f32 %v3142, %v3295
        %v3297 = vpop.f32.mrf.mxu0
        %v3298 = vadd.f32 %v3142, %v3297
        %3299 = vmatmul.bf16.gmra.mxu0 %v3105
        %v3300 = vpop.f32.mrf.mxu0
        %v3301 = vadd.f32 %v3142, %v3300
        %v3302 = vpop.f32.mrf.mxu0
        %v3303 = vadd.f32 %v3142, %v3302
        %3304 = vdwg.mxu0
        %3305 = vmatpush.bf16.msra.mxu0 %v3250
        %3306 = vmatpush.bf16.msra.mxu0 %v3247
        %3307 = vmatpush.bf16.msra.mxu0 %v3244
        %3308 = vmatpush.bf16.msra.mxu0 %v3241
        %3309 = vmatpush.bf16.msra.mxu0 %v3238
        %3310 = vmatpush.bf16.msra.mxu0 %v3235
        %3311 = vmatpush.bf16.msra.mxu0 %v3232
        %3312 = vmatpush.bf16.msra.mxu0 %v3229
        %3313 = vmatmul.bf16.gmra.mxu0 %v3102
        %v3314 = vpop.f32.mrf.mxu0
        %v3315 = vadd.f32 %v3143, %v3314
        %v3316 = vpop.f32.mrf.mxu0
        %v3317 = vadd.f32 %v3143, %v3316
        %3318 = vmatmul.bf16.gmra.mxu0 %v3103
        %v3319 = vpop.f32.mrf.mxu0
        %v3320 = vadd.f32 %v3143, %v3319
        %v3321 = vpop.f32.mrf.mxu0
        %v3322 = vadd.f32 %v3143, %v3321
        %3323 = vmatmul.bf16.gmra.mxu0 %v3104
        %v3324 = vpop.f32.mrf.mxu0
        %v3325 = vadd.f32 %v3143, %v3324
        %v3326 = vpop.f32.mrf.mxu0
        %v3327 = vadd.f32 %v3143, %v3326
        %3328 = vmatmul.bf16.gmra.mxu0 %v3105
        %v3329 = vpop.f32.mrf.mxu0
        %v3330 = vadd.f32 %v3143, %v3329
        %v3331 = vpop.f32.mrf.mxu0
        %v3332 = vadd.f32 %v3143, %v3331
        %3333 = vdwg.mxu0
        %3334 = vmatpush.bf16.msra.mxu0 %v3251
        %3335 = vmatpush.bf16.msra.mxu0 %v3248
        %3336 = vmatpush.bf16.msra.mxu0 %v3245
        %3337 = vmatpush.bf16.msra.mxu0 %v3242
        %3338 = vmatpush.bf16.msra.mxu0 %v3239
        %3339 = vmatpush.bf16.msra.mxu0 %v3236
        %3340 = vmatpush.bf16.msra.mxu0 %v3233
        %3341 = vmatpush.bf16.msra.mxu0 %v3230
        %3342 = vmatmul.bf16.gmra.mxu0 %v3102
        %v3343 = vpop.f32.mrf.mxu0
        %v3344 = vadd.f32 %v3144, %v3343
        %v3345 = vpop.f32.mrf.mxu0
        %v3346 = vadd.f32 %v3144, %v3345
        %3347 = vmatmul.bf16.gmra.mxu0 %v3103
        %v3348 = vpop.f32.mrf.mxu0
        %v3349 = vadd.f32 %v3144, %v3348
        %v3350 = vpop.f32.mrf.mxu0
        %v3351 = vadd.f32 %v3144, %v3350
        %3352 = vmatmul.bf16.gmra.mxu0 %v3104
        %v3353 = vpop.f32.mrf.mxu0
        %v3354 = vadd.f32 %v3144, %v3353
        %v3355 = vpop.f32.mrf.mxu0
        %v3356 = vadd.f32 %v3144, %v3355
        %3357 = vmatmul.bf16.gmra.mxu0 %v3105
        %v3358 = vpop.f32.mrf.mxu0
        %v3359 = vadd.f32 %v3144, %v3358
        %v3360 = vpop.f32.mrf.mxu0
        %v3361 = vadd.f32 %v3144, %v3360
        %3362 = vdwg.mxu0
        %v3363 = vpack.c.bf16 %v3286, %v3286
        %v3364 = vpack.c.bf16 %v3288, %v3288
        %v3365 = vpack.c.bf16 %v3291, %v3291
        %v3366 = vpack.c.bf16 %v3293, %v3293
        %v3367 = vpack.c.bf16 %v3296, %v3296
        %v3368 = vpack.c.bf16 %v3298, %v3298
        %v3369 = vpack.c.bf16 %v3301, %v3301
        %v3370 = vpack.c.bf16 %v3303, %v3303
        %v3371 = vpack.c.bf16 %v3315, %v3315
        %v3372 = vpack.c.bf16 %v3317, %v3317
        %v3373 = vpack.c.bf16 %v3320, %v3320
        %v3374 = vpack.c.bf16 %v3322, %v3322
        %v3375 = vpack.c.bf16 %v3325, %v3325
        %v3376 = vpack.c.bf16 %v3327, %v3327
        %v3377 = vpack.c.bf16 %v3330, %v3330
        %v3378 = vpack.c.bf16 %v3332, %v3332
        %v3379 = vpack.c.bf16 %v3344, %v3344
        %v3380 = vpack.c.bf16 %v3346, %v3346
        %v3381 = vpack.c.bf16 %v3349, %v3349
        %v3382 = vpack.c.bf16 %v3351, %v3351
        %v3383 = vpack.c.bf16 %v3354, %v3354
        %v3384 = vpack.c.bf16 %v3356, %v3356
        %v3385 = vpack.c.bf16 %v3359, %v3359
        %v3386 = vpack.c.bf16 %v3361, %v3361
        %s3387 = scalar_lea.vmem %s5, 64
        %v3388 = vld [vmem:[%s3387] sm:$0xf]
        %v3389 = vld [vmem:[%s3387 + $0x4] sm:$0xf]
        %v3390 = vld [vmem:[%s3387 + $0x8] sm:$0xf]
        %v3391 = vld [vmem:[%s3387 + $0xc] sm:$0xf]
        %v3392 = vld [vmem:[%s3387 + $0x10] sm:$0xf]
        %v3393 = vld [vmem:[%s3387 + $0x14] sm:$0xf]
        %v3394 = vld [vmem:[%s3387 + $0x18] sm:$0xf]
        %v3395 = vld [vmem:[%s3387 + $0x1c] sm:$0xf]
        %v3396 = vld [vmem:[%s3387 + $0x20] sm:$0xf]
        %v3397 = vld [vmem:[%s3387 + $0x24] sm:$0xf]
        %v3398 = vld [vmem:[%s3387 + $0x28] sm:$0xf]
        %v3399 = vld [vmem:[%s3387 + $0x2c] sm:$0xf]
        %v3400 = vld [vmem:[%s3387 + $0x30] sm:$0xf]
        %v3401 = vld [vmem:[%s3387 + $0x34] sm:$0xf]
        %v3402 = vld [vmem:[%s3387 + $0x38] sm:$0xf]
        %v3403 = vld [vmem:[%s3387 + $0x3c] sm:$0xf]
        %v3412 = vunpack.c.l.b16 %v3363
        %v3413 = vunpack.c.l.b16 %v3364
        %v3414 = vunpack.c.l.b16 %v3365
        %v3415 = vunpack.c.l.b16 %v3366
        %v3416 = vunpack.c.l.b16 %v3367
        %v3417 = vunpack.c.l.b16 %v3368
        %v3418 = vunpack.c.l.b16 %v3369
        %v3419 = vunpack.c.l.b16 %v3370
        %v3420 = vpack.c.b16 %v3413, %v3412
        %v3421 = vpack.c.b16 %v3415, %v3414
        %v3422 = vpack.c.b16 %v3417, %v3416
        %v3423 = vpack.c.b16 %v3419, %v3418
        %v3432 = vunpack.c.l.b16 %v3371
        %v3433 = vunpack.c.l.b16 %v3372
        %v3434 = vunpack.c.l.b16 %v3373
        %v3435 = vunpack.c.l.b16 %v3374
        %v3436 = vunpack.c.l.b16 %v3375
        %v3437 = vunpack.c.l.b16 %v3376
        %v3438 = vunpack.c.l.b16 %v3377
        %v3439 = vunpack.c.l.b16 %v3378
        %v3440 = vpack.c.b16 %v3433, %v3432
        %v3441 = vpack.c.b16 %v3435, %v3434
        %v3442 = vpack.c.b16 %v3437, %v3436
        %v3443 = vpack.c.b16 %v3439, %v3438
        %v3445 = vsel %vm1082, %v3420, 0
        %v3448 = vsel %vm1082, %v3421, 0
        %v3451 = vsel %vm1082, %v3422, 0
        %v3454 = vsel %vm1082, %v3423, 0
        %v3457 = vsel %vm1082, %v3440, 0
        %v3460 = vsel %vm1082, %v3441, 0
        %v3463 = vsel %vm1082, %v3442, 0
        %v3466 = vsel %vm1082, %v3443, 0
        %3468 = vmatpush.bf16.xpose.msra.mxu0 0
        %3469 = vmatpush.bf16.xpose.msra.mxu0 0
        %3470 = vmatpush.bf16.xpose.msra.mxu0 0
        %3471 = vmatpush.bf16.xpose.msra.mxu0 0
        %3472 = vmatpush.bf16.xpose.msra.mxu0 %v3466
        %3473 = vmatpush.bf16.xpose.msra.mxu0 %v3463
        %3474 = vmatpush.bf16.xpose.msra.mxu0 %v3460
        %3475 = vmatpush.bf16.xpose.msra.mxu0 %v3457
        %3476 = vmatmul.bf16.gmra.mxu0 %v3445
        %v3477 = vpop.f32.mrf.mxu0
        %v3478 = vadd.f32 0.0, %v3477
        %v3479 = vpop.f32.mrf.mxu0
        %v3480 = vadd.f32 0.0, %v3479
        %3481 = vmatmul.bf16.gmra.mxu0 %v3448
        %v3482 = vpop.f32.mrf.mxu0
        %v3483 = vadd.f32 0.0, %v3482
        %v3484 = vpop.f32.mrf.mxu0
        %v3485 = vadd.f32 0.0, %v3484
        %3486 = vmatmul.bf16.gmra.mxu0 %v3451
        %v3487 = vpop.f32.mrf.mxu0
        %v3488 = vadd.f32 0.0, %v3487
        %v3489 = vpop.f32.mrf.mxu0
        %v3490 = vadd.f32 0.0, %v3489
        %3491 = vmatmul.bf16.gmra.mxu0 %v3454
        %v3492 = vpop.f32.mrf.mxu0
        %v3493 = vadd.f32 0.0, %v3492
        %v3494 = vpop.f32.mrf.mxu0
        %v3495 = vadd.f32 0.0, %v3494
        %3496 = vdwg.mxu0
        %v3497 = vmul.f32 %v3478, 0.17677669
        %v3498 = vmul.f32 %v3480, 0.17677669
        %v3499 = vmul.f32 %v3483, 0.17677669
        %v3500 = vmul.f32 %v3485, 0.17677669
        %v3501 = vmul.f32 %v3488, 0.17677669
        %v3502 = vmul.f32 %v3490, 0.17677669
        %v3503 = vmul.f32 %v3493, 0.17677669
        %v3504 = vmul.f32 %v3495, 0.17677669
        %v3505 = vsel %vm1144, %v3497, -inf
        %3506 = vmax.xlane.f32.xlu0 %v3505
        %v3507 = vpop.xlane.xlu0 %3506
        %v3508 = vsel %vm1144, %v3498, -inf
        %3509 = vmax.xlane.f32.xlu0 %v3508
        %v3510 = vpop.xlane.xlu0 %3509
        %v3511 = vsel %vm1144, %v3499, -inf
        %3512 = vmax.xlane.f32.xlu0 %v3511
        %v3513 = vpop.xlane.xlu0 %3512
        %v3514 = vsel %vm1144, %v3500, -inf
        %3515 = vmax.xlane.f32.xlu0 %v3514
        %v3516 = vpop.xlane.xlu0 %3515
        %v3517 = vsel %vm1144, %v3501, -inf
        %3518 = vmax.xlane.f32.xlu0 %v3517
        %v3519 = vpop.xlane.xlu0 %3518
        %v3520 = vsel %vm1144, %v3502, -inf
        %3521 = vmax.xlane.f32.xlu0 %v3520
        %v3522 = vpop.xlane.xlu0 %3521
        %v3523 = vsel %vm1144, %v3503, -inf
        %3524 = vmax.xlane.f32.xlu0 %v3523
        %v3525 = vpop.xlane.xlu0 %3524
        %v3526 = vsel %vm1144, %v3504, -inf
        %3527 = vmax.xlane.f32.xlu0 %v3526
        %v3528 = vpop.xlane.xlu0 %3527
        %v3529 = vsub.f32 %v3497, %v3507
        %v3530 = vsub.f32 %v3498, %v3510
        %v3531 = vsub.f32 %v3499, %v3513
        %v3532 = vsub.f32 %v3500, %v3516
        %v3533 = vsub.f32 %v3501, %v3519
        %v3534 = vsub.f32 %v3502, %v3522
        %v3535 = vsub.f32 %v3503, %v3525
        %v3536 = vsub.f32 %v3504, %v3528
        %v3537 = vmul.f32 %v3529, 1.442695
        %v3538 = vpow.pop %v3537
        %v3539 = vmul.f32 %v3530, 1.442695
        %v3540 = vpow.pop %v3539
        %v3541 = vmul.f32 %v3531, 1.442695
        %v3542 = vpow.pop %v3541
        %v3543 = vmul.f32 %v3532, 1.442695
        %v3544 = vpow.pop %v3543
        %v3545 = vmul.f32 %v3533, 1.442695
        %v3546 = vpow.pop %v3545
        %v3547 = vmul.f32 %v3534, 1.442695
        %v3548 = vpow.pop %v3547
        %v3549 = vmul.f32 %v3535, 1.442695
        %v3550 = vpow.pop %v3549
        %v3551 = vmul.f32 %v3536, 1.442695
        %v3552 = vpow.pop %v3551
        %v3553 = vsel %vm1144, %v3538, 0.0
        %3554 = vadd.xlane.f32.xlu0 %v3553
        %v3555 = vpop.xlane.xlu0 %3554
        %v3556 = vsel %vm1144, %v3540, 0.0
        %3557 = vadd.xlane.f32.xlu0 %v3556
        %v3558 = vpop.xlane.xlu0 %3557
        %v3559 = vsel %vm1144, %v3542, 0.0
        %3560 = vadd.xlane.f32.xlu0 %v3559
        %v3561 = vpop.xlane.xlu0 %3560
        %v3562 = vsel %vm1144, %v3544, 0.0
        %3563 = vadd.xlane.f32.xlu0 %v3562
        %v3564 = vpop.xlane.xlu0 %3563
        %v3565 = vsel %vm1144, %v3546, 0.0
        %3566 = vadd.xlane.f32.xlu0 %v3565
        %v3567 = vpop.xlane.xlu0 %3566
        %v3568 = vsel %vm1144, %v3548, 0.0
        %3569 = vadd.xlane.f32.xlu0 %v3568
        %v3570 = vpop.xlane.xlu0 %3569
        %v3571 = vsel %vm1144, %v3550, 0.0
        %3572 = vadd.xlane.f32.xlu0 %v3571
        %v3573 = vpop.xlane.xlu0 %3572
        %v3574 = vsel %vm1144, %v3552, 0.0
        %3575 = vadd.xlane.f32.xlu0 %v3574
        %v3576 = vpop.xlane.xlu0 %3575
        %v3577 = vrcp.pop %v3555
        %v3578 = vrcp.pop %v3558
        %v3579 = vrcp.pop %v3561
        %v3580 = vrcp.pop %v3564
        %v3581 = vrcp.pop %v3567
        %v3582 = vrcp.pop %v3570
        %v3583 = vrcp.pop %v3573
        %v3584 = vrcp.pop %v3576
        %v3585 = vmul.f32 %v3538, %v3577
        %v3586 = vmul.f32 %v3540, %v3578
        %v3587 = vmul.f32 %v3542, %v3579
        %v3588 = vmul.f32 %v3544, %v3580
        %v3589 = vmul.f32 %v3546, %v3581
        %v3590 = vmul.f32 %v3548, %v3582
        %v3591 = vmul.f32 %v3550, %v3583
        %v3592 = vmul.f32 %v3552, %v3584
        %v3593 = vpack.c.bf16 %v3586, %v3585
        %v3594 = vpack.c.bf16 %v3588, %v3587
        %v3595 = vpack.c.bf16 %v3590, %v3589
        %v3596 = vpack.c.bf16 %v3592, %v3591
        %v3605 = vunpack.c.l.b16 %v3379
        %v3606 = vunpack.c.l.b16 %v3380
        %v3607 = vunpack.c.l.b16 %v3381
        %v3608 = vunpack.c.l.b16 %v3382
        %v3609 = vunpack.c.l.b16 %v3383
        %v3610 = vunpack.c.l.b16 %v3384
        %v3611 = vunpack.c.l.b16 %v3385
        %v3612 = vunpack.c.l.b16 %v3386
        %v3613 = vpack.c.b16 %v3606, %v3605
        %v3614 = vpack.c.b16 %v3608, %v3607
        %v3615 = vpack.c.b16 %v3610, %v3609
        %v3616 = vpack.c.b16 %v3612, %v3611
        %v3622 = vsel %vm1144, %v3593, 0
        %v3625 = vsel %vm1144, %v3594, 0
        %v3628 = vsel %vm1144, %v3595, 0
        %v3631 = vsel %vm1144, %v3596, 0
        %3633 = vmatpush.bf16.msra.mxu0 0
        %3634 = vmatpush.bf16.msra.mxu0 0
        %3635 = vmatpush.bf16.msra.mxu0 0
        %3636 = vmatpush.bf16.msra.mxu0 0
        %3637 = vmatpush.bf16.msra.mxu0 %v3616
        %3638 = vmatpush.bf16.msra.mxu0 %v3615
        %3639 = vmatpush.bf16.msra.mxu0 %v3614
        %3640 = vmatpush.bf16.msra.mxu0 %v3613
        %3641 = vmatmul.bf16.gmra.mxu0 %v3622
        %v3642 = vpop.f32.mrf.mxu0
        %v3643 = vadd.f32 0.0, %v3642
        %v3644 = vpop.f32.mrf.mxu0
        %v3645 = vadd.f32 0.0, %v3644
        %3646 = vmatmul.bf16.gmra.mxu0 %v3625
        %v3647 = vpop.f32.mrf.mxu0
        %v3648 = vadd.f32 0.0, %v3647
        %v3649 = vpop.f32.mrf.mxu0
        %v3650 = vadd.f32 0.0, %v3649
        %3651 = vmatmul.bf16.gmra.mxu0 %v3628
        %v3652 = vpop.f32.mrf.mxu0
        %v3653 = vadd.f32 0.0, %v3652
        %v3654 = vpop.f32.mrf.mxu0
        %v3655 = vadd.f32 0.0, %v3654
        %3656 = vmatmul.bf16.gmra.mxu0 %v3631
        %v3657 = vpop.f32.mrf.mxu0
        %v3658 = vadd.f32 0.0, %v3657
        %v3659 = vpop.f32.mrf.mxu0
        %v3660 = vadd.f32 0.0, %v3659
        %3661 = vdwg.mxu0
        %v3662 = vpack.c.bf16 %v3645, %v3643
        %v3663 = vpack.c.bf16 %v3650, %v3648
        %v3664 = vpack.c.bf16 %v3655, %v3653
        %v3665 = vpack.c.bf16 %v3660, %v3658
        %3666 = vrot.lane.b32.xlu0 %v3420, 96
        %v3667 = vpop.permute.xlu0 %3666
        %3668 = vrot.lane.b32.xlu0 %v3421, 96
        %v3669 = vpop.permute.xlu0 %3668
        %3670 = vrot.lane.b32.xlu0 %v3422, 96
        %v3671 = vpop.permute.xlu0 %3670
        %3672 = vrot.lane.b32.xlu0 %v3423, 96
        %v3673 = vpop.permute.xlu0 %3672
        %3674 = vrot.lane.b32.xlu0 %v3440, 96
        %v3675 = vpop.permute.xlu0 %3674
        %3676 = vrot.lane.b32.xlu0 %v3441, 96
        %v3677 = vpop.permute.xlu0 %3676
        %3678 = vrot.lane.b32.xlu0 %v3442, 96
        %v3679 = vpop.permute.xlu0 %3678
        %3680 = vrot.lane.b32.xlu0 %v3443, 96
        %v3681 = vpop.permute.xlu0 %3680
        %v3683 = vsel %vm1082, %v3667, 0
        %v3686 = vsel %vm1082, %v3669, 0
        %v3689 = vsel %vm1082, %v3671, 0
        %v3692 = vsel %vm1082, %v3673, 0
        %v3695 = vsel %vm1082, %v3675, 0
        %v3698 = vsel %vm1082, %v3677, 0
        %v3701 = vsel %vm1082, %v3679, 0
        %v3704 = vsel %vm1082, %v3681, 0
        %3706 = vmatpush.bf16.xpose.msra.mxu0 0
        %3707 = vmatpush.bf16.xpose.msra.mxu0 0
        %3708 = vmatpush.bf16.xpose.msra.mxu0 0
        %3709 = vmatpush.bf16.xpose.msra.mxu0 0
        %3710 = vmatpush.bf16.xpose.msra.mxu0 %v3704
        %3711 = vmatpush.bf16.xpose.msra.mxu0 %v3701
        %3712 = vmatpush.bf16.xpose.msra.mxu0 %v3698
        %3713 = vmatpush.bf16.xpose.msra.mxu0 %v3695
        %3714 = vmatmul.bf16.gmra.mxu0 %v3683
        %v3715 = vpop.f32.mrf.mxu0
        %v3716 = vadd.f32 0.0, %v3715
        %v3717 = vpop.f32.mrf.mxu0
        %v3718 = vadd.f32 0.0, %v3717
        %3719 = vmatmul.bf16.gmra.mxu0 %v3686
        %v3720 = vpop.f32.mrf.mxu0
        %v3721 = vadd.f32 0.0, %v3720
        %v3722 = vpop.f32.mrf.mxu0
        %v3723 = vadd.f32 0.0, %v3722
        %3724 = vmatmul.bf16.gmra.mxu0 %v3689
        %v3725 = vpop.f32.mrf.mxu0
        %v3726 = vadd.f32 0.0, %v3725
        %v3727 = vpop.f32.mrf.mxu0
        %v3728 = vadd.f32 0.0, %v3727
        %3729 = vmatmul.bf16.gmra.mxu0 %v3692
        %v3730 = vpop.f32.mrf.mxu0
        %v3731 = vadd.f32 0.0, %v3730
        %v3732 = vpop.f32.mrf.mxu0
        %v3733 = vadd.f32 0.0, %v3732
        %3734 = vdwg.mxu0
        %v3735 = vmul.f32 %v3716, 0.17677669
        %v3736 = vmul.f32 %v3718, 0.17677669
        %v3737 = vmul.f32 %v3721, 0.17677669
        %v3738 = vmul.f32 %v3723, 0.17677669
        %v3739 = vmul.f32 %v3726, 0.17677669
        %v3740 = vmul.f32 %v3728, 0.17677669
        %v3741 = vmul.f32 %v3731, 0.17677669
        %v3742 = vmul.f32 %v3733, 0.17677669
        %v3743 = vsel %vm1144, %v3735, -inf
        %3744 = vmax.xlane.f32.xlu0 %v3743
        %v3745 = vpop.xlane.xlu0 %3744
        %v3746 = vsel %vm1144, %v3736, -inf
        %3747 = vmax.xlane.f32.xlu0 %v3746
        %v3748 = vpop.xlane.xlu0 %3747
        %v3749 = vsel %vm1144, %v3737, -inf
        %3750 = vmax.xlane.f32.xlu0 %v3749
        %v3751 = vpop.xlane.xlu0 %3750
        %v3752 = vsel %vm1144, %v3738, -inf
        %3753 = vmax.xlane.f32.xlu0 %v3752
        %v3754 = vpop.xlane.xlu0 %3753
        %v3755 = vsel %vm1144, %v3739, -inf
        %3756 = vmax.xlane.f32.xlu0 %v3755
        %v3757 = vpop.xlane.xlu0 %3756
        %v3758 = vsel %vm1144, %v3740, -inf
        %3759 = vmax.xlane.f32.xlu0 %v3758
        %v3760 = vpop.xlane.xlu0 %3759
        %v3761 = vsel %vm1144, %v3741, -inf
        %3762 = vmax.xlane.f32.xlu0 %v3761
        %v3763 = vpop.xlane.xlu0 %3762
        %v3764 = vsel %vm1144, %v3742, -inf
        %3765 = vmax.xlane.f32.xlu0 %v3764
        %v3766 = vpop.xlane.xlu0 %3765
        %v3767 = vsub.f32 %v3735, %v3745
        %v3768 = vsub.f32 %v3736, %v3748
        %v3769 = vsub.f32 %v3737, %v3751
        %v3770 = vsub.f32 %v3738, %v3754
        %v3771 = vsub.f32 %v3739, %v3757
        %v3772 = vsub.f32 %v3740, %v3760
        %v3773 = vsub.f32 %v3741, %v3763
        %v3774 = vsub.f32 %v3742, %v3766
        %v3775 = vmul.f32 %v3767, 1.442695
        %v3776 = vpow.pop %v3775
        %v3777 = vmul.f32 %v3768, 1.442695
        %v3778 = vpow.pop %v3777
        %v3779 = vmul.f32 %v3769, 1.442695
        %v3780 = vpow.pop %v3779
        %v3781 = vmul.f32 %v3770, 1.442695
        %v3782 = vpow.pop %v3781
        %v3783 = vmul.f32 %v3771, 1.442695
        %v3784 = vpow.pop %v3783
        %v3785 = vmul.f32 %v3772, 1.442695
        %v3786 = vpow.pop %v3785
        %v3787 = vmul.f32 %v3773, 1.442695
        %v3788 = vpow.pop %v3787
        %v3789 = vmul.f32 %v3774, 1.442695
        %v3790 = vpow.pop %v3789
        %v3791 = vsel %vm1144, %v3776, 0.0
        %3792 = vadd.xlane.f32.xlu0 %v3791
        %v3793 = vpop.xlane.xlu0 %3792
        %v3794 = vsel %vm1144, %v3778, 0.0
        %3795 = vadd.xlane.f32.xlu0 %v3794
        %v3796 = vpop.xlane.xlu0 %3795
        %v3797 = vsel %vm1144, %v3780, 0.0
        %3798 = vadd.xlane.f32.xlu0 %v3797
        %v3799 = vpop.xlane.xlu0 %3798
        %v3800 = vsel %vm1144, %v3782, 0.0
        %3801 = vadd.xlane.f32.xlu0 %v3800
        %v3802 = vpop.xlane.xlu0 %3801
        %v3803 = vsel %vm1144, %v3784, 0.0
        %3804 = vadd.xlane.f32.xlu0 %v3803
        %v3805 = vpop.xlane.xlu0 %3804
        %v3806 = vsel %vm1144, %v3786, 0.0
        %3807 = vadd.xlane.f32.xlu0 %v3806
        %v3808 = vpop.xlane.xlu0 %3807
        %v3809 = vsel %vm1144, %v3788, 0.0
        %3810 = vadd.xlane.f32.xlu0 %v3809
        %v3811 = vpop.xlane.xlu0 %3810
        %v3812 = vsel %vm1144, %v3790, 0.0
        %3813 = vadd.xlane.f32.xlu0 %v3812
        %v3814 = vpop.xlane.xlu0 %3813
        %v3815 = vrcp.pop %v3793
        %v3816 = vrcp.pop %v3796
        %v3817 = vrcp.pop %v3799
        %v3818 = vrcp.pop %v3802
        %v3819 = vrcp.pop %v3805
        %v3820 = vrcp.pop %v3808
        %v3821 = vrcp.pop %v3811
        %v3822 = vrcp.pop %v3814
        %v3823 = vmul.f32 %v3776, %v3815
        %v3824 = vmul.f32 %v3778, %v3816
        %v3825 = vmul.f32 %v3780, %v3817
        %v3826 = vmul.f32 %v3782, %v3818
        %v3827 = vmul.f32 %v3784, %v3819
        %v3828 = vmul.f32 %v3786, %v3820
        %v3829 = vmul.f32 %v3788, %v3821
        %v3830 = vmul.f32 %v3790, %v3822
        %v3831 = vpack.c.bf16 %v3824, %v3823
        %v3832 = vpack.c.bf16 %v3826, %v3825
        %v3833 = vpack.c.bf16 %v3828, %v3827
        %v3834 = vpack.c.bf16 %v3830, %v3829
        %3835 = vrot.lane.b32.xlu0 %v3613, 96
        %v3836 = vpop.permute.xlu0 %3835
        %3837 = vrot.lane.b32.xlu0 %v3614, 96
        %v3838 = vpop.permute.xlu0 %3837
        %3839 = vrot.lane.b32.xlu0 %v3615, 96
        %v3840 = vpop.permute.xlu0 %3839
        %3841 = vrot.lane.b32.xlu0 %v3616, 96
        %v3842 = vpop.permute.xlu0 %3841
        %v3848 = vsel %vm1144, %v3831, 0
        %v3851 = vsel %vm1144, %v3832, 0
        %v3854 = vsel %vm1144, %v3833, 0
        %v3857 = vsel %vm1144, %v3834, 0
        %3859 = vmatpush.bf16.msra.mxu0 0
        %3860 = vmatpush.bf16.msra.mxu0 0
        %3861 = vmatpush.bf16.msra.mxu0 0
        %3862 = vmatpush.bf16.msra.mxu0 0
        %3863 = vmatpush.bf16.msra.mxu0 %v3842
        %3864 = vmatpush.bf16.msra.mxu0 %v3840
        %3865 = vmatpush.bf16.msra.mxu0 %v3838
        %3866 = vmatpush.bf16.msra.mxu0 %v3836
        %3867 = vmatmul.bf16.gmra.mxu0 %v3848
        %v3868 = vpop.f32.mrf.mxu0
        %v3869 = vadd.f32 0.0, %v3868
        %v3870 = vpop.f32.mrf.mxu0
        %v3871 = vadd.f32 0.0, %v3870
        %3872 = vmatmul.bf16.gmra.mxu0 %v3851
        %v3873 = vpop.f32.mrf.mxu0
        %v3874 = vadd.f32 0.0, %v3873
        %v3875 = vpop.f32.mrf.mxu0
        %v3876 = vadd.f32 0.0, %v3875
        %3877 = vmatmul.bf16.gmra.mxu0 %v3854
        %v3878 = vpop.f32.mrf.mxu0
        %v3879 = vadd.f32 0.0, %v3878
        %v3880 = vpop.f32.mrf.mxu0
        %v3881 = vadd.f32 0.0, %v3880
        %3882 = vmatmul.bf16.gmra.mxu0 %v3857
        %v3883 = vpop.f32.mrf.mxu0
        %v3884 = vadd.f32 0.0, %v3883
        %v3885 = vpop.f32.mrf.mxu0
        %v3886 = vadd.f32 0.0, %v3885
        %3887 = vdwg.mxu0
        %v3888 = vpack.c.bf16 %v3871, %v3869
        %v3889 = vpack.c.bf16 %v3876, %v3874
        %v3890 = vpack.c.bf16 %v3881, %v3879
        %v3891 = vpack.c.bf16 %v3886, %v3884
        %v3896 = vunpack.c.l.b16 %v3392
        %v3897 = vunpack.c.l.b16 %v3393
        %v3898 = vunpack.c.l.b16 %v3394
        %v3899 = vunpack.c.l.b16 %v3395
        %v3900 = vpack.c.b16 %v3897, %v3896
        %v3901 = vpack.c.b16 %v3899, %v3898
        %v3905 = vsel %vm1082, %v3888, 0
        %v3908 = vsel %vm1082, %v3889, 0
        %v3911 = vsel %vm1082, %v3890, 0
        %v3914 = vsel %vm1082, %v3891, 0
        %3916 = vmatpush.bf16.msra.mxu0 0
        %3917 = vmatpush.bf16.msra.mxu0 0
        %3918 = vmatpush.bf16.msra.mxu0 0
        %3919 = vmatpush.bf16.msra.mxu0 0
        %3920 = vmatpush.bf16.msra.mxu0 0
        %3921 = vmatpush.bf16.msra.mxu0 0
        %3922 = vmatpush.bf16.msra.mxu0 %v3901
        %3923 = vmatpush.bf16.msra.mxu0 %v3900
        %3924 = vmatmul.bf16.gmra.mxu0 %v3905
        %v3925 = vpop.f32.mrf.mxu0
        %v3926 = vadd.f32 0.0, %v3925
        %v3927 = vpop.f32.mrf.mxu0
        %v3928 = vadd.f32 0.0, %v3927
        %3929 = vmatmul.bf16.gmra.mxu0 %v3908
        %v3930 = vpop.f32.mrf.mxu0
        %v3931 = vadd.f32 0.0, %v3930
        %v3932 = vpop.f32.mrf.mxu0
        %v3933 = vadd.f32 0.0, %v3932
        %3934 = vmatmul.bf16.gmra.mxu0 %v3911
        %v3935 = vpop.f32.mrf.mxu0
        %v3936 = vadd.f32 0.0, %v3935
        %v3937 = vpop.f32.mrf.mxu0
        %v3938 = vadd.f32 0.0, %v3937
        %3939 = vmatmul.bf16.gmra.mxu0 %v3914
        %v3940 = vpop.f32.mrf.mxu0
        %v3941 = vadd.f32 0.0, %v3940
        %v3942 = vpop.f32.mrf.mxu0
        %v3943 = vadd.f32 0.0, %v3942
        %3944 = vdwg.mxu0
        %v3949 = vunpack.c.l.b16 %v3388
        %v3950 = vunpack.c.l.b16 %v3389
        %v3951 = vunpack.c.l.b16 %v3390
        %v3952 = vunpack.c.l.b16 %v3391
        %v3953 = vpack.c.b16 %v3950, %v3949
        %v3954 = vpack.c.b16 %v3952, %v3951
        %v3958 = vsel %vm1082, %v3662, 0
        %v3961 = vsel %vm1082, %v3663, 0
        %v3964 = vsel %vm1082, %v3664, 0
        %v3967 = vsel %vm1082, %v3665, 0
        %3969 = vmatpush.bf16.msra.mxu0 0
        %3970 = vmatpush.bf16.msra.mxu0 0
        %3971 = vmatpush.bf16.msra.mxu0 0
        %3972 = vmatpush.bf16.msra.mxu0 0
        %3973 = vmatpush.bf16.msra.mxu0 0
        %3974 = vmatpush.bf16.msra.mxu0 0
        %3975 = vmatpush.bf16.msra.mxu0 %v3954
        %3976 = vmatpush.bf16.msra.mxu0 %v3953
        %3977 = vmatmul.bf16.gmra.mxu0 %v3958
        %v3978 = vpop.f32.mrf.mxu0
        %v3979 = vadd.f32 %v3926, %v3978
        %v3980 = vpop.f32.mrf.mxu0
        %v3981 = vadd.f32 %v3928, %v3980
        %3982 = vmatmul.bf16.gmra.mxu0 %v3961
        %v3983 = vpop.f32.mrf.mxu0
        %v3984 = vadd.f32 %v3931, %v3983
        %v3985 = vpop.f32.mrf.mxu0
        %v3986 = vadd.f32 %v3933, %v3985
        %3987 = vmatmul.bf16.gmra.mxu0 %v3964
        %v3988 = vpop.f32.mrf.mxu0
        %v3989 = vadd.f32 %v3936, %v3988
        %v3990 = vpop.f32.mrf.mxu0
        %v3991 = vadd.f32 %v3938, %v3990
        %3992 = vmatmul.bf16.gmra.mxu0 %v3967
        %v3993 = vpop.f32.mrf.mxu0
        %v3994 = vadd.f32 %v3941, %v3993
        %v3995 = vpop.f32.mrf.mxu0
        %v3996 = vadd.f32 %v3943, %v3995
        %3997 = vdwg.mxu0
        %3998 = vrot.lane.b32.xlu0 %v3420, 64
        %v3999 = vpop.permute.xlu0 %3998
        %4000 = vrot.lane.b32.xlu0 %v3421, 64
        %v4001 = vpop.permute.xlu0 %4000
        %4002 = vrot.lane.b32.xlu0 %v3422, 64
        %v4003 = vpop.permute.xlu0 %4002
        %4004 = vrot.lane.b32.xlu0 %v3423, 64
        %v4005 = vpop.permute.xlu0 %4004
        %4006 = vrot.lane.b32.xlu0 %v3440, 64
        %v4007 = vpop.permute.xlu0 %4006
        %4008 = vrot.lane.b32.xlu0 %v3441, 64
        %v4009 = vpop.permute.xlu0 %4008
        %4010 = vrot.lane.b32.xlu0 %v3442, 64
        %v4011 = vpop.permute.xlu0 %4010
        %4012 = vrot.lane.b32.xlu0 %v3443, 64
        %v4013 = vpop.permute.xlu0 %4012
        %v4015 = vsel %vm1082, %v3999, 0
        %v4018 = vsel %vm1082, %v4001, 0
        %v4021 = vsel %vm1082, %v4003, 0
        %v4024 = vsel %vm1082, %v4005, 0
        %v4027 = vsel %vm1082, %v4007, 0
        %v4030 = vsel %vm1082, %v4009, 0
        %v4033 = vsel %vm1082, %v4011, 0
        %v4036 = vsel %vm1082, %v4013, 0
        %4038 = vmatpush.bf16.xpose.msra.mxu0 0
        %4039 = vmatpush.bf16.xpose.msra.mxu0 0
        %4040 = vmatpush.bf16.xpose.msra.mxu0 0
        %4041 = vmatpush.bf16.xpose.msra.mxu0 0
        %4042 = vmatpush.bf16.xpose.msra.mxu0 %v4036
        %4043 = vmatpush.bf16.xpose.msra.mxu0 %v4033
        %4044 = vmatpush.bf16.xpose.msra.mxu0 %v4030
        %4045 = vmatpush.bf16.xpose.msra.mxu0 %v4027
        %4046 = vmatmul.bf16.gmra.mxu0 %v4015
        %v4047 = vpop.f32.mrf.mxu0
        %v4048 = vadd.f32 0.0, %v4047
        %v4049 = vpop.f32.mrf.mxu0
        %v4050 = vadd.f32 0.0, %v4049
        %4051 = vmatmul.bf16.gmra.mxu0 %v4018
        %v4052 = vpop.f32.mrf.mxu0
        %v4053 = vadd.f32 0.0, %v4052
        %v4054 = vpop.f32.mrf.mxu0
        %v4055 = vadd.f32 0.0, %v4054
        %4056 = vmatmul.bf16.gmra.mxu0 %v4021
        %v4057 = vpop.f32.mrf.mxu0
        %v4058 = vadd.f32 0.0, %v4057
        %v4059 = vpop.f32.mrf.mxu0
        %v4060 = vadd.f32 0.0, %v4059
        %4061 = vmatmul.bf16.gmra.mxu0 %v4024
        %v4062 = vpop.f32.mrf.mxu0
        %v4063 = vadd.f32 0.0, %v4062
        %v4064 = vpop.f32.mrf.mxu0
        %v4065 = vadd.f32 0.0, %v4064
        %4066 = vdwg.mxu0
        %v4067 = vmul.f32 %v4048, 0.17677669
        %v4068 = vmul.f32 %v4050, 0.17677669
        %v4069 = vmul.f32 %v4053, 0.17677669
        %v4070 = vmul.f32 %v4055, 0.17677669
        %v4071 = vmul.f32 %v4058, 0.17677669
        %v4072 = vmul.f32 %v4060, 0.17677669
        %v4073 = vmul.f32 %v4063, 0.17677669
        %v4074 = vmul.f32 %v4065, 0.17677669
        %v4075 = vsel %vm1144, %v4067, -inf
        %4076 = vmax.xlane.f32.xlu0 %v4075
        %v4077 = vpop.xlane.xlu0 %4076
        %v4078 = vsel %vm1144, %v4068, -inf
        %4079 = vmax.xlane.f32.xlu0 %v4078
        %v4080 = vpop.xlane.xlu0 %4079
        %v4081 = vsel %vm1144, %v4069, -inf
        %4082 = vmax.xlane.f32.xlu0 %v4081
        %v4083 = vpop.xlane.xlu0 %4082
        %v4084 = vsel %vm1144, %v4070, -inf
        %4085 = vmax.xlane.f32.xlu0 %v4084
        %v4086 = vpop.xlane.xlu0 %4085
        %v4087 = vsel %vm1144, %v4071, -inf
        %4088 = vmax.xlane.f32.xlu0 %v4087
        %v4089 = vpop.xlane.xlu0 %4088
        %v4090 = vsel %vm1144, %v4072, -inf
        %4091 = vmax.xlane.f32.xlu0 %v4090
        %v4092 = vpop.xlane.xlu0 %4091
        %v4093 = vsel %vm1144, %v4073, -inf
        %4094 = vmax.xlane.f32.xlu0 %v4093
        %v4095 = vpop.xlane.xlu0 %4094
        %v4096 = vsel %vm1144, %v4074, -inf
        %4097 = vmax.xlane.f32.xlu0 %v4096
        %v4098 = vpop.xlane.xlu0 %4097
        %v4099 = vsub.f32 %v4067, %v4077
        %v4100 = vsub.f32 %v4068, %v4080
        %v4101 = vsub.f32 %v4069, %v4083
        %v4102 = vsub.f32 %v4070, %v4086
        %v4103 = vsub.f32 %v4071, %v4089
        %v4104 = vsub.f32 %v4072, %v4092
        %v4105 = vsub.f32 %v4073, %v4095
        %v4106 = vsub.f32 %v4074, %v4098
        %v4107 = vmul.f32 %v4099, 1.442695
        %v4108 = vpow.pop %v4107
        %v4109 = vmul.f32 %v4100, 1.442695
        %v4110 = vpow.pop %v4109
        %v4111 = vmul.f32 %v4101, 1.442695
        %v4112 = vpow.pop %v4111
        %v4113 = vmul.f32 %v4102, 1.442695
        %v4114 = vpow.pop %v4113
        %v4115 = vmul.f32 %v4103, 1.442695
        %v4116 = vpow.pop %v4115
        %v4117 = vmul.f32 %v4104, 1.442695
        %v4118 = vpow.pop %v4117
        %v4119 = vmul.f32 %v4105, 1.442695
        %v4120 = vpow.pop %v4119
        %v4121 = vmul.f32 %v4106, 1.442695
        %v4122 = vpow.pop %v4121
        %v4123 = vsel %vm1144, %v4108, 0.0
        %4124 = vadd.xlane.f32.xlu0 %v4123
        %v4125 = vpop.xlane.xlu0 %4124
        %v4126 = vsel %vm1144, %v4110, 0.0
        %4127 = vadd.xlane.f32.xlu0 %v4126
        %v4128 = vpop.xlane.xlu0 %4127
        %v4129 = vsel %vm1144, %v4112, 0.0
        %4130 = vadd.xlane.f32.xlu0 %v4129
        %v4131 = vpop.xlane.xlu0 %4130
        %v4132 = vsel %vm1144, %v4114, 0.0
        %4133 = vadd.xlane.f32.xlu0 %v4132
        %v4134 = vpop.xlane.xlu0 %4133
        %v4135 = vsel %vm1144, %v4116, 0.0
        %4136 = vadd.xlane.f32.xlu0 %v4135
        %v4137 = vpop.xlane.xlu0 %4136
        %v4138 = vsel %vm1144, %v4118, 0.0
        %4139 = vadd.xlane.f32.xlu0 %v4138
        %v4140 = vpop.xlane.xlu0 %4139
        %v4141 = vsel %vm1144, %v4120, 0.0
        %4142 = vadd.xlane.f32.xlu0 %v4141
        %v4143 = vpop.xlane.xlu0 %4142
        %v4144 = vsel %vm1144, %v4122, 0.0
        %4145 = vadd.xlane.f32.xlu0 %v4144
        %v4146 = vpop.xlane.xlu0 %4145
        %v4147 = vrcp.pop %v4125
        %v4148 = vrcp.pop %v4128
        %v4149 = vrcp.pop %v4131
        %v4150 = vrcp.pop %v4134
        %v4151 = vrcp.pop %v4137
        %v4152 = vrcp.pop %v4140
        %v4153 = vrcp.pop %v4143
        %v4154 = vrcp.pop %v4146
        %v4155 = vmul.f32 %v4108, %v4147
        %v4156 = vmul.f32 %v4110, %v4148
        %v4157 = vmul.f32 %v4112, %v4149
        %v4158 = vmul.f32 %v4114, %v4150
        %v4159 = vmul.f32 %v4116, %v4151
        %v4160 = vmul.f32 %v4118, %v4152
        %v4161 = vmul.f32 %v4120, %v4153
        %v4162 = vmul.f32 %v4122, %v4154
        %v4163 = vpack.c.bf16 %v4156, %v4155
        %v4164 = vpack.c.bf16 %v4158, %v4157
        %v4165 = vpack.c.bf16 %v4160, %v4159
        %v4166 = vpack.c.bf16 %v4162, %v4161
        %4167 = vrot.lane.b32.xlu0 %v3613, 64
        %v4168 = vpop.permute.xlu0 %4167
        %4169 = vrot.lane.b32.xlu0 %v3614, 64
        %v4170 = vpop.permute.xlu0 %4169
        %4171 = vrot.lane.b32.xlu0 %v3615, 64
        %v4172 = vpop.permute.xlu0 %4171
        %4173 = vrot.lane.b32.xlu0 %v3616, 64
        %v4174 = vpop.permute.xlu0 %4173
        %v4180 = vsel %vm1144, %v4163, 0
        %v4183 = vsel %vm1144, %v4164, 0
        %v4186 = vsel %vm1144, %v4165, 0
        %v4189 = vsel %vm1144, %v4166, 0
        %4191 = vmatpush.bf16.msra.mxu0 0
        %4192 = vmatpush.bf16.msra.mxu0 0
        %4193 = vmatpush.bf16.msra.mxu0 0
        %4194 = vmatpush.bf16.msra.mxu0 0
        %4195 = vmatpush.bf16.msra.mxu0 %v4174
        %4196 = vmatpush.bf16.msra.mxu0 %v4172
        %4197 = vmatpush.bf16.msra.mxu0 %v4170
        %4198 = vmatpush.bf16.msra.mxu0 %v4168
        %4199 = vmatmul.bf16.gmra.mxu0 %v4180
        %v4200 = vpop.f32.mrf.mxu0
        %v4201 = vadd.f32 0.0, %v4200
        %v4202 = vpop.f32.mrf.mxu0
        %v4203 = vadd.f32 0.0, %v4202
        %4204 = vmatmul.bf16.gmra.mxu0 %v4183
        %v4205 = vpop.f32.mrf.mxu0
        %v4206 = vadd.f32 0.0, %v4205
        %v4207 = vpop.f32.mrf.mxu0
        %v4208 = vadd.f32 0.0, %v4207
        %4209 = vmatmul.bf16.gmra.mxu0 %v4186
        %v4210 = vpop.f32.mrf.mxu0
        %v4211 = vadd.f32 0.0, %v4210
        %v4212 = vpop.f32.mrf.mxu0
        %v4213 = vadd.f32 0.0, %v4212
        %4214 = vmatmul.bf16.gmra.mxu0 %v4189
        %v4215 = vpop.f32.mrf.mxu0
        %v4216 = vadd.f32 0.0, %v4215
        %v4217 = vpop.f32.mrf.mxu0
        %v4218 = vadd.f32 0.0, %v4217
        %4219 = vdwg.mxu0
        %v4220 = vpack.c.bf16 %v4203, %v4201
        %v4221 = vpack.c.bf16 %v4208, %v4206
        %v4222 = vpack.c.bf16 %v4213, %v4211
        %v4223 = vpack.c.bf16 %v4218, %v4216
        %v4228 = vunpack.c.l.b16 %v3396
        %v4229 = vunpack.c.l.b16 %v3397
        %v4230 = vunpack.c.l.b16 %v3398
        %v4231 = vunpack.c.l.b16 %v3399
        %v4232 = vpack.c.b16 %v4229, %v4228
        %v4233 = vpack.c.b16 %v4231, %v4230
        %v4237 = vsel %vm1082, %v4220, 0
        %v4240 = vsel %vm1082, %v4221, 0
        %v4243 = vsel %vm1082, %v4222, 0
        %v4246 = vsel %vm1082, %v4223, 0
        %4248 = vmatpush.bf16.msra.mxu0 0
        %4249 = vmatpush.bf16.msra.mxu0 0
        %4250 = vmatpush.bf16.msra.mxu0 0
        %4251 = vmatpush.bf16.msra.mxu0 0
        %4252 = vmatpush.bf16.msra.mxu0 0
        %4253 = vmatpush.bf16.msra.mxu0 0
        %4254 = vmatpush.bf16.msra.mxu0 %v4233
        %4255 = vmatpush.bf16.msra.mxu0 %v4232
        %4256 = vmatmul.bf16.gmra.mxu0 %v4237
        %v4257 = vpop.f32.mrf.mxu0
        %v4258 = vadd.f32 0.0, %v4257
        %v4259 = vpop.f32.mrf.mxu0
        %v4260 = vadd.f32 0.0, %v4259
        %4261 = vmatmul.bf16.gmra.mxu0 %v4240
        %v4262 = vpop.f32.mrf.mxu0
        %v4263 = vadd.f32 0.0, %v4262
        %v4264 = vpop.f32.mrf.mxu0
        %v4265 = vadd.f32 0.0, %v4264
        %4266 = vmatmul.bf16.gmra.mxu0 %v4243
        %v4267 = vpop.f32.mrf.mxu0
        %v4268 = vadd.f32 0.0, %v4267
        %v4269 = vpop.f32.mrf.mxu0
        %v4270 = vadd.f32 0.0, %v4269
        %4271 = vmatmul.bf16.gmra.mxu0 %v4246
        %v4272 = vpop.f32.mrf.mxu0
        %v4273 = vadd.f32 0.0, %v4272
        %v4274 = vpop.f32.mrf.mxu0
        %v4275 = vadd.f32 0.0, %v4274
        %4276 = vdwg.mxu0
        %v4277 = vadd.f32 %v3979, %v4258
        %v4278 = vadd.f32 %v3981, %v4260
        %v4279 = vadd.f32 %v3984, %v4263
        %v4280 = vadd.f32 %v3986, %v4265
        %v4281 = vadd.f32 %v3989, %v4268
        %v4282 = vadd.f32 %v3991, %v4270
        %v4283 = vadd.f32 %v3994, %v4273
        %v4284 = vadd.f32 %v3996, %v4275
        %4285 = vrot.lane.b32.xlu0 %v3420, 32
        %v4286 = vpop.permute.xlu0 %4285
        %4287 = vrot.lane.b32.xlu0 %v3421, 32
        %v4288 = vpop.permute.xlu0 %4287
        %4289 = vrot.lane.b32.xlu0 %v3422, 32
        %v4290 = vpop.permute.xlu0 %4289
        %4291 = vrot.lane.b32.xlu0 %v3423, 32
        %v4292 = vpop.permute.xlu0 %4291
        %4293 = vrot.lane.b32.xlu0 %v3440, 32
        %v4294 = vpop.permute.xlu0 %4293
        %4295 = vrot.lane.b32.xlu0 %v3441, 32
        %v4296 = vpop.permute.xlu0 %4295
        %4297 = vrot.lane.b32.xlu0 %v3442, 32
        %v4298 = vpop.permute.xlu0 %4297
        %4299 = vrot.lane.b32.xlu0 %v3443, 32
        %v4300 = vpop.permute.xlu0 %4299
        %v4302 = vsel %vm1082, %v4286, 0
        %v4305 = vsel %vm1082, %v4288, 0
        %v4308 = vsel %vm1082, %v4290, 0
        %v4311 = vsel %vm1082, %v4292, 0
        %v4314 = vsel %vm1082, %v4294, 0
        %v4317 = vsel %vm1082, %v4296, 0
        %v4320 = vsel %vm1082, %v4298, 0
        %v4323 = vsel %vm1082, %v4300, 0
        %4325 = vmatpush.bf16.xpose.msra.mxu0 0
        %4326 = vmatpush.bf16.xpose.msra.mxu0 0
        %4327 = vmatpush.bf16.xpose.msra.mxu0 0
        %4328 = vmatpush.bf16.xpose.msra.mxu0 0
        %4329 = vmatpush.bf16.xpose.msra.mxu0 %v4323
        %4330 = vmatpush.bf16.xpose.msra.mxu0 %v4320
        %4331 = vmatpush.bf16.xpose.msra.mxu0 %v4317
        %4332 = vmatpush.bf16.xpose.msra.mxu0 %v4314
        %4333 = vmatmul.bf16.gmra.mxu0 %v4302
        %v4334 = vpop.f32.mrf.mxu0
        %v4335 = vadd.f32 0.0, %v4334
        %v4336 = vpop.f32.mrf.mxu0
        %v4337 = vadd.f32 0.0, %v4336
        %4338 = vmatmul.bf16.gmra.mxu0 %v4305
        %v4339 = vpop.f32.mrf.mxu0
        %v4340 = vadd.f32 0.0, %v4339
        %v4341 = vpop.f32.mrf.mxu0
        %v4342 = vadd.f32 0.0, %v4341
        %4343 = vmatmul.bf16.gmra.mxu0 %v4308
        %v4344 = vpop.f32.mrf.mxu0
        %v4345 = vadd.f32 0.0, %v4344
        %v4346 = vpop.f32.mrf.mxu0
        %v4347 = vadd.f32 0.0, %v4346
        %4348 = vmatmul.bf16.gmra.mxu0 %v4311
        %v4349 = vpop.f32.mrf.mxu0
        %v4350 = vadd.f32 0.0, %v4349
        %v4351 = vpop.f32.mrf.mxu0
        %v4352 = vadd.f32 0.0, %v4351
        %4353 = vdwg.mxu0
        %v4354 = vmul.f32 %v4335, 0.17677669
        %v4355 = vmul.f32 %v4337, 0.17677669
        %v4356 = vmul.f32 %v4340, 0.17677669
        %v4357 = vmul.f32 %v4342, 0.17677669
        %v4358 = vmul.f32 %v4345, 0.17677669
        %v4359 = vmul.f32 %v4347, 0.17677669
        %v4360 = vmul.f32 %v4350, 0.17677669
        %v4361 = vmul.f32 %v4352, 0.17677669
        %v4362 = vsel %vm1144, %v4354, -inf
        %4363 = vmax.xlane.f32.xlu0 %v4362
        %v4364 = vpop.xlane.xlu0 %4363
        %v4365 = vsel %vm1144, %v4355, -inf
        %4366 = vmax.xlane.f32.xlu0 %v4365
        %v4367 = vpop.xlane.xlu0 %4366
        %v4368 = vsel %vm1144, %v4356, -inf
        %4369 = vmax.xlane.f32.xlu0 %v4368
        %v4370 = vpop.xlane.xlu0 %4369
        %v4371 = vsel %vm1144, %v4357, -inf
        %4372 = vmax.xlane.f32.xlu0 %v4371
        %v4373 = vpop.xlane.xlu0 %4372
        %v4374 = vsel %vm1144, %v4358, -inf
        %4375 = vmax.xlane.f32.xlu0 %v4374
        %v4376 = vpop.xlane.xlu0 %4375
        %v4377 = vsel %vm1144, %v4359, -inf
        %4378 = vmax.xlane.f32.xlu0 %v4377
        %v4379 = vpop.xlane.xlu0 %4378
        %v4380 = vsel %vm1144, %v4360, -inf
        %4381 = vmax.xlane.f32.xlu0 %v4380
        %v4382 = vpop.xlane.xlu0 %4381
        %v4383 = vsel %vm1144, %v4361, -inf
        %4384 = vmax.xlane.f32.xlu0 %v4383
        %v4385 = vpop.xlane.xlu0 %4384
        %v4386 = vsub.f32 %v4354, %v4364
        %v4387 = vsub.f32 %v4355, %v4367
        %v4388 = vsub.f32 %v4356, %v4370
        %v4389 = vsub.f32 %v4357, %v4373
        %v4390 = vsub.f32 %v4358, %v4376
        %v4391 = vsub.f32 %v4359, %v4379
        %v4392 = vsub.f32 %v4360, %v4382
        %v4393 = vsub.f32 %v4361, %v4385
        %v4394 = vmul.f32 %v4386, 1.442695
        %v4395 = vpow.pop %v4394
        %v4396 = vmul.f32 %v4387, 1.442695
        %v4397 = vpow.pop %v4396
        %v4398 = vmul.f32 %v4388, 1.442695
        %v4399 = vpow.pop %v4398
        %v4400 = vmul.f32 %v4389, 1.442695
        %v4401 = vpow.pop %v4400
        %v4402 = vmul.f32 %v4390, 1.442695
        %v4403 = vpow.pop %v4402
        %v4404 = vmul.f32 %v4391, 1.442695
        %v4405 = vpow.pop %v4404
        %v4406 = vmul.f32 %v4392, 1.442695
        %v4407 = vpow.pop %v4406
        %v4408 = vmul.f32 %v4393, 1.442695
        %v4409 = vpow.pop %v4408
        %v4410 = vsel %vm1144, %v4395, 0.0
        %4411 = vadd.xlane.f32.xlu0 %v4410
        %v4412 = vpop.xlane.xlu0 %4411
        %v4413 = vsel %vm1144, %v4397, 0.0
        %4414 = vadd.xlane.f32.xlu0 %v4413
        %v4415 = vpop.xlane.xlu0 %4414
        %v4416 = vsel %vm1144, %v4399, 0.0
        %4417 = vadd.xlane.f32.xlu0 %v4416
        %v4418 = vpop.xlane.xlu0 %4417
        %v4419 = vsel %vm1144, %v4401, 0.0
        %4420 = vadd.xlane.f32.xlu0 %v4419
        %v4421 = vpop.xlane.xlu0 %4420
        %v4422 = vsel %vm1144, %v4403, 0.0
        %4423 = vadd.xlane.f32.xlu0 %v4422
        %v4424 = vpop.xlane.xlu0 %4423
        %v4425 = vsel %vm1144, %v4405, 0.0
        %4426 = vadd.xlane.f32.xlu0 %v4425
        %v4427 = vpop.xlane.xlu0 %4426
        %v4428 = vsel %vm1144, %v4407, 0.0
        %4429 = vadd.xlane.f32.xlu0 %v4428
        %v4430 = vpop.xlane.xlu0 %4429
        %v4431 = vsel %vm1144, %v4409, 0.0
        %4432 = vadd.xlane.f32.xlu0 %v4431
        %v4433 = vpop.xlane.xlu0 %4432
        %v4434 = vrcp.pop %v4412
        %v4435 = vrcp.pop %v4415
        %v4436 = vrcp.pop %v4418
        %v4437 = vrcp.pop %v4421
        %v4438 = vrcp.pop %v4424
        %v4439 = vrcp.pop %v4427
        %v4440 = vrcp.pop %v4430
        %v4441 = vrcp.pop %v4433
        %v4442 = vmul.f32 %v4395, %v4434
        %v4443 = vmul.f32 %v4397, %v4435
        %v4444 = vmul.f32 %v4399, %v4436
        %v4445 = vmul.f32 %v4401, %v4437
        %v4446 = vmul.f32 %v4403, %v4438
        %v4447 = vmul.f32 %v4405, %v4439
        %v4448 = vmul.f32 %v4407, %v4440
        %v4449 = vmul.f32 %v4409, %v4441
        %v4450 = vpack.c.bf16 %v4443, %v4442
        %v4451 = vpack.c.bf16 %v4445, %v4444
        %v4452 = vpack.c.bf16 %v4447, %v4446
        %v4453 = vpack.c.bf16 %v4449, %v4448
        %4454 = vrot.lane.b32.xlu0 %v3613, 32
        %v4455 = vpop.permute.xlu0 %4454
        %4456 = vrot.lane.b32.xlu0 %v3614, 32
        %v4457 = vpop.permute.xlu0 %4456
        %4458 = vrot.lane.b32.xlu0 %v3615, 32
        %v4459 = vpop.permute.xlu0 %4458
        %4460 = vrot.lane.b32.xlu0 %v3616, 32
        %v4461 = vpop.permute.xlu0 %4460
        %v4467 = vsel %vm1144, %v4450, 0
        %v4470 = vsel %vm1144, %v4451, 0
        %v4473 = vsel %vm1144, %v4452, 0
        %v4476 = vsel %vm1144, %v4453, 0
        %4478 = vmatpush.bf16.msra.mxu0 0
        %4479 = vmatpush.bf16.msra.mxu0 0
        %4480 = vmatpush.bf16.msra.mxu0 0
        %4481 = vmatpush.bf16.msra.mxu0 0
        %4482 = vmatpush.bf16.msra.mxu0 %v4461
        %4483 = vmatpush.bf16.msra.mxu0 %v4459
        %4484 = vmatpush.bf16.msra.mxu0 %v4457
        %4485 = vmatpush.bf16.msra.mxu0 %v4455
        %4486 = vmatmul.bf16.gmra.mxu0 %v4467
        %v4487 = vpop.f32.mrf.mxu0
        %v4488 = vadd.f32 0.0, %v4487
        %v4489 = vpop.f32.mrf.mxu0
        %v4490 = vadd.f32 0.0, %v4489
        %4491 = vmatmul.bf16.gmra.mxu0 %v4470
        %v4492 = vpop.f32.mrf.mxu0
        %v4493 = vadd.f32 0.0, %v4492
        %v4494 = vpop.f32.mrf.mxu0
        %v4495 = vadd.f32 0.0, %v4494
        %4496 = vmatmul.bf16.gmra.mxu0 %v4473
        %v4497 = vpop.f32.mrf.mxu0
        %v4498 = vadd.f32 0.0, %v4497
        %v4499 = vpop.f32.mrf.mxu0
        %v4500 = vadd.f32 0.0, %v4499
        %4501 = vmatmul.bf16.gmra.mxu0 %v4476
        %v4502 = vpop.f32.mrf.mxu0
        %v4503 = vadd.f32 0.0, %v4502
        %v4504 = vpop.f32.mrf.mxu0
        %v4505 = vadd.f32 0.0, %v4504
        %4506 = vdwg.mxu0
        %v4507 = vpack.c.bf16 %v4490, %v4488
        %v4508 = vpack.c.bf16 %v4495, %v4493
        %v4509 = vpack.c.bf16 %v4500, %v4498
        %v4510 = vpack.c.bf16 %v4505, %v4503
        %v4515 = vunpack.c.l.b16 %v3400
        %v4516 = vunpack.c.l.b16 %v3401
        %v4517 = vunpack.c.l.b16 %v3402
        %v4518 = vunpack.c.l.b16 %v3403
        %v4519 = vpack.c.b16 %v4516, %v4515
        %v4520 = vpack.c.b16 %v4518, %v4517
        %v4524 = vsel %vm1082, %v4507, 0
        %v4527 = vsel %vm1082, %v4508, 0
        %v4530 = vsel %vm1082, %v4509, 0
        %v4533 = vsel %vm1082, %v4510, 0
        %4535 = vmatpush.bf16.msra.mxu0 0
        %4536 = vmatpush.bf16.msra.mxu0 0
        %4537 = vmatpush.bf16.msra.mxu0 0
        %4538 = vmatpush.bf16.msra.mxu0 0
        %4539 = vmatpush.bf16.msra.mxu0 0
        %4540 = vmatpush.bf16.msra.mxu0 0
        %4541 = vmatpush.bf16.msra.mxu0 %v4520
        %4542 = vmatpush.bf16.msra.mxu0 %v4519
        %4543 = vmatmul.bf16.gmra.mxu0 %v4524
        %v4544 = vpop.f32.mrf.mxu0
        %v4545 = vadd.f32 0.0, %v4544
        %v4546 = vpop.f32.mrf.mxu0
        %v4547 = vadd.f32 0.0, %v4546
        %4548 = vmatmul.bf16.gmra.mxu0 %v4527
        %v4549 = vpop.f32.mrf.mxu0
        %v4550 = vadd.f32 0.0, %v4549
        %v4551 = vpop.f32.mrf.mxu0
        %v4552 = vadd.f32 0.0, %v4551
        %4553 = vmatmul.bf16.gmra.mxu0 %v4530
        %v4554 = vpop.f32.mrf.mxu0
        %v4555 = vadd.f32 0.0, %v4554
        %v4556 = vpop.f32.mrf.mxu0
        %v4557 = vadd.f32 0.0, %v4556
        %4558 = vmatmul.bf16.gmra.mxu0 %v4533
        %v4559 = vpop.f32.mrf.mxu0
        %v4560 = vadd.f32 0.0, %v4559
        %v4561 = vpop.f32.mrf.mxu0
        %v4562 = vadd.f32 0.0, %v4561
        %4563 = vdwg.mxu0
        %v4564 = vadd.f32 %v4277, %v4545
        %v4565 = vadd.f32 %v4278, %v4547
        %v4566 = vadd.f32 %v4279, %v4550
        %v4567 = vadd.f32 %v4280, %v4552
        %v4568 = vadd.f32 %v4281, %v4555
        %v4569 = vadd.f32 %v4282, %v4557
        %v4570 = vadd.f32 %v4283, %v4560
        %v4571 = vadd.f32 %v4284, %v4562
        %v4572 = vadd.f32 %v2914, %v4564
        %v4573 = vadd.f32 %v2915, %v4565
        %v4574 = vadd.f32 %v2916, %v4566
        %v4575 = vadd.f32 %v2917, %v4567
        %v4576 = vadd.f32 %v2918, %v4568
        %v4577 = vadd.f32 %v2919, %v4569
        %v4578 = vadd.f32 %v2920, %v4570
        %v4579 = vadd.f32 %v2921, %v4571
        %v4580 = vld [vmem:[%s6 + $0x1] sm:$0x1]
        %v4581 = vperm.slane %v4580, 0
        %v4582 = vadd.f32 %v4572, %v4581
        %v4583 = vadd.f32 %v4573, %v4581
        %v4584 = vadd.f32 %v4574, %v4581
        %v4585 = vadd.f32 %v4575, %v4581
        %v4586 = vadd.f32 %v4576, %v4581
        %v4587 = vadd.f32 %v4577, %v4581
        %v4588 = vadd.f32 %v4578, %v4581
        %v4589 = vadd.f32 %v4579, %v4581
        %v4590 = vld [vmem:[%s7 + $0x1] sm:$0x1]
        %v4591 = vld [vmem:[%s8 + $0x1] sm:$0x1]
        %4592 = vadd.xlane.f32.xlu0 %v4582
        %v4593 = vpop.xlane.xlu0 %4592
        %4594 = vadd.xlane.f32.xlu0 %v4583
        %v4595 = vpop.xlane.xlu0 %4594
        %4596 = vadd.xlane.f32.xlu0 %v4584
        %v4597 = vpop.xlane.xlu0 %4596
        %4598 = vadd.xlane.f32.xlu0 %v4585
        %v4599 = vpop.xlane.xlu0 %4598
        %4600 = vadd.xlane.f32.xlu0 %v4586
        %v4601 = vpop.xlane.xlu0 %4600
        %4602 = vadd.xlane.f32.xlu0 %v4587
        %v4603 = vpop.xlane.xlu0 %4602
        %4604 = vadd.xlane.f32.xlu0 %v4588
        %v4605 = vpop.xlane.xlu0 %4604
        %4606 = vadd.xlane.f32.xlu0 %v4589
        %v4607 = vpop.xlane.xlu0 %4606
        %v4608 = vmul.f32 %v4593, %v580
        %v4609 = vmul.f32 %v4595, %v580
        %v4610 = vmul.f32 %v4597, %v580
        %v4611 = vmul.f32 %v4599, %v580
        %v4612 = vmul.f32 %v4601, %v580
        %v4613 = vmul.f32 %v4603, %v580
        %v4614 = vmul.f32 %v4605, %v580
        %v4615 = vmul.f32 %v4607, %v580
        %v4616 = vsub.f32 %v4582, %v4608
        %v4617 = vsub.f32 %v4583, %v4609
        %v4618 = vsub.f32 %v4584, %v4610
        %v4619 = vsub.f32 %v4585, %v4611
        %v4620 = vsub.f32 %v4586, %v4612
        %v4621 = vsub.f32 %v4587, %v4613
        %v4622 = vsub.f32 %v4588, %v4614
        %v4623 = vsub.f32 %v4589, %v4615
        %v4624 = vmul.f32 %v4616, %v4616
        %v4625 = vmul.f32 %v4617, %v4617
        %v4626 = vmul.f32 %v4618, %v4618
        %v4627 = vmul.f32 %v4619, %v4619
        %v4628 = vmul.f32 %v4620, %v4620
        %v4629 = vmul.f32 %v4621, %v4621
        %v4630 = vmul.f32 %v4622, %v4622
        %v4631 = vmul.f32 %v4623, %v4623
        %4632 = vadd.xlane.f32.xlu0 %v4624
        %v4633 = vpop.xlane.xlu0 %4632
        %4634 = vadd.xlane.f32.xlu0 %v4625
        %v4635 = vpop.xlane.xlu0 %4634
        %4636 = vadd.xlane.f32.xlu0 %v4626
        %v4637 = vpop.xlane.xlu0 %4636
        %4638 = vadd.xlane.f32.xlu0 %v4627
        %v4639 = vpop.xlane.xlu0 %4638
        %4640 = vadd.xlane.f32.xlu0 %v4628
        %v4641 = vpop.xlane.xlu0 %4640
        %4642 = vadd.xlane.f32.xlu0 %v4629
        %v4643 = vpop.xlane.xlu0 %4642
        %4644 = vadd.xlane.f32.xlu0 %v4630
        %v4645 = vpop.xlane.xlu0 %4644
        %4646 = vadd.xlane.f32.xlu0 %v4631
        %v4647 = vpop.xlane.xlu0 %4646
        %v4648 = vmul.f32 %v4633, %v580
        %v4649 = vmul.f32 %v4635, %v580
        %v4650 = vmul.f32 %v4637, %v580
        %v4651 = vmul.f32 %v4639, %v580
        %v4652 = vmul.f32 %v4641, %v580
        %v4653 = vmul.f32 %v4643, %v580
        %v4654 = vmul.f32 %v4645, %v580
        %v4655 = vmul.f32 %v4647, %v580
        %v4656 = vadd.f32 %v4648, 1e-05
        %v4657 = vadd.f32 %v4649, 1e-05
        %v4658 = vadd.f32 %v4650, 1e-05
        %v4659 = vadd.f32 %v4651, 1e-05
        %v4660 = vadd.f32 %v4652, 1e-05
        %v4661 = vadd.f32 %v4653, 1e-05
        %v4662 = vadd.f32 %v4654, 1e-05
        %v4663 = vadd.f32 %v4655, 1e-05
        %v4664 = vrsqrt.pop %v4656
        %v4665 = vmul.f32 %v4664, %v4656
        %v4666 = vmul.f32 %v4665, %v4664
        %v4667 = vmul.f32 0.5, %v4666
        %v4668 = vsub.f32 1.5, %v4667
        %v4669 = vmul.f32 %v4664, %v4668
        %vm4670 = vweird.f32 %v4656
        %vm4671 = vweird.f32 %v4664
        %vm4672 = vmor %vm4670, %vm4671
        %v4673 = vsel %vm4672, %v4664, %v4669
        %v4674 = vrsqrt.pop %v4657
        %v4675 = vmul.f32 %v4674, %v4657
        %v4676 = vmul.f32 %v4675, %v4674
        %v4677 = vmul.f32 0.5, %v4676
        %v4678 = vsub.f32 1.5, %v4677
        %v4679 = vmul.f32 %v4674, %v4678
        %vm4680 = vweird.f32 %v4657
        %vm4681 = vweird.f32 %v4674
        %vm4682 = vmor %vm4680, %vm4681
        %v4683 = vsel %vm4682, %v4674, %v4679
        %v4684 = vrsqrt.pop %v4658
        %v4685 = vmul.f32 %v4684, %v4658
        %v4686 = vmul.f32 %v4685, %v4684
        %v4687 = vmul.f32 0.5, %v4686
        %v4688 = vsub.f32 1.5, %v4687
        %v4689 = vmul.f32 %v4684, %v4688
        %vm4690 = vweird.f32 %v4658
        %vm4691 = vweird.f32 %v4684
        %vm4692 = vmor %vm4690, %vm4691
        %v4693 = vsel %vm4692, %v4684, %v4689
        %v4694 = vrsqrt.pop %v4659
        %v4695 = vmul.f32 %v4694, %v4659
        %v4696 = vmul.f32 %v4695, %v4694
        %v4697 = vmul.f32 0.5, %v4696
        %v4698 = vsub.f32 1.5, %v4697
        %v4699 = vmul.f32 %v4694, %v4698
        %vm4700 = vweird.f32 %v4659
        %vm4701 = vweird.f32 %v4694
        %vm4702 = vmor %vm4700, %vm4701
        %v4703 = vsel %vm4702, %v4694, %v4699
        %v4704 = vrsqrt.pop %v4660
        %v4705 = vmul.f32 %v4704, %v4660
        %v4706 = vmul.f32 %v4705, %v4704
        %v4707 = vmul.f32 0.5, %v4706
        %v4708 = vsub.f32 1.5, %v4707
        %v4709 = vmul.f32 %v4704, %v4708
        %vm4710 = vweird.f32 %v4660
        %vm4711 = vweird.f32 %v4704
        %vm4712 = vmor %vm4710, %vm4711
        %v4713 = vsel %vm4712, %v4704, %v4709
        %v4714 = vrsqrt.pop %v4661
        %v4715 = vmul.f32 %v4714, %v4661
        %v4716 = vmul.f32 %v4715, %v4714
        %v4717 = vmul.f32 0.5, %v4716
        %v4718 = vsub.f32 1.5, %v4717
        %v4719 = vmul.f32 %v4714, %v4718
        %vm4720 = vweird.f32 %v4661
        %vm4721 = vweird.f32 %v4714
        %vm4722 = vmor %vm4720, %vm4721
        %v4723 = vsel %vm4722, %v4714, %v4719
        %v4724 = vrsqrt.pop %v4662
        %v4725 = vmul.f32 %v4724, %v4662
        %v4726 = vmul.f32 %v4725, %v4724
        %v4727 = vmul.f32 0.5, %v4726
        %v4728 = vsub.f32 1.5, %v4727
        %v4729 = vmul.f32 %v4724, %v4728
        %vm4730 = vweird.f32 %v4662
        %vm4731 = vweird.f32 %v4724
        %vm4732 = vmor %vm4730, %vm4731
        %v4733 = vsel %vm4732, %v4724, %v4729
        %v4734 = vrsqrt.pop %v4663
        %v4735 = vmul.f32 %v4734, %v4663
        %v4736 = vmul.f32 %v4735, %v4734
        %v4737 = vmul.f32 0.5, %v4736
        %v4738 = vsub.f32 1.5, %v4737
        %v4739 = vmul.f32 %v4734, %v4738
        %vm4740 = vweird.f32 %v4663
        %vm4741 = vweird.f32 %v4734
        %vm4742 = vmor %vm4740, %vm4741
        %v4743 = vsel %vm4742, %v4734, %v4739
        %v4744 = vmul.f32 %v4616, %v4673
        %v4745 = vmul.f32 %v4617, %v4683
        %v4746 = vmul.f32 %v4618, %v4693
        %v4747 = vmul.f32 %v4619, %v4703
        %v4748 = vmul.f32 %v4620, %v4713
        %v4749 = vmul.f32 %v4621, %v4723
        %v4750 = vmul.f32 %v4622, %v4733
        %v4751 = vmul.f32 %v4623, %v4743
        %v4752 = vperm.slane %v4590, 0
        %v4753 = vmul.f32 %v4744, %v4752
        %v4754 = vmul.f32 %v4745, %v4752
        %v4755 = vmul.f32 %v4746, %v4752
        %v4756 = vmul.f32 %v4747, %v4752
        %v4757 = vmul.f32 %v4748, %v4752
        %v4758 = vmul.f32 %v4749, %v4752
        %v4759 = vmul.f32 %v4750, %v4752
        %v4760 = vmul.f32 %v4751, %v4752
        %v4761 = vperm.slane %v4591, 0
        %v4762 = vadd.f32 %v4753, %v4761
        %v4763 = vadd.f32 %v4754, %v4761
        %v4764 = vadd.f32 %v4755, %v4761
        %v4765 = vadd.f32 %v4756, %v4761
        %v4766 = vadd.f32 %v4757, %v4761
        %v4767 = vadd.f32 %v4758, %v4761
        %v4768 = vadd.f32 %v4759, %v4761
        %v4769 = vadd.f32 %v4760, %v4761
        %v4770 = vpack.c.bf16 %v4763, %v4762
        %v4771 = vpack.c.bf16 %v4765, %v4764
        %v4772 = vpack.c.bf16 %v4767, %v4766
        %v4773 = vpack.c.bf16 %v4769, %v4768
        %s4774 = scalar_lea.vmem %s9, 128
        %v4775 = vld [vmem:[%s4774] sm:$0xff]
        %v4776 = vld [vmem:[%s4774 + $0x8] sm:$0xff]
        %v4777 = vld [vmem:[%s4774 + $0x10] sm:$0xff]
        %v4778 = vld [vmem:[%s4774 + $0x18] sm:$0xff]
        %v4779 = vld [vmem:[%s4774 + $0x20] sm:$0xff]
        %v4780 = vld [vmem:[%s4774 + $0x28] sm:$0xff]
        %v4781 = vld [vmem:[%s4774 + $0x30] sm:$0xff]
        %v4782 = vld [vmem:[%s4774 + $0x38] sm:$0xff]
        %v4783 = vld [vmem:[%s4774 + $0x40] sm:$0xff]
        %v4784 = vld [vmem:[%s4774 + $0x48] sm:$0xff]
        %v4785 = vld [vmem:[%s4774 + $0x50] sm:$0xff]
        %v4786 = vld [vmem:[%s4774 + $0x58] sm:$0xff]
        %v4787 = vld [vmem:[%s4774 + $0x60] sm:$0xff]
        %v4788 = vld [vmem:[%s4774 + $0x68] sm:$0xff]
        %v4789 = vld [vmem:[%s4774 + $0x70] sm:$0xff]
        %v4790 = vld [vmem:[%s4774 + $0x78] sm:$0xff]
        %s4791 = scalar_lea.vmem %s10, 1
        %v4792 = vld [vmem:[%s4791] ss:$2 sm:$0x3]
        %v4794 = vperm.slane %v4792, 0
        %v4795 = vperm.slane %v4792, 1
        %v4814 = vunpack.c.l.b16 %v4775
        %v4815 = vunpack.c.h.b16 %v4775
        %v4816 = vunpack.c.l.b16 %v4776
        %v4817 = vunpack.c.h.b16 %v4776
        %v4818 = vunpack.c.l.b16 %v4777
        %v4819 = vunpack.c.h.b16 %v4777
        %v4820 = vunpack.c.l.b16 %v4778
        %v4821 = vunpack.c.h.b16 %v4778
        %v4822 = vunpack.c.l.b16 %v4779
        %v4823 = vunpack.c.h.b16 %v4779
        %v4824 = vunpack.c.l.b16 %v4780
        %v4825 = vunpack.c.h.b16 %v4780
        %v4826 = vunpack.c.l.b16 %v4781
        %v4827 = vunpack.c.h.b16 %v4781
        %v4828 = vunpack.c.l.b16 %v4782
        %v4829 = vunpack.c.h.b16 %v4782
        %v4830 = vunpack.c.l.b16 %v4783
        %v4831 = vunpack.c.h.b16 %v4783
        %v4832 = vunpack.c.l.b16 %v4784
        %v4833 = vunpack.c.h.b16 %v4784
        %v4834 = vunpack.c.l.b16 %v4785
        %v4835 = vunpack.c.h.b16 %v4785
        %v4836 = vunpack.c.l.b16 %v4786
        %v4837 = vunpack.c.h.b16 %v4786
        %v4838 = vunpack.c.l.b16 %v4787
        %v4839 = vunpack.c.h.b16 %v4787
        %v4840 = vunpack.c.l.b16 %v4788
        %v4841 = vunpack.c.h.b16 %v4788
        %v4842 = vunpack.c.l.b16 %v4789
        %v4843 = vunpack.c.h.b16 %v4789
        %v4844 = vunpack.c.l.b16 %v4790
        %v4845 = vunpack.c.h.b16 %v4790
        %v4846 = vpack.c.b16 %v4816, %v4814
        %v4847 = vpack.c.b16 %v4817, %v4815
        %v4848 = vpack.c.b16 %v4820, %v4818
        %v4849 = vpack.c.b16 %v4821, %v4819
        %v4850 = vpack.c.b16 %v4824, %v4822
        %v4851 = vpack.c.b16 %v4825, %v4823
        %v4852 = vpack.c.b16 %v4828, %v4826
        %v4853 = vpack.c.b16 %v4829, %v4827
        %v4854 = vpack.c.b16 %v4832, %v4830
        %v4855 = vpack.c.b16 %v4833, %v4831
        %v4856 = vpack.c.b16 %v4836, %v4834
        %v4857 = vpack.c.b16 %v4837, %v4835
        %v4858 = vpack.c.b16 %v4840, %v4838
        %v4859 = vpack.c.b16 %v4841, %v4839
        %v4860 = vpack.c.b16 %v4844, %v4842
        %v4861 = vpack.c.b16 %v4845, %v4843
        %4878 = vmatpush.bf16.msra.mxu0 %v4860
        %4879 = vmatpush.bf16.msra.mxu0 %v4858
        %4880 = vmatpush.bf16.msra.mxu0 %v4856
        %4881 = vmatpush.bf16.msra.mxu0 %v4854
        %4882 = vmatpush.bf16.msra.mxu0 %v4852
        %4883 = vmatpush.bf16.msra.mxu0 %v4850
        %4884 = vmatpush.bf16.msra.mxu0 %v4848
        %4885 = vmatpush.bf16.msra.mxu0 %v4846
        %4886 = vmatmul.bf16.gmra.mxu0 %v4770
        %v4887 = vpop.f32.mrf.mxu0
        %v4888 = vadd.f32 %v4794, %v4887
        %v4889 = vpop.f32.mrf.mxu0
        %v4890 = vadd.f32 %v4794, %v4889
        %4891 = vmatmul.bf16.gmra.mxu0 %v4771
        %v4892 = vpop.f32.mrf.mxu0
        %v4893 = vadd.f32 %v4794, %v4892
        %v4894 = vpop.f32.mrf.mxu0
        %v4895 = vadd.f32 %v4794, %v4894
        %4896 = vmatmul.bf16.gmra.mxu0 %v4772
        %v4897 = vpop.f32.mrf.mxu0
        %v4898 = vadd.f32 %v4794, %v4897
        %v4899 = vpop.f32.mrf.mxu0
        %v4900 = vadd.f32 %v4794, %v4899
        %4901 = vmatmul.bf16.gmra.mxu0 %v4773
        %v4902 = vpop.f32.mrf.mxu0
        %v4903 = vadd.f32 %v4794, %v4902
        %v4904 = vpop.f32.mrf.mxu0
        %v4905 = vadd.f32 %v4794, %v4904
        %4906 = vdwg.mxu0
        %4907 = vmatpush.bf16.msra.mxu0 %v4861
        %4908 = vmatpush.bf16.msra.mxu0 %v4859
        %4909 = vmatpush.bf16.msra.mxu0 %v4857
        %4910 = vmatpush.bf16.msra.mxu0 %v4855
        %4911 = vmatpush.bf16.msra.mxu0 %v4853
        %4912 = vmatpush.bf16.msra.mxu0 %v4851
        %4913 = vmatpush.bf16.msra.mxu0 %v4849
        %4914 = vmatpush.bf16.msra.mxu0 %v4847
        %4915 = vmatmul.bf16.gmra.mxu0 %v4770
        %v4916 = vpop.f32.mrf.mxu0
        %v4917 = vadd.f32 %v4795, %v4916
        %v4918 = vpop.f32.mrf.mxu0
        %v4919 = vadd.f32 %v4795, %v4918
        %4920 = vmatmul.bf16.gmra.mxu0 %v4771
        %v4921 = vpop.f32.mrf.mxu0
        %v4922 = vadd.f32 %v4795, %v4921
        %v4923 = vpop.f32.mrf.mxu0
        %v4924 = vadd.f32 %v4795, %v4923
        %4925 = vmatmul.bf16.gmra.mxu0 %v4772
        %v4926 = vpop.f32.mrf.mxu0
        %v4927 = vadd.f32 %v4795, %v4926
        %v4928 = vpop.f32.mrf.mxu0
        %v4929 = vadd.f32 %v4795, %v4928
        %4930 = vmatmul.bf16.gmra.mxu0 %v4773
        %v4931 = vpop.f32.mrf.mxu0
        %v4932 = vadd.f32 %v4795, %v4931
        %v4933 = vpop.f32.mrf.mxu0
        %v4934 = vadd.f32 %v4795, %v4933
        %4935 = vdwg.mxu0
        %v4936 = vmul.f32 %v4888, 0.5
        %v4937 = vmul.f32 %v4917, 0.5
        %v4938 = vmul.f32 %v4890, 0.5
        %v4939 = vmul.f32 %v4919, 0.5
        %v4940 = vmul.f32 %v4893, 0.5
        %v4941 = vmul.f32 %v4922, 0.5
        %v4942 = vmul.f32 %v4895, 0.5
        %v4943 = vmul.f32 %v4924, 0.5
        %v4944 = vmul.f32 %v4898, 0.5
        %v4945 = vmul.f32 %v4927, 0.5
        %v4946 = vmul.f32 %v4900, 0.5
        %v4947 = vmul.f32 %v4929, 0.5
        %v4948 = vmul.f32 %v4903, 0.5
        %v4949 = vmul.f32 %v4932, 0.5
        %v4950 = vmul.f32 %v4905, 0.5
        %v4951 = vmul.f32 %v4934, 0.5
        %v4952 = vmul.f32 %v4888, 0.044715
        %v4953 = vmul.f32 %v4917, 0.044715
        %v4954 = vmul.f32 %v4890, 0.044715
        %v4955 = vmul.f32 %v4919, 0.044715
        %v4956 = vmul.f32 %v4893, 0.044715
        %v4957 = vmul.f32 %v4922, 0.044715
        %v4958 = vmul.f32 %v4895, 0.044715
        %v4959 = vmul.f32 %v4924, 0.044715
        %v4960 = vmul.f32 %v4898, 0.044715
        %v4961 = vmul.f32 %v4927, 0.044715
        %v4962 = vmul.f32 %v4900, 0.044715
        %v4963 = vmul.f32 %v4929, 0.044715
        %v4964 = vmul.f32 %v4903, 0.044715
        %v4965 = vmul.f32 %v4932, 0.044715
        %v4966 = vmul.f32 %v4905, 0.044715
        %v4967 = vmul.f32 %v4934, 0.044715
        %v4968 = vmul.f32 %v4952, %v4888
        %v4969 = vmul.f32 %v4953, %v4917
        %v4970 = vmul.f32 %v4954, %v4890
        %v4971 = vmul.f32 %v4955, %v4919
        %v4972 = vmul.f32 %v4956, %v4893
        %v4973 = vmul.f32 %v4957, %v4922
        %v4974 = vmul.f32 %v4958, %v4895
        %v4975 = vmul.f32 %v4959, %v4924
        %v4976 = vmul.f32 %v4960, %v4898
        %v4977 = vmul.f32 %v4961, %v4927
        %v4978 = vmul.f32 %v4962, %v4900
        %v4979 = vmul.f32 %v4963, %v4929
        %v4980 = vmul.f32 %v4964, %v4903
        %v4981 = vmul.f32 %v4965, %v4932
        %v4982 = vmul.f32 %v4966, %v4905
        %v4983 = vmul.f32 %v4967, %v4934
        %v4984 = vmul.f32 %v4968, %v4888
        %v4985 = vmul.f32 %v4969, %v4917
        %v4986 = vmul.f32 %v4970, %v4890
        %v4987 = vmul.f32 %v4971, %v4919
        %v4988 = vmul.f32 %v4972, %v4893
        %v4989 = vmul.f32 %v4973, %v4922
        %v4990 = vmul.f32 %v4974, %v4895
        %v4991 = vmul.f32 %v4975, %v4924
        %v4992 = vmul.f32 %v4976, %v4898
        %v4993 = vmul.f32 %v4977, %v4927
        %v4994 = vmul.f32 %v4978, %v4900
        %v4995 = vmul.f32 %v4979, %v4929
        %v4996 = vmul.f32 %v4980, %v4903
        %v4997 = vmul.f32 %v4981, %v4932
        %v4998 = vmul.f32 %v4982, %v4905
        %v4999 = vmul.f32 %v4983, %v4934
        %v5000 = vadd.f32 %v4888, %v4984
        %v5001 = vadd.f32 %v4917, %v4985
        %v5002 = vadd.f32 %v4890, %v4986
        %v5003 = vadd.f32 %v4919, %v4987
        %v5004 = vadd.f32 %v4893, %v4988
        %v5005 = vadd.f32 %v4922, %v4989
        %v5006 = vadd.f32 %v4895, %v4990
        %v5007 = vadd.f32 %v4924, %v4991
        %v5008 = vadd.f32 %v4898, %v4992
        %v5009 = vadd.f32 %v4927, %v4993
        %v5010 = vadd.f32 %v4900, %v4994
        %v5011 = vadd.f32 %v4929, %v4995
        %v5012 = vadd.f32 %v4903, %v4996
        %v5013 = vadd.f32 %v4932, %v4997
        %v5014 = vadd.f32 %v4905, %v4998
        %v5015 = vadd.f32 %v4934, %v4999
        %v5016 = vmul.f32 %v5000, 0.7978846
        %v5017 = vmul.f32 %v5001, 0.7978846
        %v5018 = vmul.f32 %v5002, 0.7978846
        %v5019 = vmul.f32 %v5003, 0.7978846
        %v5020 = vmul.f32 %v5004, 0.7978846
        %v5021 = vmul.f32 %v5005, 0.7978846
        %v5022 = vmul.f32 %v5006, 0.7978846
        %v5023 = vmul.f32 %v5007, 0.7978846
        %v5024 = vmul.f32 %v5008, 0.7978846
        %v5025 = vmul.f32 %v5009, 0.7978846
        %v5026 = vmul.f32 %v5010, 0.7978846
        %v5027 = vmul.f32 %v5011, 0.7978846
        %v5028 = vmul.f32 %v5012, 0.7978846
        %v5029 = vmul.f32 %v5013, 0.7978846
        %v5030 = vmul.f32 %v5014, 0.7978846
        %v5031 = vmul.f32 %v5015, 0.7978846
        %v5032 = vtanh.pop %v5016
        %v5033 = vtanh.pop %v5017
        %v5034 = vtanh.pop %v5018
        %v5035 = vtanh.pop %v5019
        %v5036 = vtanh.pop %v5020
        %v5037 = vtanh.pop %v5021
        %v5038 = vtanh.pop %v5022
        %v5039 = vtanh.pop %v5023
        %v5040 = vtanh.pop %v5024
        %v5041 = vtanh.pop %v5025
        %v5042 = vtanh.pop %v5026
        %v5043 = vtanh.pop %v5027
        %v5044 = vtanh.pop %v5028
        %v5045 = vtanh.pop %v5029
        %v5046 = vtanh.pop %v5030
        %v5047 = vtanh.pop %v5031
        %v5048 = vadd.f32 %v5032, 1.0
        %v5049 = vadd.f32 %v5033, 1.0
        %v5050 = vadd.f32 %v5034, 1.0
        %v5051 = vadd.f32 %v5035, 1.0
        %v5052 = vadd.f32 %v5036, 1.0
        %v5053 = vadd.f32 %v5037, 1.0
        %v5054 = vadd.f32 %v5038, 1.0
        %v5055 = vadd.f32 %v5039, 1.0
        %v5056 = vadd.f32 %v5040, 1.0
        %v5057 = vadd.f32 %v5041, 1.0
        %v5058 = vadd.f32 %v5042, 1.0
        %v5059 = vadd.f32 %v5043, 1.0
        %v5060 = vadd.f32 %v5044, 1.0
        %v5061 = vadd.f32 %v5045, 1.0
        %v5062 = vadd.f32 %v5046, 1.0
        %v5063 = vadd.f32 %v5047, 1.0
        %v5064 = vmul.f32 %v4936, %v5048
        %v5065 = vmul.f32 %v4937, %v5049
        %v5066 = vmul.f32 %v4938, %v5050
        %v5067 = vmul.f32 %v4939, %v5051
        %v5068 = vmul.f32 %v4940, %v5052
        %v5069 = vmul.f32 %v4941, %v5053
        %v5070 = vmul.f32 %v4942, %v5054
        %v5071 = vmul.f32 %v4943, %v5055
        %v5072 = vmul.f32 %v4944, %v5056
        %v5073 = vmul.f32 %v4945, %v5057
        %v5074 = vmul.f32 %v4946, %v5058
        %v5075 = vmul.f32 %v4947, %v5059
        %v5076 = vmul.f32 %v4948, %v5060
        %v5077 = vmul.f32 %v4949, %v5061
        %v5078 = vmul.f32 %v4950, %v5062
        %v5079 = vmul.f32 %v4951, %v5063
        %v5080 = vpack.c.bf16 %v5066, %v5064
        %v5081 = vpack.c.bf16 %v5067, %v5065
        %v5082 = vpack.c.bf16 %v5070, %v5068
        %v5083 = vpack.c.bf16 %v5071, %v5069
        %v5084 = vpack.c.bf16 %v5074, %v5072
        %v5085 = vpack.c.bf16 %v5075, %v5073
        %v5086 = vpack.c.bf16 %v5078, %v5076
        %v5087 = vpack.c.bf16 %v5079, %v5077
        %s5088 = scalar_lea.vmem %s11, 128
        %v5089 = vld [vmem:[%s5088] sm:$0xf]
        %v5090 = vld [vmem:[%s5088 + $0x4] sm:$0xf]
        %v5091 = vld [vmem:[%s5088 + $0x8] sm:$0xf]
        %v5092 = vld [vmem:[%s5088 + $0xc] sm:$0xf]
        %v5093 = vld [vmem:[%s5088 + $0x10] sm:$0xf]
        %v5094 = vld [vmem:[%s5088 + $0x14] sm:$0xf]
        %v5095 = vld [vmem:[%s5088 + $0x18] sm:$0xf]
        %v5096 = vld [vmem:[%s5088 + $0x1c] sm:$0xf]
        %v5097 = vld [vmem:[%s5088 + $0x20] sm:$0xf]
        %v5098 = vld [vmem:[%s5088 + $0x24] sm:$0xf]
        %v5099 = vld [vmem:[%s5088 + $0x28] sm:$0xf]
        %v5100 = vld [vmem:[%s5088 + $0x2c] sm:$0xf]
        %v5101 = vld [vmem:[%s5088 + $0x30] sm:$0xf]
        %v5102 = vld [vmem:[%s5088 + $0x34] sm:$0xf]
        %v5103 = vld [vmem:[%s5088 + $0x38] sm:$0xf]
        %v5104 = vld [vmem:[%s5088 + $0x3c] sm:$0xf]
        %v5105 = vld [vmem:[%s5088 + $0x40] sm:$0xf]
        %v5106 = vld [vmem:[%s5088 + $0x44] sm:$0xf]
        %v5107 = vld [vmem:[%s5088 + $0x48] sm:$0xf]
        %v5108 = vld [vmem:[%s5088 + $0x4c] sm:$0xf]
        %v5109 = vld [vmem:[%s5088 + $0x50] sm:$0xf]
        %v5110 = vld [vmem:[%s5088 + $0x54] sm:$0xf]
        %v5111 = vld [vmem:[%s5088 + $0x58] sm:$0xf]
        %v5112 = vld [vmem:[%s5088 + $0x5c] sm:$0xf]
        %v5113 = vld [vmem:[%s5088 + $0x60] sm:$0xf]
        %v5114 = vld [vmem:[%s5088 + $0x64] sm:$0xf]
        %v5115 = vld [vmem:[%s5088 + $0x68] sm:$0xf]
        %v5116 = vld [vmem:[%s5088 + $0x6c] sm:$0xf]
        %v5117 = vld [vmem:[%s5088 + $0x70] sm:$0xf]
        %v5118 = vld [vmem:[%s5088 + $0x74] sm:$0xf]
        %v5119 = vld [vmem:[%s5088 + $0x78] sm:$0xf]
        %v5120 = vld [vmem:[%s5088 + $0x7c] sm:$0xf]
        %v5121 = vld [vmem:[%s12 + $0x1] sm:$0x1]
        %v5122 = vperm.slane %v5121, 0
        %v5155 = vunpack.c.l.b16 %v5089
        %v5156 = vunpack.c.l.b16 %v5090
        %v5157 = vunpack.c.l.b16 %v5091
        %v5158 = vunpack.c.l.b16 %v5092
        %v5159 = vunpack.c.l.b16 %v5093
        %v5160 = vunpack.c.l.b16 %v5094
        %v5161 = vunpack.c.l.b16 %v5095
        %v5162 = vunpack.c.l.b16 %v5096
        %v5163 = vunpack.c.l.b16 %v5097
        %v5164 = vunpack.c.l.b16 %v5098
        %v5165 = vunpack.c.l.b16 %v5099
        %v5166 = vunpack.c.l.b16 %v5100
        %v5167 = vunpack.c.l.b16 %v5101
        %v5168 = vunpack.c.l.b16 %v5102
        %v5169 = vunpack.c.l.b16 %v5103
        %v5170 = vunpack.c.l.b16 %v5104
        %v5171 = vunpack.c.l.b16 %v5105
        %v5172 = vunpack.c.l.b16 %v5106
        %v5173 = vunpack.c.l.b16 %v5107
        %v5174 = vunpack.c.l.b16 %v5108
        %v5175 = vunpack.c.l.b16 %v5109
        %v5176 = vunpack.c.l.b16 %v5110
        %v5177 = vunpack.c.l.b16 %v5111
        %v5178 = vunpack.c.l.b16 %v5112
        %v5179 = vunpack.c.l.b16 %v5113
        %v5180 = vunpack.c.l.b16 %v5114
        %v5181 = vunpack.c.l.b16 %v5115
        %v5182 = vunpack.c.l.b16 %v5116
        %v5183 = vunpack.c.l.b16 %v5117
        %v5184 = vunpack.c.l.b16 %v5118
        %v5185 = vunpack.c.l.b16 %v5119
        %v5186 = vunpack.c.l.b16 %v5120
        %v5187 = vpack.c.b16 %v5156, %v5155
        %v5188 = vpack.c.b16 %v5158, %v5157
        %v5189 = vpack.c.b16 %v5160, %v5159
        %v5190 = vpack.c.b16 %v5162, %v5161
        %v5191 = vpack.c.b16 %v5164, %v5163
        %v5192 = vpack.c.b16 %v5166, %v5165
        %v5193 = vpack.c.b16 %v5168, %v5167
        %v5194 = vpack.c.b16 %v5170, %v5169
        %v5195 = vpack.c.b16 %v5172, %v5171
        %v5196 = vpack.c.b16 %v5174, %v5173
        %v5197 = vpack.c.b16 %v5176, %v5175
        %v5198 = vpack.c.b16 %v5178, %v5177
        %v5199 = vpack.c.b16 %v5180, %v5179
        %v5200 = vpack.c.b16 %v5182, %v5181
        %v5201 = vpack.c.b16 %v5184, %v5183
        %v5202 = vpack.c.b16 %v5186, %v5185
        %5219 = vmatpush.bf16.msra.mxu0 %v5194
        %5220 = vmatpush.bf16.msra.mxu0 %v5193
        %5221 = vmatpush.bf16.msra.mxu0 %v5192
        %5222 = vmatpush.bf16.msra.mxu0 %v5191
        %5223 = vmatpush.bf16.msra.mxu0 %v5190
        %5224 = vmatpush.bf16.msra.mxu0 %v5189
        %5225 = vmatpush.bf16.msra.mxu0 %v5188
        %5226 = vmatpush.bf16.msra.mxu0 %v5187
        %5227 = vmatmul.bf16.gmra.mxu0 %v5080
        %v5228 = vpop.f32.mrf.mxu0
        %v5229 = vadd.f32 %v5122, %v5228
        %v5230 = vpop.f32.mrf.mxu0
        %v5231 = vadd.f32 %v5122, %v5230
        %5232 = vmatmul.bf16.gmra.mxu0 %v5082
        %v5233 = vpop.f32.mrf.mxu0
        %v5234 = vadd.f32 %v5122, %v5233
        %v5235 = vpop.f32.mrf.mxu0
        %v5236 = vadd.f32 %v5122, %v5235
        %5237 = vmatmul.bf16.gmra.mxu0 %v5084
        %v5238 = vpop.f32.mrf.mxu0
        %v5239 = vadd.f32 %v5122, %v5238
        %v5240 = vpop.f32.mrf.mxu0
        %v5241 = vadd.f32 %v5122, %v5240
        %5242 = vmatmul.bf16.gmra.mxu0 %v5086
        %v5243 = vpop.f32.mrf.mxu0
        %v5244 = vadd.f32 %v5122, %v5243
        %v5245 = vpop.f32.mrf.mxu0
        %v5246 = vadd.f32 %v5122, %v5245
        %5247 = vdwg.mxu0
        %5248 = vmatpush.bf16.msra.mxu0 %v5202
        %5249 = vmatpush.bf16.msra.mxu0 %v5201
        %5250 = vmatpush.bf16.msra.mxu0 %v5200
        %5251 = vmatpush.bf16.msra.mxu0 %v5199
        %5252 = vmatpush.bf16.msra.mxu0 %v5198
        %5253 = vmatpush.bf16.msra.mxu0 %v5197
        %5254 = vmatpush.bf16.msra.mxu0 %v5196
        %5255 = vmatpush.bf16.msra.mxu0 %v5195
        %5256 = vmatmul.bf16.gmra.mxu0 %v5081
        %v5257 = vpop.f32.mrf.mxu0
        %v5258 = vadd.f32 %v5229, %v5257
        %v5259 = vpop.f32.mrf.mxu0
        %v5260 = vadd.f32 %v5231, %v5259
        %5261 = vmatmul.bf16.gmra.mxu0 %v5083
        %v5262 = vpop.f32.mrf.mxu0
        %v5263 = vadd.f32 %v5234, %v5262
        %v5264 = vpop.f32.mrf.mxu0
        %v5265 = vadd.f32 %v5236, %v5264
        %5266 = vmatmul.bf16.gmra.mxu0 %v5085
        %v5267 = vpop.f32.mrf.mxu0
        %v5268 = vadd.f32 %v5239, %v5267
        %v5269 = vpop.f32.mrf.mxu0
        %v5270 = vadd.f32 %v5241, %v5269
        %5271 = vmatmul.bf16.gmra.mxu0 %v5087
        %v5272 = vpop.f32.mrf.mxu0
        %v5273 = vadd.f32 %v5244, %v5272
        %v5274 = vpop.f32.mrf.mxu0
        %v5275 = vadd.f32 %v5246, %v5274
        %5276 = vdwg.mxu0
        %v5277 = vadd.f32 %v4582, %v5258
        %v5278 = vadd.f32 %v4583, %v5260
        %v5279 = vadd.f32 %v4584, %v5263
        %v5280 = vadd.f32 %v4585, %v5265
        %v5281 = vadd.f32 %v4586, %v5268
        %v5282 = vadd.f32 %v4587, %v5270
        %v5283 = vadd.f32 %v4588, %v5273
        %v5284 = vadd.f32 %v4589, %v5275
        %v5285 = vpack.c.bf16 %v5278, %v5277
        %v5286 = vpack.c.bf16 %v5280, %v5279
        %v5287 = vpack.c.bf16 %v5282, %v5281
        %v5288 = vpack.c.bf16 %v5284, %v5283
        %v5289 = vld [vmem:[%s13] sm:$0xf]
        %v5290 = vld [vmem:[%s13 + $0x4] sm:$0xf]
        %v5291 = vld [vmem:[%s13 + $0x8] sm:$0xf]
        %v5292 = vld [vmem:[%s13 + $0xc] sm:$0xf]
        %v5293 = vld [vmem:[%s13 + $0x10] sm:$0xf]
        %v5294 = vld [vmem:[%s13 + $0x14] sm:$0xf]
        %v5295 = vld [vmem:[%s13 + $0x18] sm:$0xf]
        %v5296 = vld [vmem:[%s13 + $0x1c] sm:$0xf]
        %v5297 = vld [vmem:[%s13 + $0x20] sm:$0xf]
        %v5298 = vld [vmem:[%s13 + $0x24] sm:$0xf]
        %v5299 = vld [vmem:[%s13 + $0x28] sm:$0xf]
        %v5300 = vld [vmem:[%s13 + $0x2c] sm:$0xf]
        %v5301 = vld [vmem:[%s13 + $0x30] sm:$0xf]
        %v5302 = vld [vmem:[%s13 + $0x34] sm:$0xf]
        %v5303 = vld [vmem:[%s13 + $0x38] sm:$0xf]
        %v5304 = vld [vmem:[%s13 + $0x3c] sm:$0xf]
        %v5305 = vld [vmem:[%s14] sm:$0x1]
        %v5307 = vperm.slane %v5305, 0
        %v5325 = vunpack.c.l.b16 %v5289
        %v5326 = vunpack.c.l.b16 %v5290
        %v5327 = vunpack.c.l.b16 %v5291
        %v5328 = vunpack.c.l.b16 %v5292
        %v5329 = vunpack.c.l.b16 %v5293
        %v5330 = vunpack.c.l.b16 %v5294
        %v5331 = vunpack.c.l.b16 %v5295
        %v5332 = vunpack.c.l.b16 %v5296
        %v5333 = vunpack.c.l.b16 %v5297
        %v5334 = vunpack.c.l.b16 %v5298
        %v5335 = vunpack.c.l.b16 %v5299
        %v5336 = vunpack.c.l.b16 %v5300
        %v5337 = vunpack.c.l.b16 %v5301
        %v5338 = vunpack.c.l.b16 %v5302
        %v5339 = vunpack.c.l.b16 %v5303
        %v5340 = vunpack.c.l.b16 %v5304
        %v5341 = vpack.c.b16 %v5326, %v5325
        %v5342 = vpack.c.b16 %v5328, %v5327
        %v5343 = vpack.c.b16 %v5330, %v5329
        %v5344 = vpack.c.b16 %v5332, %v5331
        %v5345 = vpack.c.b16 %v5334, %v5333
        %v5346 = vpack.c.b16 %v5336, %v5335
        %v5347 = vpack.c.b16 %v5338, %v5337
        %v5348 = vpack.c.b16 %v5340, %v5339
        %5357 = vmatpush.bf16.msra.mxu0 %v5348
        %5358 = vmatpush.bf16.msra.mxu0 %v5347
        %5359 = vmatpush.bf16.msra.mxu0 %v5346
        %5360 = vmatpush.bf16.msra.mxu0 %v5345
        %5361 = vmatpush.bf16.msra.mxu0 %v5344
        %5362 = vmatpush.bf16.msra.mxu0 %v5343
        %5363 = vmatpush.bf16.msra.mxu0 %v5342
        %5364 = vmatpush.bf16.msra.mxu0 %v5341
        %5365 = vmatmul.bf16.gmra.mxu0 %v5285
        %v5366 = vpop.f32.mrf.mxu0
        %v5367 = vadd.f32 %v5307, %v5366
        %v5368 = vpop.f32.mrf.mxu0
        %v5369 = vadd.f32 %v5307, %v5368
        %5370 = vmatmul.bf16.gmra.mxu0 %v5286
        %v5371 = vpop.f32.mrf.mxu0
        %v5372 = vadd.f32 %v5307, %v5371
        %v5373 = vpop.f32.mrf.mxu0
        %v5374 = vadd.f32 %v5307, %v5373
        %5375 = vmatmul.bf16.gmra.mxu0 %v5287
        %v5376 = vpop.f32.mrf.mxu0
        %v5377 = vadd.f32 %v5307, %v5376
        %v5378 = vpop.f32.mrf.mxu0
        %v5379 = vadd.f32 %v5307, %v5378
        %5380 = vmatmul.bf16.gmra.mxu0 %v5288
        %v5381 = vpop.f32.mrf.mxu0
        %v5382 = vadd.f32 %v5307, %v5381
        %v5383 = vpop.f32.mrf.mxu0
        %v5384 = vadd.f32 %v5307, %v5383
        %5385 = vdwg.mxu0
        %v5386 = vtanh.pop %v5367
        %v5387 = vtanh.pop %v5369
        %v5388 = vtanh.pop %v5372
        %v5389 = vtanh.pop %v5374
        %v5390 = vtanh.pop %v5377
        %v5391 = vtanh.pop %v5379
        %v5392 = vtanh.pop %v5382
        %v5393 = vtanh.pop %v5384
        %v5394 = vpack.c.bf16 %v5387, %v5386
        %v5395 = vpack.c.bf16 %v5389, %v5388
        %v5396 = vpack.c.bf16 %v5391, %v5390
        %v5397 = vpack.c.bf16 %v5393, %v5392
        %v5398 = vld [vmem:[%s15] sm:$0xff]
        %v5399 = vld [vmem:[%s15 + $0x8] sm:$0xff]
        %v5400 = vld [vmem:[%s15 + $0x10] sm:$0xff]
        %v5401 = vld [vmem:[%s15 + $0x18] sm:$0xff]
        %v5402 = vld [vmem:[%s15 + $0x20] sm:$0xff]
        %v5403 = vld [vmem:[%s15 + $0x28] sm:$0xff]
        %v5404 = vld [vmem:[%s15 + $0x30] sm:$0xff]
        %v5405 = vld [vmem:[%s15 + $0x38] sm:$0xff]
        %v5406 = vld [vmem:[%s15 + $0x40] sm:$0xff]
        %v5407 = vld [vmem:[%s15 + $0x48] sm:$0xff]
        %v5408 = vld [vmem:[%s15 + $0x50] sm:$0xff]
        %v5409 = vld [vmem:[%s15 + $0x58] sm:$0xff]
        %v5410 = vld [vmem:[%s15 + $0x60] sm:$0xff]
        %v5411 = vld [vmem:[%s15 + $0x68] sm:$0xff]
        %v5412 = vld [vmem:[%s15 + $0x70] sm:$0xff]
        %v5413 = vld [vmem:[%s15 + $0x78] sm:$0xff]
        %v5414 = vld [vmem:[%s16] sm:$0x3]
        %v5416 = vperm.slane %v5414, 0
        %v5417 = vperm.slane %v5414, 1
        %v5436 = vunpack.c.l.b16 %v5398
        %v5437 = vunpack.c.h.b16 %v5398
        %v5438 = vunpack.c.l.b16 %v5399
        %v5439 = vunpack.c.h.b16 %v5399
        %v5440 = vunpack.c.l.b16 %v5400
        %v5441 = vunpack.c.h.b16 %v5400
        %v5442 = vunpack.c.l.b16 %v5401
        %v5443 = vunpack.c.h.b16 %v5401
        %v5444 = vunpack.c.l.b16 %v5402
        %v5445 = vunpack.c.h.b16 %v5402
        %v5446 = vunpack.c.l.b16 %v5403
        %v5447 = vunpack.c.h.b16 %v5403
        %v5448 = vunpack.c.l.b16 %v5404
        %v5449 = vunpack.c.h.b16 %v5404
        %v5450 = vunpack.c.l.b16 %v5405
        %v5451 = vunpack.c.h.b16 %v5405
        %v5452 = vunpack.c.l.b16 %v5406
        %v5453 = vunpack.c.h.b16 %v5406
        %v5454 = vunpack.c.l.b16 %v5407
        %v5455 = vunpack.c.h.b16 %v5407
        %v5456 = vunpack.c.l.b16 %v5408
        %v5457 = vunpack.c.h.b16 %v5408
        %v5458 = vunpack.c.l.b16 %v5409
        %v5459 = vunpack.c.h.b16 %v5409
        %v5460 = vunpack.c.l.b16 %v5410
        %v5461 = vunpack.c.h.b16 %v5410
        %v5462 = vunpack.c.l.b16 %v5411
        %v5463 = vunpack.c.h.b16 %v5411
        %v5464 = vunpack.c.l.b16 %v5412
        %v5465 = vunpack.c.h.b16 %v5412
        %v5466 = vunpack.c.l.b16 %v5413
        %v5467 = vunpack.c.h.b16 %v5413
        %v5468 = vpack.c.b16 %v5438, %v5436
        %v5469 = vpack.c.b16 %v5439, %v5437
        %v5470 = vpack.c.b16 %v5442, %v5440
        %v5471 = vpack.c.b16 %v5443, %v5441
        %v5472 = vpack.c.b16 %v5446, %v5444
        %v5473 = vpack.c.b16 %v5447, %v5445
        %v5474 = vpack.c.b16 %v5450, %v5448
        %v5475 = vpack.c.b16 %v5451, %v5449
        %v5476 = vpack.c.b16 %v5454, %v5452
        %v5477 = vpack.c.b16 %v5455, %v5453
        %v5478 = vpack.c.b16 %v5458, %v5456
        %v5479 = vpack.c.b16 %v5459, %v5457
        %v5480 = vpack.c.b16 %v5462, %v5460
        %v5481 = vpack.c.b16 %v5463, %v5461
        %v5482 = vpack.c.b16 %v5466, %v5464
        %v5483 = vpack.c.b16 %v5467, %v5465
        %5500 = vmatpush.bf16.msra.mxu0 %v5482
        %5501 = vmatpush.bf16.msra.mxu0 %v5480
        %5502 = vmatpush.bf16.msra.mxu0 %v5478
        %5503 = vmatpush.bf16.msra.mxu0 %v5476
        %5504 = vmatpush.bf16.msra.mxu0 %v5474
        %5505 = vmatpush.bf16.msra.mxu0 %v5472
        %5506 = vmatpush.bf16.msra.mxu0 %v5470
        %5507 = vmatpush.bf16.msra.mxu0 %v5468
        %5508 = vmatmul.bf16.gmra.mxu0 %v5394
        %v5509 = vpop.f32.mrf.mxu0
        %v5510 = vadd.f32 %v5416, %v5509
        %v5511 = vpop.f32.mrf.mxu0
        %v5512 = vadd.f32 %v5416, %v5511
        %5513 = vmatmul.bf16.gmra.mxu0 %v5395
        %v5514 = vpop.f32.mrf.mxu0
        %v5515 = vadd.f32 %v5416, %v5514
        %v5516 = vpop.f32.mrf.mxu0
        %v5517 = vadd.f32 %v5416, %v5516
        %5518 = vmatmul.bf16.gmra.mxu0 %v5396
        %v5519 = vpop.f32.mrf.mxu0
        %v5520 = vadd.f32 %v5416, %v5519
        %v5521 = vpop.f32.mrf.mxu0
        %v5522 = vadd.f32 %v5416, %v5521
        %5523 = vmatmul.bf16.gmra.mxu0 %v5397
        %v5524 = vpop.f32.mrf.mxu0
        %v5525 = vadd.f32 %v5416, %v5524
        %v5526 = vpop.f32.mrf.mxu0
        %v5527 = vadd.f32 %v5416, %v5526
        %5528 = vdwg.mxu0
        %5529 = vmatpush.bf16.msra.mxu0 %v5483
        %5530 = vmatpush.bf16.msra.mxu0 %v5481
        %5531 = vmatpush.bf16.msra.mxu0 %v5479
        %5532 = vmatpush.bf16.msra.mxu0 %v5477
        %5533 = vmatpush.bf16.msra.mxu0 %v5475
        %5534 = vmatpush.bf16.msra.mxu0 %v5473
        %5535 = vmatpush.bf16.msra.mxu0 %v5471
        %5536 = vmatpush.bf16.msra.mxu0 %v5469
        %5537 = vmatmul.bf16.gmra.mxu0 %v5394
        %v5538 = vpop.f32.mrf.mxu0
        %v5539 = vadd.f32 %v5417, %v5538
        %v5540 = vpop.f32.mrf.mxu0
        %v5541 = vadd.f32 %v5417, %v5540
        %5542 = vmatmul.bf16.gmra.mxu0 %v5395
        %v5543 = vpop.f32.mrf.mxu0
        %v5544 = vadd.f32 %v5417, %v5543
        %v5545 = vpop.f32.mrf.mxu0
        %v5546 = vadd.f32 %v5417, %v5545
        %5547 = vmatmul.bf16.gmra.mxu0 %v5396
        %v5548 = vpop.f32.mrf.mxu0
        %v5549 = vadd.f32 %v5417, %v5548
        %v5550 = vpop.f32.mrf.mxu0
        %v5551 = vadd.f32 %v5417, %v5550
        %5552 = vmatmul.bf16.gmra.mxu0 %v5397
        %v5553 = vpop.f32.mrf.mxu0
        %v5554 = vadd.f32 %v5417, %v5553
        %v5555 = vpop.f32.mrf.mxu0
        %v5556 = vadd.f32 %v5417, %v5555
        %5557 = vdwg.mxu0
        %5558 = vst [vmem:[%s541] sm:$0xff] %v5510
        %5559 = vst [vmem:[%s541 + $0x8] sm:$0xff] %v5539
        %5560 = vst [vmem:[%s541 + $0x10] sm:$0xff] %v5512
        %5561 = vst [vmem:[%s541 + $0x18] sm:$0xff] %v5541
        %5562 = vst [vmem:[%s541 + $0x20] sm:$0xff] %v5515
        %5563 = vst [vmem:[%s541 + $0x28] sm:$0xff] %v5544
        %5564 = vst [vmem:[%s541 + $0x30] sm:$0xff] %v5517
        %5565 = vst [vmem:[%s541 + $0x38] sm:$0xff] %v5546
        %5566 = vst [vmem:[%s541 + $0x40] sm:$0xff] %v5520
        %5567 = vst [vmem:[%s541 + $0x48] sm:$0xff] %v5549
        %5568 = vst [vmem:[%s541 + $0x50] sm:$0xff] %v5522
        %5569 = vst [vmem:[%s541 + $0x58] sm:$0xff] %v5551
        %5570 = vst [vmem:[%s541 + $0x60] sm:$0xff] %v5525
        %5571 = vst [vmem:[%s541 + $0x68] sm:$0xff] %v5554
        %5572 = vst [vmem:[%s541 + $0x70] sm:$0xff] %v5527
        %5573 = vst [vmem:[%s541 + $0x78] sm:$0xff] %v5556
        %s5574 = sand.u32 %s401, 1
        %s5575 = scalar_lea.sflag [#allocation3], %s5574
        %s5576 = sand.u32 %s401, 1
        %s5577 = smul.addr %s5576, 128
        %s5578 = scalar_lea.vmem [#allocation2], %s5577
        // Predicated region
        $region89: #{transformer_cla_forward.1} parent=87 // pred_check
          %p5579 = pneg %p411
        $region90: #{transformer_cla_forward.1} parent=87 // pred_check_branch
          %5581 = sbr.rel (%p5579) target = $region92
        $region91: #{transformer_cla_forward.1} parent=87 // pred_region
          %5583 = vsyncadd %s5575, 0
          %s5584 = smul.addr %s31, 16
          %s5585 = smul.addr %s5584, 8
          %s5586 = scalar_lea.hbm %s17, %s5585
          %s5587 = sshll.u32 %s5578, 4
          %s5588 = int_to_ptr.vmem [resolvable:$true] %s5587
          %s5589 = sshll.u32 %s5586, 4
          %s5590 = int_to_ptr.hbm [resolvable:$true] %s5589
          %5595 = dma.vmem_to_hbm [thread:$0]  %s5588, 2048, %s5590, %s5575, 256, 256, 16
        $region92: #{transformer_cla_forward.1} parent=87 // pred_fallthru
          _
      $region88: #{transformer_cla_forward.1} parent=5 // pred_fallthru
        _
      %p5596 = scmp.le.s32.totalorder 2, %s26
      // Predicated region
      $region93: #{transformer_cla_forward.1} parent=5 // pred_check
        %p5597 = pneg %p5596
      $region94: #{transformer_cla_forward.1} parent=5 // pred_check_branch
        %5599 = sbr.rel (%p5597) target = $region96
      $region95: #{transformer_cla_forward.1} parent=5 // pred_region
        %s5600 = ssub.s32 %s26, 2
        // Predicated region
        $region97: #{transformer_cla_forward.1} parent=95 // pred_check
          %p5601 = pneg %p417
        $region98: #{transformer_cla_forward.1} parent=95 // pred_check_branch
          %5603 = sbr.rel (%p5601) target = $region100
        $region99: #{transformer_cla_forward.1} parent=95 // pred_region
          %s5604 = sand.u32 %s402, 1
          %s5605 = scalar_lea.sflag [#allocation3], %s5604
          %s5606 = sand.u32 %s402, 1
          %s5607 = smul.addr %s5606, 128
          %s5608 = scalar_lea.vmem [#allocation2], %s5607
          %5610 = dma.done %s5605, 2048
        $region100: #{transformer_cla_forward.1} parent=95 // pred_fallthru
          _
      $region96: #{transformer_cla_forward.1} parent=5 // pred_fallthru
        _
    $region6: #{transformer_cla_forward.1} parent=1 // loop_footer
      %s30 = sadd.s32 1, %s26
    $region7: #{transformer_cla_forward.1} parent=1 // loop_footer_branch
      %25 = sbr.rel target = $region3
    $region8: #{transformer_cla_forward.1} parent=1 // loop_exit
      _
    %5611 = vsyncpa [#allocation3], 1
    %s5612 = scalar_lea.sflag [#allocation3], 1
    %5613 = vsyncpa %s5612, 1

</llo_original>
